<compile_context>
chip_gen: v5e
topology: v5e:2x2
jax: 0.10.0
libtpu: 0.0.40
codegen_flags: <defaults>
</compile_context>

<pallas_src>
from functools import partial

import jax
import jax.numpy as jnp
from jax.experimental import pallas as pl
from jax.experimental.pallas import tpu as pltpu


# ----------------------------------------------------------------------------
# Helpers
# ----------------------------------------------------------------------------
def _round_up(x, m):
    return ((x + m - 1) // m) * m


def _full_spec(arr):
    """Whole-array VMEM block that stays resident across the grid."""
    return pl.BlockSpec(arr.shape, lambda i, nd=arr.ndim: (0,) * nd)


def _smem_spec():
    return pl.BlockSpec(memory_space=pltpu.MemorySpace.SMEM)


# ----------------------------------------------------------------------------
# Fused grid-branch kernel
#   x_ref : (T_in, C2, TP)      pixels in the lane axis
#   out   : (T_out, C_fin, TP)
#   encoder MLP -> time mix -> decoder MLP, all on VMEM-resident data.
# ----------------------------------------------------------------------------
def _grid_branch_kernel(x_ref, w1t_ref, b1_ref, w2t_ref, b2_ref,
                        dw1t_ref, db1_ref, dw2t_ref, db2_ref,
                        wt_ref, bt_ref, o_ref, *, t_in, t_out):
    w1t = w1t_ref[...]
    b1 = b1_ref[...]
    w2t = w2t_ref[...]
    b2 = b2_ref[...]
    dw1t = dw1t_ref[...]
    db1 = db1_ref[...]
    dw2t = dw2t_ref[...]
    db2 = db2_ref[...]

    accs = [None] * t_out
    for t in range(t_in):
        xt = x_ref[t, :, :]                                        # (C2, TP)
        h = jnp.maximum(
            jnp.dot(w1t, xt, preferred_element_type=jnp.float32) + b1, 0.0)
        e = jnp.dot(w2t, h, preferred_element_type=jnp.float32) + b2
        for o in range(t_out):                                     # time mix
            c = wt_ref[t, o] * e
            accs[o] = c if accs[o] is None else accs[o] + c

    for o in range(t_out):
        m = accs[o] + bt_ref[0, o]
        # TODO(synk): dropout(p=0.2) implemented as eval-mode identity.
        d = jnp.maximum(
            jnp.dot(dw1t, m, preferred_element_type=jnp.float32) + db1, 0.0)
        y = jnp.dot(dw2t, d, preferred_element_type=jnp.float32) + db2
        o_ref[o, :, :] = y.astype(o_ref.dtype)


def grid_branch(params, grid_x):
    B, T_in, Hs, Ws, C2 = grid_x.shape
    hidden = params["enc_w1"].shape[1]
    C_out = params["enc_w2"].shape[1]
    T_out = params["tgrid_w"].shape[1]
    d_hid = params["dgrid_w1"].shape[1]
    C_fin = params["dgrid_w2"].shape[1]

    P = B * Hs * Ws
    # column-major layout: (T_in, C2, P); pixels occupy the lane dimension.
    x = jnp.transpose(grid_x, (1, 4, 0, 2, 3)).reshape(T_in, C2, P)

    P128 = _round_up(P, 128)
    TP = min(P128, 512)
    P_pad = _round_up(P, TP)
    if P_pad != P:
        x = jnp.pad(x, ((0, 0), (0, 0), (0, P_pad - P)))
    n_tiles = P_pad // TP

    # pre-transposed weights / column biases (tiny, one-time glue ops)
    w1t = params["enc_w1"].T
    b1c = params["enc_b1"].reshape(hidden, 1)
    w2t = params["enc_w2"].T
    b2c = params["enc_b2"].reshape(C_out, 1)
    dw1t = params["dgrid_w1"].T
    db1c = params["dgrid_b1"].reshape(d_hid, 1)
    dw2t = params["dgrid_w2"].T
    db2c = params["dgrid_b2"].reshape(C_fin, 1)
    wt = params["tgrid_w"]
    bt = params["tgrid_b"].reshape(1, T_out)

    weights = [w1t, b1c, w2t, b2c, dw1t, db1c, dw2t, db2c]

    out = pl.pallas_call(
        partial(_grid_branch_kernel, t_in=T_in, t_out=T_out),
        out_shape=jax.ShapeDtypeStruct((T_out, C_fin, P_pad), jnp.float32),
        grid=(n_tiles,),
        in_specs=[pl.BlockSpec((T_in, C2, TP), lambda i: (0, 0, i))]
                 + [_full_spec(w) for w in weights]
                 + [_smem_spec(), _smem_spec()],
        out_specs=pl.BlockSpec((T_out, C_fin, TP), lambda i: (0, 0, i)),
        compiler_params=pltpu.CompilerParams(
            dimension_semantics=("parallel",)),
    )(x, *weights, wt, bt)

    out = out[:, :, :P].reshape(T_out, C_fin, B, Hs, Ws)
    return jnp.transpose(out, (2, 0, 3, 4, 1))          # (B, T_out, H, W, C)


# ----------------------------------------------------------------------------
# Fused graph-branch kernel
#   x_ref : (B, T_in, N, C_in) whole array; adj and all weights VMEM-resident.
#   out   : (B, T_out, N_tgt, C_fin)
#   graph-conv x2 -> node projection -> time mix -> decoder MLP.
# ----------------------------------------------------------------------------
def _graph_branch_kernel(x_ref, adj_ref, w1_ref, b1_ref, w2_ref, b2_ref,
                         nwt_ref, nb_ref, dw1_ref, db1_ref, dw2_ref, db2_ref,
                         wt_ref, bt_ref, o_ref, *, batch, t_in, t_out):
    adj = adj_ref[...]
    w1 = w1_ref[...]
    b1 = b1_ref[...]
    w2 = w2_ref[...]
    b2 = b2_ref[...]
    nwt = nwt_ref[...]
    nb = nb_ref[...]
    dw1 = dw1_ref[...]
    db1 = db1_ref[...]
    dw2 = dw2_ref[...]
    db2 = db2_ref[...]

    for b in range(batch):
        accs = [None] * t_out
        for t in range(t_in):
            xf = x_ref[b, t, :, :]                                 # (N, C_in)
            # layer 1: relu(adj @ X @ W1 + b1)   (associativity: adj@(X@W1))
            u1 = jnp.dot(xf, w1, preferred_element_type=jnp.float32)
            h1 = jnp.maximum(
                jnp.dot(adj, u1, preferred_element_type=jnp.float32) + b1, 0.0)
            # layer 2: relu(adj @ H1 @ W2 + b2)
            u2 = jnp.dot(h1, w2, preferred_element_type=jnp.float32)
            h2 = jnp.maximum(
                jnp.dot(adj, u2, preferred_element_type=jnp.float32) + b2, 0.0)
            # node projection (input_nodes -> target_nodes)
            p = jnp.dot(nwt, h2, preferred_element_type=jnp.float32) + nb
            for o in range(t_out):                                 # time mix
                c = wt_ref[t, o] * p
                accs[o] = c if accs[o] is None else accs[o] + c

        for o in range(t_out):
            m = accs[o] + bt_ref[0, o]
            # TODO(synk): dropout(p=0.2) implemented as eval-mode identity.
            d = jnp.maximum(
                jnp.dot(m, dw1, preferred_element_type=jnp.float32) + db1, 0.0)
            y = jnp.dot(d, dw2, preferred_element_type=jnp.float32) + db2
            o_ref[b, o, :, :] = y.astype(o_ref.dtype)


def graph_branch(params, graph_x, adj):
    B, T_in, N, C_in = graph_x.shape
    hidden = params["g_w1"].shape[1]
    C_mid = params["g_w2"].shape[1]
    N_tgt = params["node_w"].shape[1]
    T_out = params["tgraph_w"].shape[1]
    d_hid = params["dgraph_w1"].shape[1]
    C_fin = params["dgraph_w2"].shape[1]

    gw1 = params["g_w1"]
    gb1 = params["g_b1"].reshape(1, hidden)
    gw2 = params["g_w2"]
    gb2 = params["g_b2"].reshape(1, C_mid)
    nwt = params["node_w"].T                      # (N_tgt, N)
    nbc = params["node_b"].reshape(N_tgt, 1)
    dw1 = params["dgraph_w1"]
    db1 = params["dgraph_b1"].reshape(1, d_hid)
    dw2 = params["dgraph_w2"]
    db2 = params["dgraph_b2"].reshape(1, C_fin)
    wt = params["tgraph_w"]
    bt = params["tgraph_b"].reshape(1, T_out)

    operands = [graph_x, adj, gw1, gb1, gw2, gb2, nwt, nbc, dw1, db1, dw2, db2]

    out = pl.pallas_call(
        partial(_graph_branch_kernel, batch=B, t_in=T_in, t_out=T_out),
        out_shape=jax.ShapeDtypeStruct((B, T_out, N_tgt, C_fin), jnp.float32),
        grid=(1,),
        in_specs=[_full_spec(a) for a in operands]
                 + [_smem_spec(), _smem_spec()],
        out_specs=pl.BlockSpec((B, T_out, N_tgt, C_fin),
                               lambda i: (0, 0, 0, 0)),
        compiler_params=pltpu.CompilerParams(
            dimension_semantics=("arbitrary",)),
    )(*operands, wt, bt)
    return out


# ----------------------------------------------------------------------------
# MMWP forward
# ----------------------------------------------------------------------------
def mmwp_forward(params, grid_x, graph):
    graph_x, adj = graph
    grid_out = grid_branch(params, grid_x)
    graph_out = graph_branch(params, graph_x, adj)
    return grid_out, graph_out


# ----------------------------------------------------------------------------
# Deterministic parameter initialisation (synthetic, not a checkpoint load)
# ----------------------------------------------------------------------------
def _init_linear(key, fan_in, fan_out):
    kw, kb = jax.random.split(key)
    w = jax.random.normal(kw, (fan_in, fan_out), jnp.float32) / jnp.sqrt(float(fan_in))
    b = jax.random.normal(kb, (fan_out,), jnp.float32) * 0.01
    return w, b


def init_params(key, in_channels, hidden_channels, out_channels,
                in_t, out_t, input_nodes, target_nodes):
    keys = jax.random.split(key, 10)
    p = {}
    p["enc_w1"], p["enc_b1"] = _init_linear(keys[0], 2 * in_channels, hidden_channels)
    p["enc_w2"], p["enc_b2"] = _init_linear(keys[1], hidden_channels, out_channels)
    p["g_w1"], p["g_b1"] = _init_linear(keys[2], in_channels, hidden_channels)
    p["g_w2"], p["g_b2"] = _init_linear(keys[3], hidden_channels, out_channels)
    p["node_w"], p["node_b"] = _init_linear(keys[4], input_nodes, target_nodes)
    p["tgrid_w"], p["tgrid_b"] = _init_linear(keys[5], in_t, out_t)
    p["tgraph_w"], p["tgraph_b"] = _init_linear(keys[6], in_t, out_t)
    p["dgrid_w1"], p["dgrid_b1"] = _init_linear(keys[7], out_channels, out_channels)
    p["dgrid_w2"], p["dgrid_b2"] = _init_linear(keys[8], out_channels, out_channels)
    p["dgraph_w1"], p["dgraph_b1"] = _init_linear(keys[9], out_channels, out_channels)
    kk = jax.random.split(keys[9])[0]
    p["dgraph_w2"], p["dgraph_b2"] = _init_linear(kk, out_channels, out_channels)
    return p


# ----------------------------------------------------------------------------
if __name__ == "__main__":
    B = 2
    in_channels = 4
    hidden_channels = 32
    out_channels = 16
    in_t, out_t = 8, 4
    Hs = Ws = 8
    input_nodes, target_nodes = 12, 10

    key = jax.random.PRNGKey(0)
    k_par, k_grid, k_gx, k_adj = jax.random.split(key, 4)

    params = init_params(k_par, in_channels, hidden_channels, out_channels,
                         in_t, out_t, input_nodes, target_nodes)

    # layout: grid (B, T_in, H, W, 2*C_in), graph_x (B, T_in, N, C_in), adj (N, N)
    grid = jax.random.normal(k_grid, (B, in_t, Hs, Ws, 2 * in_channels), jnp.float32)
    graph_x = jax.random.normal(k_gx, (B, in_t, input_nodes, in_channels), jnp.float32)
    adj = jax.nn.softmax(jax.random.normal(k_adj, (input_nodes, input_nodes),
                                           jnp.float32), axis=-1)

    fwd = jax.jit(mmwp_forward)
    grid_y, graph_y = fwd(params, grid, (graph_x, adj))
    jax.block_until_ready((grid_y, graph_y))

    assert grid_y.shape == (B, out_t, Hs, Ws, out_channels), grid_y.shape
    assert graph_y.shape == (B, out_t, target_nodes, out_channels), graph_y.shape
    assert bool(jnp.all(jnp.isfinite(grid_y))) and bool(jnp.all(jnp.isfinite(graph_y)))

    print("KERNEL_OK")
</pallas_src>

<mosaic_0001>
module attributes {stable_mosaic.version = 11 : i64} {
  func.func @_grid_branch_kernel(%arg0: i32, %arg1: memref<8x8x128xf32, #tpu.memory_space<vmem>>, %arg2: memref<32x8xf32, #tpu.memory_space<vmem>>, %arg3: memref<32x1xf32, #tpu.memory_space<vmem>>, %arg4: memref<16x32xf32, #tpu.memory_space<vmem>>, %arg5: memref<16x1xf32, #tpu.memory_space<vmem>>, %arg6: memref<16x16xf32, #tpu.memory_space<vmem>>, %arg7: memref<16x1xf32, #tpu.memory_space<vmem>>, %arg8: memref<16x16xf32, #tpu.memory_space<vmem>>, %arg9: memref<16x1xf32, #tpu.memory_space<vmem>>, %arg10: memref<8x4xf32, #tpu.memory_space<smem>>, %arg11: memref<1x4xf32, #tpu.memory_space<smem>>, %arg12: memref<4x16x128xf32, #tpu.memory_space<vmem>>) attributes {dimension_semantics = [#tpu.dimension_semantics<parallel>], iteration_bounds = array<i64: 1>, scalar_prefetch = 0 : i64, scratch_operands = 0 : i64, tpu.core_type = #tpu.core_type<tc>, window_params = [{transform_indices = @transform_0, window_bounds = array<i64: 8, 8, 128>}, {pipeline_mode = #tpu.pipeline_mode<synchronous>, transform_indices = @transform_1, window_bounds = array<i64: 32, 8>}, {pipeline_mode = #tpu.pipeline_mode<synchronous>, transform_indices = @transform_2, window_bounds = array<i64: 32, 1>}, {pipeline_mode = #tpu.pipeline_mode<synchronous>, transform_indices = @transform_3, window_bounds = array<i64: 16, 32>}, {pipeline_mode = #tpu.pipeline_mode<synchronous>, transform_indices = @transform_4, window_bounds = array<i64: 16, 1>}, {pipeline_mode = #tpu.pipeline_mode<synchronous>, transform_indices = @transform_5, window_bounds = array<i64: 16, 16>}, {pipeline_mode = #tpu.pipeline_mode<synchronous>, transform_indices = @transform_6, window_bounds = array<i64: 16, 1>}, {pipeline_mode = #tpu.pipeline_mode<synchronous>, transform_indices = @transform_7, window_bounds = array<i64: 16, 16>}, {pipeline_mode = #tpu.pipeline_mode<synchronous>, transform_indices = @transform_8, window_bounds = array<i64: 16, 1>}, {transform_indices = @transform_9, window_bounds = array<i64: 8, 4>}, {transform_indices = @transform_10, window_bounds = array<i64: 1, 4>}, {transform_indices = @transform_11, window_bounds = array<i64: 4, 16, 128>}]} {
    %c0 = arith.constant 0 : index
    %c0_0 = arith.constant 0 : index
    %0 = vector.load %arg2[%c0, %c0_0] : memref<32x8xf32, #tpu.memory_space<vmem>>, vector<32x8xf32>
    %c0_1 = arith.constant 0 : index
    %c0_2 = arith.constant 0 : index
    %1 = vector.load %arg3[%c0_1, %c0_2] : memref<32x1xf32, #tpu.memory_space<vmem>>, vector<32x1xf32>
    %c0_3 = arith.constant 0 : index
    %c0_4 = arith.constant 0 : index
    %2 = vector.load %arg4[%c0_3, %c0_4] : memref<16x32xf32, #tpu.memory_space<vmem>>, vector<16x32xf32>
    %c0_5 = arith.constant 0 : index
    %c0_6 = arith.constant 0 : index
    %3 = vector.load %arg5[%c0_5, %c0_6] : memref<16x1xf32, #tpu.memory_space<vmem>>, vector<16x1xf32>
    %c0_7 = arith.constant 0 : index
    %c0_8 = arith.constant 0 : index
    %4 = vector.load %arg6[%c0_7, %c0_8] : memref<16x16xf32, #tpu.memory_space<vmem>>, vector<16x16xf32>
    %c0_9 = arith.constant 0 : index
    %c0_10 = arith.constant 0 : index
    %5 = vector.load %arg7[%c0_9, %c0_10] : memref<16x1xf32, #tpu.memory_space<vmem>>, vector<16x1xf32>
    %c0_11 = arith.constant 0 : index
    %c0_12 = arith.constant 0 : index
    %6 = vector.load %arg8[%c0_11, %c0_12] : memref<16x16xf32, #tpu.memory_space<vmem>>, vector<16x16xf32>
    %c0_13 = arith.constant 0 : index
    %c0_14 = arith.constant 0 : index
    %7 = vector.load %arg9[%c0_13, %c0_14] : memref<16x1xf32, #tpu.memory_space<vmem>>, vector<16x1xf32>
    %c0_15 = arith.constant 0 : index
    %c0_16 = arith.constant 0 : index
    %c0_17 = arith.constant 0 : index
    %8 = vector.load %arg1[%c0_15, %c0_16, %c0_17] : memref<8x8x128xf32, #tpu.memory_space<vmem>>, vector<1x8x128xf32>
    %9 = vector.shape_cast %8 : vector<1x8x128xf32> to vector<8x128xf32>
    %cst = arith.constant dense<0.000000e+00> : vector<32x128xf32>
    %10 = tpu.matmul %0, %9, %cst {dimension_numbers = #tpu.dot_dimension_numbers<[1], [0], [0], [1], [0, 0, 1, 1], [], []>} : vector<32x8xf32>, vector<8x128xf32>, vector<32x128xf32> -> vector<32x128xf32>
    %11 = vector.broadcast %1 : vector<32x1xf32> to vector<32x128xf32>
    %12 = arith.addf %10, %11 : vector<32x128xf32>
    %cst_18 = arith.constant 0.000000e+00 : f32
    %13 = vector.broadcast %cst_18 : f32 to vector<32x128xf32>
    %14 = arith.maximumf %12, %13 : vector<32x128xf32>
    %cst_19 = arith.constant dense<0.000000e+00> : vector<16x128xf32>
    %15 = tpu.matmul %2, %14, %cst_19 {dimension_numbers = #tpu.dot_dimension_numbers<[1], [0], [0], [1], [0, 0, 1, 1], [], []>} : vector<16x32xf32>, vector<32x128xf32>, vector<16x128xf32> -> vector<16x128xf32>
    %16 = vector.broadcast %3 : vector<16x1xf32> to vector<16x128xf32>
    %17 = arith.addf %15, %16 : vector<16x128xf32>
    %c0_20 = arith.constant 0 : index
    %c0_21 = arith.constant 0 : index
    %18 = memref.load %arg10[%c0_20, %c0_21] : memref<8x4xf32, #tpu.memory_space<smem>>
    %19 = vector.broadcast %18 : f32 to vector<16x128xf32>
    %20 = arith.mulf %19, %17 : vector<16x128xf32>
    %c0_22 = arith.constant 0 : index
    %c1 = arith.constant 1 : index
    %21 = memref.load %arg10[%c0_22, %c1] : memref<8x4xf32, #tpu.memory_space<smem>>
    %22 = vector.broadcast %21 : f32 to vector<16x128xf32>
    %23 = arith.mulf %22, %17 : vector<16x128xf32>
    %c0_23 = arith.constant 0 : index
    %c2 = arith.constant 2 : index
    %24 = memref.load %arg10[%c0_23, %c2] : memref<8x4xf32, #tpu.memory_space<smem>>
    %25 = vector.broadcast %24 : f32 to vector<16x128xf32>
    %26 = arith.mulf %25, %17 : vector<16x128xf32>
    %c0_24 = arith.constant 0 : index
    %c3 = arith.constant 3 : index
    %27 = memref.load %arg10[%c0_24, %c3] : memref<8x4xf32, #tpu.memory_space<smem>>
    %28 = vector.broadcast %27 : f32 to vector<16x128xf32>
    %29 = arith.mulf %28, %17 : vector<16x128xf32>
    %c1_25 = arith.constant 1 : index
    %c0_26 = arith.constant 0 : index
    %c0_27 = arith.constant 0 : index
    %30 = vector.load %arg1[%c1_25, %c0_26, %c0_27] : memref<8x8x128xf32, #tpu.memory_space<vmem>>, vector<1x8x128xf32>
    %31 = vector.shape_cast %30 : vector<1x8x128xf32> to vector<8x128xf32>
    %cst_28 = arith.constant dense<0.000000e+00> : vector<32x128xf32>
    %32 = tpu.matmul %0, %31, %cst_28 {dimension_numbers = #tpu.dot_dimension_numbers<[1], [0], [0], [1], [0, 0, 1, 1], [], []>} : vector<32x8xf32>, vector<8x128xf32>, vector<32x128xf32> -> vector<32x128xf32>
    %33 = vector.broadcast %1 : vector<32x1xf32> to vector<32x128xf32>
    %34 = arith.addf %32, %33 : vector<32x128xf32>
    %cst_29 = arith.constant 0.000000e+00 : f32
    %35 = vector.broadcast %cst_29 : f32 to vector<32x128xf32>
    %36 = arith.maximumf %34, %35 : vector<32x128xf32>
    %cst_30 = arith.constant dense<0.000000e+00> : vector<16x128xf32>
    %37 = tpu.matmul %2, %36, %cst_30 {dimension_numbers = #tpu.dot_dimension_numbers<[1], [0], [0], [1], [0, 0, 1, 1], [], []>} : vector<16x32xf32>, vector<32x128xf32>, vector<16x128xf32> -> vector<16x128xf32>
    %38 = vector.broadcast %3 : vector<16x1xf32> to vector<16x128xf32>
    %39 = arith.addf %37, %38 : vector<16x128xf32>
    %c1_31 = arith.constant 1 : index
    %c0_32 = arith.constant 0 : index
    %40 = memref.load %arg10[%c1_31, %c0_32] : memref<8x4xf32, #tpu.memory_space<smem>>
    %41 = vector.broadcast %40 : f32 to vector<16x128xf32>
    %42 = arith.mulf %41, %39 : vector<16x128xf32>
    %43 = arith.addf %20, %42 : vector<16x128xf32>
    %c1_33 = arith.constant 1 : index
    %c1_34 = arith.constant 1 : index
    %44 = memref.load %arg10[%c1_33, %c1_34] : memref<8x4xf32, #tpu.memory_space<smem>>
    %45 = vector.broadcast %44 : f32 to vector<16x128xf32>
    %46 = arith.mulf %45, %39 : vector<16x128xf32>
    %47 = arith.addf %23, %46 : vector<16x128xf32>
    %c1_35 = arith.constant 1 : index
    %c2_36 = arith.constant 2 : index
    %48 = memref.load %arg10[%c1_35, %c2_36] : memref<8x4xf32, #tpu.memory_space<smem>>
    %49 = vector.broadcast %48 : f32 to vector<16x128xf32>
    %50 = arith.mulf %49, %39 : vector<16x128xf32>
    %51 = arith.addf %26, %50 : vector<16x128xf32>
    %c1_37 = arith.constant 1 : index
    %c3_38 = arith.constant 3 : index
    %52 = memref.load %arg10[%c1_37, %c3_38] : memref<8x4xf32, #tpu.memory_space<smem>>
    %53 = vector.broadcast %52 : f32 to vector<16x128xf32>
    %54 = arith.mulf %53, %39 : vector<16x128xf32>
    %55 = arith.addf %29, %54 : vector<16x128xf32>
    %c2_39 = arith.constant 2 : index
    %c0_40 = arith.constant 0 : index
    %c0_41 = arith.constant 0 : index
    %56 = vector.load %arg1[%c2_39, %c0_40, %c0_41] : memref<8x8x128xf32, #tpu.memory_space<vmem>>, vector<1x8x128xf32>
    %57 = vector.shape_cast %56 : vector<1x8x128xf32> to vector<8x128xf32>
    %cst_42 = arith.constant dense<0.000000e+00> : vector<32x128xf32>
    %58 = tpu.matmul %0, %57, %cst_42 {dimension_numbers = #tpu.dot_dimension_numbers<[1], [0], [0], [1], [0, 0, 1, 1], [], []>} : vector<32x8xf32>, vector<8x128xf32>, vector<32x128xf32> -> vector<32x128xf32>
    %59 = vector.broadcast %1 : vector<32x1xf32> to vector<32x128xf32>
    %60 = arith.addf %58, %59 : vector<32x128xf32>
    %cst_43 = arith.constant 0.000000e+00 : f32
    %61 = vector.broadcast %cst_43 : f32 to vector<32x128xf32>
    %62 = arith.maximumf %60, %61 : vector<32x128xf32>
    %cst_44 = arith.constant dense<0.000000e+00> : vector<16x128xf32>
    %63 = tpu.matmul %2, %62, %cst_44 {dimension_numbers = #tpu.dot_dimension_numbers<[1], [0], [0], [1], [0, 0, 1, 1], [], []>} : vector<16x32xf32>, vector<32x128xf32>, vector<16x128xf32> -> vector<16x128xf32>
    %64 = vector.broadcast %3 : vector<16x1xf32> to vector<16x128xf32>
    %65 = arith.addf %63, %64 : vector<16x128xf32>
    %c2_45 = arith.constant 2 : index
    %c0_46 = arith.constant 0 : index
    %66 = memref.load %arg10[%c2_45, %c0_46] : memref<8x4xf32, #tpu.memory_space<smem>>
    %67 = vector.broadcast %66 : f32 to vector<16x128xf32>
    %68 = arith.mulf %67, %65 : vector<16x128xf32>
    %69 = arith.addf %43, %68 : vector<16x128xf32>
    %c2_47 = arith.constant 2 : index
    %c1_48 = arith.constant 1 : index
    %70 = memref.load %arg10[%c2_47, %c1_48] : memref<8x4xf32, #tpu.memory_space<smem>>
    %71 = vector.broadcast %70 : f32 to vector<16x128xf32>
    %72 = arith.mulf %71, %65 : vector<16x128xf32>
    %73 = arith.addf %47, %72 : vector<16x128xf32>
    %c2_49 = arith.constant 2 : index
    %c2_50 = arith.constant 2 : index
    %74 = memref.load %arg10[%c2_49, %c2_50] : memref<8x4xf32, #tpu.memory_space<smem>>
    %75 = vector.broadcast %74 : f32 to vector<16x128xf32>
    %76 = arith.mulf %75, %65 : vector<16x128xf32>
    %77 = arith.addf %51, %76 : vector<16x128xf32>
    %c2_51 = arith.constant 2 : index
    %c3_52 = arith.constant 3 : index
    %78 = memref.load %arg10[%c2_51, %c3_52] : memref<8x4xf32, #tpu.memory_space<smem>>
    %79 = vector.broadcast %78 : f32 to vector<16x128xf32>
    %80 = arith.mulf %79, %65 : vector<16x128xf32>
    %81 = arith.addf %55, %80 : vector<16x128xf32>
    %c3_53 = arith.constant 3 : index
    %c0_54 = arith.constant 0 : index
    %c0_55 = arith.constant 0 : index
    %82 = vector.load %arg1[%c3_53, %c0_54, %c0_55] : memref<8x8x128xf32, #tpu.memory_space<vmem>>, vector<1x8x128xf32>
    %83 = vector.shape_cast %82 : vector<1x8x128xf32> to vector<8x128xf32>
    %cst_56 = arith.constant dense<0.000000e+00> : vector<32x128xf32>
    %84 = tpu.matmul %0, %83, %cst_56 {dimension_numbers = #tpu.dot_dimension_numbers<[1], [0], [0], [1], [0, 0, 1, 1], [], []>} : vector<32x8xf32>, vector<8x128xf32>, vector<32x128xf32> -> vector<32x128xf32>
    %85 = vector.broadcast %1 : vector<32x1xf32> to vector<32x128xf32>
    %86 = arith.addf %84, %85 : vector<32x128xf32>
    %cst_57 = arith.constant 0.000000e+00 : f32
    %87 = vector.broadcast %cst_57 : f32 to vector<32x128xf32>
    %88 = arith.maximumf %86, %87 : vector<32x128xf32>
    %cst_58 = arith.constant dense<0.000000e+00> : vector<16x128xf32>
    %89 = tpu.matmul %2, %88, %cst_58 {dimension_numbers = #tpu.dot_dimension_numbers<[1], [0], [0], [1], [0, 0, 1, 1], [], []>} : vector<16x32xf32>, vector<32x128xf32>, vector<16x128xf32> -> vector<16x128xf32>
    %90 = vector.broadcast %3 : vector<16x1xf32> to vector<16x128xf32>
    %91 = arith.addf %89, %90 : vector<16x128xf32>
    %c3_59 = arith.constant 3 : index
    %c0_60 = arith.constant 0 : index
    %92 = memref.load %arg10[%c3_59, %c0_60] : memref<8x4xf32, #tpu.memory_space<smem>>
    %93 = vector.broadcast %92 : f32 to vector<16x128xf32>
    %94 = arith.mulf %93, %91 : vector<16x128xf32>
    %95 = arith.addf %69, %94 : vector<16x128xf32>
    %c3_61 = arith.constant 3 : index
    %c1_62 = arith.constant 1 : index
    %96 = memref.load %arg10[%c3_61, %c1_62] : memref<8x4xf32, #tpu.memory_space<smem>>
    %97 = vector.broadcast %96 : f32 to vector<16x128xf32>
    %98 = arith.mulf %97, %91 : vector<16x128xf32>
    %99 = arith.addf %73, %98 : vector<16x128xf32>
    %c3_63 = arith.constant 3 : index
    %c2_64 = arith.constant 2 : index
    %100 = memref.load %arg10[%c3_63, %c2_64] : memref<8x4xf32, #tpu.memory_space<smem>>
    %101 = vector.broadcast %100 : f32 to vector<16x128xf32>
    %102 = arith.mulf %101, %91 : vector<16x128xf32>
    %103 = arith.addf %77, %102 : vector<16x128xf32>
    %c3_65 = arith.constant 3 : index
    %c3_66 = arith.constant 3 : index
    %104 = memref.load %arg10[%c3_65, %c3_66] : memref<8x4xf32, #tpu.memory_space<smem>>
    %105 = vector.broadcast %104 : f32 to vector<16x128xf32>
    %106 = arith.mulf %105, %91 : vector<16x128xf32>
    %107 = arith.addf %81, %106 : vector<16x128xf32>
    %c4 = arith.constant 4 : index
    %c0_67 = arith.constant 0 : index
    %c0_68 = arith.constant 0 : index
    %108 = vector.load %arg1[%c4, %c0_67, %c0_68] : memref<8x8x128xf32, #tpu.memory_space<vmem>>, vector<1x8x128xf32>
    %109 = vector.shape_cast %108 : vector<1x8x128xf32> to vector<8x128xf32>
    %cst_69 = arith.constant dense<0.000000e+00> : vector<32x128xf32>
    %110 = tpu.matmul %0, %109, %cst_69 {dimension_numbers = #tpu.dot_dimension_numbers<[1], [0], [0], [1], [0, 0, 1, 1], [], []>} : vector<32x8xf32>, vector<8x128xf32>, vector<32x128xf32> -> vector<32x128xf32>
    %111 = vector.broadcast %1 : vector<32x1xf32> to vector<32x128xf32>
    %112 = arith.addf %110, %111 : vector<32x128xf32>
    %cst_70 = arith.constant 0.000000e+00 : f32
    %113 = vector.broadcast %cst_70 : f32 to vector<32x128xf32>
    %114 = arith.maximumf %112, %113 : vector<32x128xf32>
    %cst_71 = arith.constant dense<0.000000e+00> : vector<16x128xf32>
    %115 = tpu.matmul %2, %114, %cst_71 {dimension_numbers = #tpu.dot_dimension_numbers<[1], [0], [0], [1], [0, 0, 1, 1], [], []>} : vector<16x32xf32>, vector<32x128xf32>, vector<16x128xf32> -> vector<16x128xf32>
    %116 = vector.broadcast %3 : vector<16x1xf32> to vector<16x128xf32>
    %117 = arith.addf %115, %116 : vector<16x128xf32>
    %c4_72 = arith.constant 4 : index
    %c0_73 = arith.constant 0 : index
    %118 = memref.load %arg10[%c4_72, %c0_73] : memref<8x4xf32, #tpu.memory_space<smem>>
    %119 = vector.broadcast %118 : f32 to vector<16x128xf32>
    %120 = arith.mulf %119, %117 : vector<16x128xf32>
    %121 = arith.addf %95, %120 : vector<16x128xf32>
    %c4_74 = arith.constant 4 : index
    %c1_75 = arith.constant 1 : index
    %122 = memref.load %arg10[%c4_74, %c1_75] : memref<8x4xf32, #tpu.memory_space<smem>>
    %123 = vector.broadcast %122 : f32 to vector<16x128xf32>
    %124 = arith.mulf %123, %117 : vector<16x128xf32>
    %125 = arith.addf %99, %124 : vector<16x128xf32>
    %c4_76 = arith.constant 4 : index
    %c2_77 = arith.constant 2 : index
    %126 = memref.load %arg10[%c4_76, %c2_77] : memref<8x4xf32, #tpu.memory_space<smem>>
    %127 = vector.broadcast %126 : f32 to vector<16x128xf32>
    %128 = arith.mulf %127, %117 : vector<16x128xf32>
    %129 = arith.addf %103, %128 : vector<16x128xf32>
    %c4_78 = arith.constant 4 : index
    %c3_79 = arith.constant 3 : index
    %130 = memref.load %arg10[%c4_78, %c3_79] : memref<8x4xf32, #tpu.memory_space<smem>>
    %131 = vector.broadcast %130 : f32 to vector<16x128xf32>
    %132 = arith.mulf %131, %117 : vector<16x128xf32>
    %133 = arith.addf %107, %132 : vector<16x128xf32>
    %c5 = arith.constant 5 : index
    %c0_80 = arith.constant 0 : index
    %c0_81 = arith.constant 0 : index
    %134 = vector.load %arg1[%c5, %c0_80, %c0_81] : memref<8x8x128xf32, #tpu.memory_space<vmem>>, vector<1x8x128xf32>
    %135 = vector.shape_cast %134 : vector<1x8x128xf32> to vector<8x128xf32>
    %cst_82 = arith.constant dense<0.000000e+00> : vector<32x128xf32>
    %136 = tpu.matmul %0, %135, %cst_82 {dimension_numbers = #tpu.dot_dimension_numbers<[1], [0], [0], [1], [0, 0, 1, 1], [], []>} : vector<32x8xf32>, vector<8x128xf32>, vector<32x128xf32> -> vector<32x128xf32>
    %137 = vector.broadcast %1 : vector<32x1xf32> to vector<32x128xf32>
    %138 = arith.addf %136, %137 : vector<32x128xf32>
    %cst_83 = arith.constant 0.000000e+00 : f32
    %139 = vector.broadcast %cst_83 : f32 to vector<32x128xf32>
    %140 = arith.maximumf %138, %139 : vector<32x128xf32>
    %cst_84 = arith.constant dense<0.000000e+00> : vector<16x128xf32>
    %141 = tpu.matmul %2, %140, %cst_84 {dimension_numbers = #tpu.dot_dimension_numbers<[1], [0], [0], [1], [0, 0, 1, 1], [], []>} : vector<16x32xf32>, vector<32x128xf32>, vector<16x128xf32> -> vector<16x128xf32>
    %142 = vector.broadcast %3 : vector<16x1xf32> to vector<16x128xf32>
    %143 = arith.addf %141, %142 : vector<16x128xf32>
    %c5_85 = arith.constant 5 : index
    %c0_86 = arith.constant 0 : index
    %144 = memref.load %arg10[%c5_85, %c0_86] : memref<8x4xf32, #tpu.memory_space<smem>>
    %145 = vector.broadcast %144 : f32 to vector<16x128xf32>
    %146 = arith.mulf %145, %143 : vector<16x128xf32>
    %147 = arith.addf %121, %146 : vector<16x128xf32>
    %c5_87 = arith.constant 5 : index
    %c1_88 = arith.constant 1 : index
    %148 = memref.load %arg10[%c5_87, %c1_88] : memref<8x4xf32, #tpu.memory_space<smem>>
    %149 = vector.broadcast %148 : f32 to vector<16x128xf32>
    %150 = arith.mulf %149, %143 : vector<16x128xf32>
    %151 = arith.addf %125, %150 : vector<16x128xf32>
    %c5_89 = arith.constant 5 : index
    %c2_90 = arith.constant 2 : index
    %152 = memref.load %arg10[%c5_89, %c2_90] : memref<8x4xf32, #tpu.memory_space<smem>>
    %153 = vector.broadcast %152 : f32 to vector<16x128xf32>
    %154 = arith.mulf %153, %143 : vector<16x128xf32>
    %155 = arith.addf %129, %154 : vector<16x128xf32>
    %c5_91 = arith.constant 5 : index
    %c3_92 = arith.constant 3 : index
    %156 = memref.load %arg10[%c5_91, %c3_92] : memref<8x4xf32, #tpu.memory_space<smem>>
    %157 = vector.broadcast %156 : f32 to vector<16x128xf32>
    %158 = arith.mulf %157, %143 : vector<16x128xf32>
    %159 = arith.addf %133, %158 : vector<16x128xf32>
    %c6 = arith.constant 6 : index
    %c0_93 = arith.constant 0 : index
    %c0_94 = arith.constant 0 : index
    %160 = vector.load %arg1[%c6, %c0_93, %c0_94] : memref<8x8x128xf32, #tpu.memory_space<vmem>>, vector<1x8x128xf32>
    %161 = vector.shape_cast %160 : vector<1x8x128xf32> to vector<8x128xf32>
    %cst_95 = arith.constant dense<0.000000e+00> : vector<32x128xf32>
    %162 = tpu.matmul %0, %161, %cst_95 {dimension_numbers = #tpu.dot_dimension_numbers<[1], [0], [0], [1], [0, 0, 1, 1], [], []>} : vector<32x8xf32>, vector<8x128xf32>, vector<32x128xf32> -> vector<32x128xf32>
    %163 = vector.broadcast %1 : vector<32x1xf32> to vector<32x128xf32>
    %164 = arith.addf %162, %163 : vector<32x128xf32>
    %cst_96 = arith.constant 0.000000e+00 : f32
    %165 = vector.broadcast %cst_96 : f32 to vector<32x128xf32>
    %166 = arith.maximumf %164, %165 : vector<32x128xf32>
    %cst_97 = arith.constant dense<0.000000e+00> : vector<16x128xf32>
    %167 = tpu.matmul %2, %166, %cst_97 {dimension_numbers = #tpu.dot_dimension_numbers<[1], [0], [0], [1], [0, 0, 1, 1], [], []>} : vector<16x32xf32>, vector<32x128xf32>, vector<16x128xf32> -> vector<16x128xf32>
    %168 = vector.broadcast %3 : vector<16x1xf32> to vector<16x128xf32>
    %169 = arith.addf %167, %168 : vector<16x128xf32>
    %c6_98 = arith.constant 6 : index
    %c0_99 = arith.constant 0 : index
    %170 = memref.load %arg10[%c6_98, %c0_99] : memref<8x4xf32, #tpu.memory_space<smem>>
    %171 = vector.broadcast %170 : f32 to vector<16x128xf32>
    %172 = arith.mulf %171, %169 : vector<16x128xf32>
    %173 = arith.addf %147, %172 : vector<16x128xf32>
    %c6_100 = arith.constant 6 : index
    %c1_101 = arith.constant 1 : index
    %174 = memref.load %arg10[%c6_100, %c1_101] : memref<8x4xf32, #tpu.memory_space<smem>>
    %175 = vector.broadcast %174 : f32 to vector<16x128xf32>
    %176 = arith.mulf %175, %169 : vector<16x128xf32>
    %177 = arith.addf %151, %176 : vector<16x128xf32>
    %c6_102 = arith.constant 6 : index
    %c2_103 = arith.constant 2 : index
    %178 = memref.load %arg10[%c6_102, %c2_103] : memref<8x4xf32, #tpu.memory_space<smem>>
    %179 = vector.broadcast %178 : f32 to vector<16x128xf32>
    %180 = arith.mulf %179, %169 : vector<16x128xf32>
    %181 = arith.addf %155, %180 : vector<16x128xf32>
    %c6_104 = arith.constant 6 : index
    %c3_105 = arith.constant 3 : index
    %182 = memref.load %arg10[%c6_104, %c3_105] : memref<8x4xf32, #tpu.memory_space<smem>>
    %183 = vector.broadcast %182 : f32 to vector<16x128xf32>
    %184 = arith.mulf %183, %169 : vector<16x128xf32>
    %185 = arith.addf %159, %184 : vector<16x128xf32>
    %c7 = arith.constant 7 : index
    %c0_106 = arith.constant 0 : index
    %c0_107 = arith.constant 0 : index
    %186 = vector.load %arg1[%c7, %c0_106, %c0_107] : memref<8x8x128xf32, #tpu.memory_space<vmem>>, vector<1x8x128xf32>
    %187 = vector.shape_cast %186 : vector<1x8x128xf32> to vector<8x128xf32>
    %cst_108 = arith.constant dense<0.000000e+00> : vector<32x128xf32>
    %188 = tpu.matmul %0, %187, %cst_108 {dimension_numbers = #tpu.dot_dimension_numbers<[1], [0], [0], [1], [0, 0, 1, 1], [], []>} : vector<32x8xf32>, vector<8x128xf32>, vector<32x128xf32> -> vector<32x128xf32>
    %189 = vector.broadcast %1 : vector<32x1xf32> to vector<32x128xf32>
    %190 = arith.addf %188, %189 : vector<32x128xf32>
    %cst_109 = arith.constant 0.000000e+00 : f32
    %191 = vector.broadcast %cst_109 : f32 to vector<32x128xf32>
    %192 = arith.maximumf %190, %191 : vector<32x128xf32>
    %cst_110 = arith.constant dense<0.000000e+00> : vector<16x128xf32>
    %193 = tpu.matmul %2, %192, %cst_110 {dimension_numbers = #tpu.dot_dimension_numbers<[1], [0], [0], [1], [0, 0, 1, 1], [], []>} : vector<16x32xf32>, vector<32x128xf32>, vector<16x128xf32> -> vector<16x128xf32>
    %194 = vector.broadcast %3 : vector<16x1xf32> to vector<16x128xf32>
    %195 = arith.addf %193, %194 : vector<16x128xf32>
    %c7_111 = arith.constant 7 : index
    %c0_112 = arith.constant 0 : index
    %196 = memref.load %arg10[%c7_111, %c0_112] : memref<8x4xf32, #tpu.memory_space<smem>>
    %197 = vector.broadcast %196 : f32 to vector<16x128xf32>
    %198 = arith.mulf %197, %195 : vector<16x128xf32>
    %199 = arith.addf %173, %198 : vector<16x128xf32>
    %c7_113 = arith.constant 7 : index
    %c1_114 = arith.constant 1 : index
    %200 = memref.load %arg10[%c7_113, %c1_114] : memref<8x4xf32, #tpu.memory_space<smem>>
    %201 = vector.broadcast %200 : f32 to vector<16x128xf32>
    %202 = arith.mulf %201, %195 : vector<16x128xf32>
    %203 = arith.addf %177, %202 : vector<16x128xf32>
    %c7_115 = arith.constant 7 : index
    %c2_116 = arith.constant 2 : index
    %204 = memref.load %arg10[%c7_115, %c2_116] : memref<8x4xf32, #tpu.memory_space<smem>>
    %205 = vector.broadcast %204 : f32 to vector<16x128xf32>
    %206 = arith.mulf %205, %195 : vector<16x128xf32>
    %207 = arith.addf %181, %206 : vector<16x128xf32>
    %c7_117 = arith.constant 7 : index
    %c3_118 = arith.constant 3 : index
    %208 = memref.load %arg10[%c7_117, %c3_118] : memref<8x4xf32, #tpu.memory_space<smem>>
    %209 = vector.broadcast %208 : f32 to vector<16x128xf32>
    %210 = arith.mulf %209, %195 : vector<16x128xf32>
    %211 = arith.addf %185, %210 : vector<16x128xf32>
    %c0_119 = arith.constant 0 : index
    %c0_120 = arith.constant 0 : index
    %212 = memref.load %arg11[%c0_119, %c0_120] : memref<1x4xf32, #tpu.memory_space<smem>>
    %213 = vector.broadcast %212 : f32 to vector<16x128xf32>
    %214 = arith.addf %199, %213 : vector<16x128xf32>
    %cst_121 = arith.constant dense<0.000000e+00> : vector<16x128xf32>
    %215 = tpu.matmul %4, %214, %cst_121 {dimension_numbers = #tpu.dot_dimension_numbers<[1], [0], [0], [1], [0, 0, 1, 1], [], []>} : vector<16x16xf32>, vector<16x128xf32>, vector<16x128xf32> -> vector<16x128xf32>
    %216 = vector.broadcast %5 : vector<16x1xf32> to vector<16x128xf32>
    %217 = arith.addf %215, %216 : vector<16x128xf32>
    %cst_122 = arith.constant 0.000000e+00 : f32
    %218 = vector.broadcast %cst_122 : f32 to vector<16x128xf32>
    %219 = arith.maximumf %217, %218 : vector<16x128xf32>
    %cst_123 = arith.constant dense<0.000000e+00> : vector<16x128xf32>
    %220 = tpu.matmul %6, %219, %cst_123 {dimension_numbers = #tpu.dot_dimension_numbers<[1], [0], [0], [1], [0, 0, 1, 1], [], []>} : vector<16x16xf32>, vector<16x128xf32>, vector<16x128xf32> -> vector<16x128xf32>
    %221 = vector.broadcast %7 : vector<16x1xf32> to vector<16x128xf32>
    %222 = arith.addf %220, %221 : vector<16x128xf32>
    %c0_124 = arith.constant 0 : index
    %c0_125 = arith.constant 0 : index
    %c0_126 = arith.constant 0 : index
    %223 = vector.load %arg12[%c0_124, %c0_125, %c0_126] : memref<4x16x128xf32, #tpu.memory_space<vmem>>, vector<1x16x128xf32>
    %224 = vector.shape_cast %223 : vector<1x16x128xf32> to vector<16x128xf32>
    %225 = vector.shape_cast %222 : vector<16x128xf32> to vector<1x16x128xf32>
    tpu.vector_store %arg12[%c0_124, %c0_125, %c0_126], %225 {strides = array<i32>} : memref<4x16x128xf32, #tpu.memory_space<vmem>>, vector<1x16x128xf32>,
    %c0_127 = arith.constant 0 : index
    %c1_128 = arith.constant 1 : index
    %226 = memref.load %arg11[%c0_127, %c1_128] : memref<1x4xf32, #tpu.memory_space<smem>>
    %227 = vector.broadcast %226 : f32 to vector<16x128xf32>
    %228 = arith.addf %203, %227 : vector<16x128xf32>
    %cst_129 = arith.constant dense<0.000000e+00> : vector<16x128xf32>
    %229 = tpu.matmul %4, %228, %cst_129 {dimension_numbers = #tpu.dot_dimension_numbers<[1], [0], [0], [1], [0, 0, 1, 1], [], []>} : vector<16x16xf32>, vector<16x128xf32>, vector<16x128xf32> -> vector<16x128xf32>
    %230 = vector.broadcast %5 : vector<16x1xf32> to vector<16x128xf32>
    %231 = arith.addf %229, %230 : vector<16x128xf32>
    %cst_130 = arith.constant 0.000000e+00 : f32
    %232 = vector.broadcast %cst_130 : f32 to vector<16x128xf32>
    %233 = arith.maximumf %231, %232 : vector<16x128xf32>
    %cst_131 = arith.constant dense<0.000000e+00> : vector<16x128xf32>
    %234 = tpu.matmul %6, %233, %cst_131 {dimension_numbers = #tpu.dot_dimension_numbers<[1], [0], [0], [1], [0, 0, 1, 1], [], []>} : vector<16x16xf32>, vector<16x128xf32>, vector<16x128xf32> -> vector<16x128xf32>
    %235 = vector.broadcast %7 : vector<16x1xf32> to vector<16x128xf32>
    %236 = arith.addf %234, %235 : vector<16x128xf32>
    %c1_132 = arith.constant 1 : index
    %c0_133 = arith.constant 0 : index
    %c0_134 = arith.constant 0 : index
    %237 = vector.load %arg12[%c1_132, %c0_133, %c0_134] : memref<4x16x128xf32, #tpu.memory_space<vmem>>, vector<1x16x128xf32>
    %238 = vector.shape_cast %237 : vector<1x16x128xf32> to vector<16x128xf32>
    %239 = vector.shape_cast %236 : vector<16x128xf32> to vector<1x16x128xf32>
    tpu.vector_store %arg12[%c1_132, %c0_133, %c0_134], %239 {strides = array<i32>} : memref<4x16x128xf32, #tpu.memory_space<vmem>>, vector<1x16x128xf32>,
    %c0_135 = arith.constant 0 : index
    %c2_136 = arith.constant 2 : index
    %240 = memref.load %arg11[%c0_135, %c2_136] : memref<1x4xf32, #tpu.memory_space<smem>>
    %241 = vector.broadcast %240 : f32 to vector<16x128xf32>
    %242 = arith.addf %207, %241 : vector<16x128xf32>
    %cst_137 = arith.constant dense<0.000000e+00> : vector<16x128xf32>
    %243 = tpu.matmul %4, %242, %cst_137 {dimension_numbers = #tpu.dot_dimension_numbers<[1], [0], [0], [1], [0, 0, 1, 1], [], []>} : vector<16x16xf32>, vector<16x128xf32>, vector<16x128xf32> -> vector<16x128xf32>
    %244 = vector.broadcast %5 : vector<16x1xf32> to vector<16x128xf32>
    %245 = arith.addf %243, %244 : vector<16x128xf32>
    %cst_138 = arith.constant 0.000000e+00 : f32
    %246 = vector.broadcast %cst_138 : f32 to vector<16x128xf32>
    %247 = arith.maximumf %245, %246 : vector<16x128xf32>
    %cst_139 = arith.constant dense<0.000000e+00> : vector<16x128xf32>
    %248 = tpu.matmul %6, %247, %cst_139 {dimension_numbers = #tpu.dot_dimension_numbers<[1], [0], [0], [1], [0, 0, 1, 1], [], []>} : vector<16x16xf32>, vector<16x128xf32>, vector<16x128xf32> -> vector<16x128xf32>
    %249 = vector.broadcast %7 : vector<16x1xf32> to vector<16x128xf32>
    %250 = arith.addf %248, %249 : vector<16x128xf32>
    %c2_140 = arith.constant 2 : index
    %c0_141 = arith.constant 0 : index
    %c0_142 = arith.constant 0 : index
    %251 = vector.load %arg12[%c2_140, %c0_141, %c0_142] : memref<4x16x128xf32, #tpu.memory_space<vmem>>, vector<1x16x128xf32>
    %252 = vector.shape_cast %251 : vector<1x16x128xf32> to vector<16x128xf32>
    %253 = vector.shape_cast %250 : vector<16x128xf32> to vector<1x16x128xf32>
    tpu.vector_store %arg12[%c2_140, %c0_141, %c0_142], %253 {strides = array<i32>} : memref<4x16x128xf32, #tpu.memory_space<vmem>>, vector<1x16x128xf32>,
    %c0_143 = arith.constant 0 : index
    %c3_144 = arith.constant 3 : index
    %254 = memref.load %arg11[%c0_143, %c3_144] : memref<1x4xf32, #tpu.memory_space<smem>>
    %255 = vector.broadcast %254 : f32 to vector<16x128xf32>
    %256 = arith.addf %211, %255 : vector<16x128xf32>
    %cst_145 = arith.constant dense<0.000000e+00> : vector<16x128xf32>
    %257 = tpu.matmul %4, %256, %cst_145 {dimension_numbers = #tpu.dot_dimension_numbers<[1], [0], [0], [1], [0, 0, 1, 1], [], []>} : vector<16x16xf32>, vector<16x128xf32>, vector<16x128xf32> -> vector<16x128xf32>
    %258 = vector.broadcast %5 : vector<16x1xf32> to vector<16x128xf32>
    %259 = arith.addf %257, %258 : vector<16x128xf32>
    %cst_146 = arith.constant 0.000000e+00 : f32
    %260 = vector.broadcast %cst_146 : f32 to vector<16x128xf32>
    %261 = arith.maximumf %259, %260 : vector<16x128xf32>
    %cst_147 = arith.constant dense<0.000000e+00> : vector<16x128xf32>
    %262 = tpu.matmul %6, %261, %cst_147 {dimension_numbers = #tpu.dot_dimension_numbers<[1], [0], [0], [1], [0, 0, 1, 1], [], []>} : vector<16x16xf32>, vector<16x128xf32>, vector<16x128xf32> -> vector<16x128xf32>
    %263 = vector.broadcast %7 : vector<16x1xf32> to vector<16x128xf32>
    %264 = arith.addf %262, %263 : vector<16x128xf32>
    %c3_148 = arith.constant 3 : index
    %c0_149 = arith.constant 0 : index
    %c0_150 = arith.constant 0 : index
    %265 = vector.load %arg12[%c3_148, %c0_149, %c0_150] : memref<4x16x128xf32, #tpu.memory_space<vmem>>, vector<1x16x128xf32>
    %266 = vector.shape_cast %265 : vector<1x16x128xf32> to vector<16x128xf32>
    %267 = vector.shape_cast %264 : vector<16x128xf32> to vector<1x16x128xf32>
    tpu.vector_store %arg12[%c3_148, %c0_149, %c0_150], %267 {strides = array<i32>} : memref<4x16x128xf32, #tpu.memory_space<vmem>>, vector<1x16x128xf32>,
    return
  }
  func.func @transform_0(%arg0: i32) -> (i32, i32, i32) {
    %c0_i32 = arith.constant 0 : i32
    %c0_i32_0 = arith.constant 0 : i32
    %c0_i32_1 = arith.constant 0 : i32
    return %c0_i32, %c0_i32_0, %arg0 : i32, i32, i32
  }
  func.func @transform_1(%arg0: i32) -> (i32, i32) {
    %c0_i32 = arith.constant 0 : i32
    %c0_i32_0 = arith.constant 0 : i32
    %c0_i32_1 = arith.constant 0 : i32
    return %c0_i32, %c0_i32_0 : i32, i32
  }
  func.func @transform_2(%arg0: i32) -> (i32, i32) {
    %c0_i32 = arith.constant 0 : i32
    %c0_i32_0 = arith.constant 0 : i32
    %c0_i32_1 = arith.constant 0 : i32
    return %c0_i32, %c0_i32_0 : i32, i32
  }
  func.func @transform_3(%arg0: i32) -> (i32, i32) {
    %c0_i32 = arith.constant 0 : i32
    %c0_i32_0 = arith.constant 0 : i32
    %c0_i32_1 = arith.constant 0 : i32
    return %c0_i32, %c0_i32_0 : i32, i32
  }
  func.func @transform_4(%arg0: i32) -> (i32, i32) {
    %c0_i32 = arith.constant 0 : i32
    %c0_i32_0 = arith.constant 0 : i32
    %c0_i32_1 = arith.constant 0 : i32
    return %c0_i32, %c0_i32_0 : i32, i32
  }
  func.func @transform_5(%arg0: i32) -> (i32, i32) {
    %c0_i32 = arith.constant 0 : i32
    %c0_i32_0 = arith.constant 0 : i32
    %c0_i32_1 = arith.constant 0 : i32
    return %c0_i32, %c0_i32_0 : i32, i32
  }
  func.func @transform_6(%arg0: i32) -> (i32, i32) {
    %c0_i32 = arith.constant 0 : i32
    %c0_i32_0 = arith.constant 0 : i32
    %c0_i32_1 = arith.constant 0 : i32
    return %c0_i32, %c0_i32_0 : i32, i32
  }
  func.func @transform_7(%arg0: i32) -> (i32, i32) {
    %c0_i32 = arith.constant 0 : i32
    %c0_i32_0 = arith.constant 0 : i32
    %c0_i32_1 = arith.constant 0 : i32
    return %c0_i32, %c0_i32_0 : i32, i32
  }
  func.func @transform_8(%arg0: i32) -> (i32, i32) {
    %c0_i32 = arith.constant 0 : i32
    %c0_i32_0 = arith.constant 0 : i32
    %c0_i32_1 = arith.constant 0 : i32
    return %c0_i32, %c0_i32_0 : i32, i32
  }
  func.func @transform_9(%arg0: i32) -> (i32, i32) {
    %c0_i32 = arith.constant 0 : i32
    %c0_i32_0 = arith.constant 0 : i32
    %c0_i32_1 = arith.constant 0 : i32
    return %c0_i32, %c0_i32_0 : i32, i32
  }
  func.func @transform_10(%arg0: i32) -> (i32, i32) {
    %c0_i32 = arith.constant 0 : i32
    %c0_i32_0 = arith.constant 0 : i32
    %c0_i32_1 = arith.constant 0 : i32
    return %c0_i32, %c0_i32_0 : i32, i32
  }
  func.func @transform_11(%arg0: i32) -> (i32, i32, i32) {
    %c0_i32 = arith.constant 0 : i32
    %c0_i32_0 = arith.constant 0 : i32
    %c0_i32_1 = arith.constant 0 : i32
    return %c0_i32, %c0_i32_0, %arg0 : i32, i32, i32
  }
}

module attributes {stable_mosaic.version = 11 : i64} {
  func.func @_graph_branch_kernel(%arg0: i32, %arg1: memref<2x8x12x4xf32, #tpu.memory_space<vmem>>, %arg2: memref<12x12xf32, #tpu.memory_space<vmem>>, %arg3: memref<4x32xf32, #tpu.memory_space<vmem>>, %arg4: memref<1x32xf32, #tpu.memory_space<vmem>>, %arg5: memref<32x16xf32, #tpu.memory_space<vmem>>, %arg6: memref<1x16xf32, #tpu.memory_space<vmem>>, %arg7: memref<10x12xf32, #tpu.memory_space<vmem>>, %arg8: memref<10x1xf32, #tpu.memory_space<vmem>>, %arg9: memref<16x16xf32, #tpu.memory_space<vmem>>, %arg10: memref<1x16xf32, #tpu.memory_space<vmem>>, %arg11: memref<16x16xf32, #tpu.memory_space<vmem>>, %arg12: memref<1x16xf32, #tpu.memory_space<vmem>>, %arg13: memref<8x4xf32, #tpu.memory_space<smem>>, %arg14: memref<1x4xf32, #tpu.memory_space<smem>>, %arg15: memref<2x4x10x16xf32, #tpu.memory_space<vmem>>) attributes {dimension_semantics = [#tpu.dimension_semantics<arbitrary>], iteration_bounds = array<i64: 1>, scalar_prefetch = 0 : i64, scratch_operands = 0 : i64, tpu.core_type = #tpu.core_type<tc>, window_params = [{pipeline_mode = #tpu.pipeline_mode<synchronous>, transform_indices = @transform_0, window_bounds = array<i64: 2, 8, 12, 4>}, {pipeline_mode = #tpu.pipeline_mode<synchronous>, transform_indices = @transform_1, window_bounds = array<i64: 12, 12>}, {pipeline_mode = #tpu.pipeline_mode<synchronous>, transform_indices = @transform_2, window_bounds = array<i64: 4, 32>}, {pipeline_mode = #tpu.pipeline_mode<synchronous>, transform_indices = @transform_3, window_bounds = array<i64: 1, 32>}, {pipeline_mode = #tpu.pipeline_mode<synchronous>, transform_indices = @transform_4, window_bounds = array<i64: 32, 16>}, {pipeline_mode = #tpu.pipeline_mode<synchronous>, transform_indices = @transform_5, window_bounds = array<i64: 1, 16>}, {pipeline_mode = #tpu.pipeline_mode<synchronous>, transform_indices = @transform_6, window_bounds = array<i64: 10, 12>}, {pipeline_mode = #tpu.pipeline_mode<synchronous>, transform_indices = @transform_7, window_bounds = array<i64: 10, 1>}, {pipeline_mode = #tpu.pipeline_mode<synchronous>, transform_indices = @transform_8, window_bounds = array<i64: 16, 16>}, {pipeline_mode = #tpu.pipeline_mode<synchronous>, transform_indices = @transform_9, window_bounds = array<i64: 1, 16>}, {pipeline_mode = #tpu.pipeline_mode<synchronous>, transform_indices = @transform_10, window_bounds = array<i64: 16, 16>}, {pipeline_mode = #tpu.pipeline_mode<synchronous>, transform_indices = @transform_11, window_bounds = array<i64: 1, 16>}, {transform_indices = @transform_12, window_bounds = array<i64: 8, 4>}, {transform_indices = @transform_13, window_bounds = array<i64: 1, 4>}, {pipeline_mode = #tpu.pipeline_mode<synchronous>, transform_indices = @transform_14, window_bounds = array<i64: 2, 4, 10, 16>}]} {
    %c0 = arith.constant 0 : index
    %c0_0 = arith.constant 0 : index
    %0 = vector.load %arg2[%c0, %c0_0] : memref<12x12xf32, #tpu.memory_space<vmem>>, vector<12x12xf32>
    %c0_1 = arith.constant 0 : index
    %c0_2 = arith.constant 0 : index
    %1 = vector.load %arg3[%c0_1, %c0_2] : memref<4x32xf32, #tpu.memory_space<vmem>>, vector<4x32xf32>
    %c0_3 = arith.constant 0 : index
    %c0_4 = arith.constant 0 : index
    %2 = vector.load %arg4[%c0_3, %c0_4] : memref<1x32xf32, #tpu.memory_space<vmem>>, vector<1x32xf32>
    %c0_5 = arith.constant 0 : index
    %c0_6 = arith.constant 0 : index
    %3 = vector.load %arg5[%c0_5, %c0_6] : memref<32x16xf32, #tpu.memory_space<vmem>>, vector<32x16xf32>
    %c0_7 = arith.constant 0 : index
    %c0_8 = arith.constant 0 : index
    %4 = vector.load %arg6[%c0_7, %c0_8] : memref<1x16xf32, #tpu.memory_space<vmem>>, vector<1x16xf32>
    %c0_9 = arith.constant 0 : index
    %c0_10 = arith.constant 0 : index
    %5 = vector.load %arg7[%c0_9, %c0_10] : memref<10x12xf32, #tpu.memory_space<vmem>>, vector<10x12xf32>
    %c0_11 = arith.constant 0 : index
    %c0_12 = arith.constant 0 : index
    %6 = vector.load %arg8[%c0_11, %c0_12] : memref<10x1xf32, #tpu.memory_space<vmem>>, vector<10x1xf32>
    %c0_13 = arith.constant 0 : index
    %c0_14 = arith.constant 0 : index
    %7 = vector.load %arg9[%c0_13, %c0_14] : memref<16x16xf32, #tpu.memory_space<vmem>>, vector<16x16xf32>
    %c0_15 = arith.constant 0 : index
    %c0_16 = arith.constant 0 : index
    %8 = vector.load %arg10[%c0_15, %c0_16] : memref<1x16xf32, #tpu.memory_space<vmem>>, vector<1x16xf32>
    %c0_17 = arith.constant 0 : index
    %c0_18 = arith.constant 0 : index
    %9 = vector.load %arg11[%c0_17, %c0_18] : memref<16x16xf32, #tpu.memory_space<vmem>>, vector<16x16xf32>
    %c0_19 = arith.constant 0 : index
    %c0_20 = arith.constant 0 : index
    %10 = vector.load %arg12[%c0_19, %c0_20] : memref<1x16xf32, #tpu.memory_space<vmem>>, vector<1x16xf32>
    %c0_21 = arith.constant 0 : index
    %c0_22 = arith.constant 0 : index
    %c0_23 = arith.constant 0 : index
    %c0_24 = arith.constant 0 : index
    %11 = vector.load %arg1[%c0_21, %c0_22, %c0_23, %c0_24] : memref<2x8x12x4xf32, #tpu.memory_space<vmem>>, vector<1x1x12x4xf32>
    %12 = vector.shape_cast %11 : vector<1x1x12x4xf32> to vector<12x4xf32>
    %cst = arith.constant dense<0.000000e+00> : vector<12x32xf32>
    %13 = tpu.matmul %12, %1, %cst {dimension_numbers = #tpu.dot_dimension_numbers<[1], [0], [0], [1], [0, 0, 1, 1], [], []>} : vector<12x4xf32>, vector<4x32xf32>, vector<12x32xf32> -> vector<12x32xf32>
    %cst_25 = arith.constant dense<0.000000e+00> : vector<12x32xf32>
    %14 = tpu.matmul %0, %13, %cst_25 {dimension_numbers = #tpu.dot_dimension_numbers<[1], [0], [0], [1], [0, 0, 1, 1], [], []>} : vector<12x12xf32>, vector<12x32xf32>, vector<12x32xf32> -> vector<12x32xf32>
    %15 = vector.broadcast %2 : vector<1x32xf32> to vector<12x32xf32>
    %16 = arith.addf %14, %15 : vector<12x32xf32>
    %cst_26 = arith.constant 0.000000e+00 : f32
    %17 = vector.broadcast %cst_26 : f32 to vector<12x32xf32>
    %18 = arith.maximumf %16, %17 : vector<12x32xf32>
    %cst_27 = arith.constant dense<0.000000e+00> : vector<12x16xf32>
    %19 = tpu.matmul %18, %3, %cst_27 {dimension_numbers = #tpu.dot_dimension_numbers<[1], [0], [0], [1], [0, 0, 1, 1], [], []>} : vector<12x32xf32>, vector<32x16xf32>, vector<12x16xf32> -> vector<12x16xf32>
    %cst_28 = arith.constant dense<0.000000e+00> : vector<12x16xf32>
    %20 = tpu.matmul %0, %19, %cst_28 {dimension_numbers = #tpu.dot_dimension_numbers<[1], [0], [0], [1], [0, 0, 1, 1], [], []>} : vector<12x12xf32>, vector<12x16xf32>, vector<12x16xf32> -> vector<12x16xf32>
    %21 = vector.broadcast %4 : vector<1x16xf32> to vector<12x16xf32>
    %22 = arith.addf %20, %21 : vector<12x16xf32>
    %cst_29 = arith.constant 0.000000e+00 : f32
    %23 = vector.broadcast %cst_29 : f32 to vector<12x16xf32>
    %24 = arith.maximumf %22, %23 : vector<12x16xf32>
    %cst_30 = arith.constant dense<0.000000e+00> : vector<10x16xf32>
    %25 = tpu.matmul %5, %24, %cst_30 {dimension_numbers = #tpu.dot_dimension_numbers<[1], [0], [0], [1], [0, 0, 1, 1], [], []>} : vector<10x12xf32>, vector<12x16xf32>, vector<10x16xf32> -> vector<10x16xf32>
    %26 = vector.broadcast %6 : vector<10x1xf32> to vector<10x16xf32>
    %27 = arith.addf %25, %26 : vector<10x16xf32>
    %c0_31 = arith.constant 0 : index
    %c0_32 = arith.constant 0 : index
    %28 = memref.load %arg13[%c0_31, %c0_32] : memref<8x4xf32, #tpu.memory_space<smem>>
    %29 = vector.broadcast %28 : f32 to vector<10x16xf32>
    %30 = arith.mulf %29, %27 : vector<10x16xf32>
    %c0_33 = arith.constant 0 : index
    %c1 = arith.constant 1 : index
    %31 = memref.load %arg13[%c0_33, %c1] : memref<8x4xf32, #tpu.memory_space<smem>>
    %32 = vector.broadcast %31 : f32 to vector<10x16xf32>
    %33 = arith.mulf %32, %27 : vector<10x16xf32>
    %c0_34 = arith.constant 0 : index
    %c2 = arith.constant 2 : index
    %34 = memref.load %arg13[%c0_34, %c2] : memref<8x4xf32, #tpu.memory_space<smem>>
    %35 = vector.broadcast %34 : f32 to vector<10x16xf32>
    %36 = arith.mulf %35, %27 : vector<10x16xf32>
    %c0_35 = arith.constant 0 : index
    %c3 = arith.constant 3 : index
    %37 = memref.load %arg13[%c0_35, %c3] : memref<8x4xf32, #tpu.memory_space<smem>>
    %38 = vector.broadcast %37 : f32 to vector<10x16xf32>
    %39 = arith.mulf %38, %27 : vector<10x16xf32>
    %c0_36 = arith.constant 0 : index
    %c1_37 = arith.constant 1 : index
    %c0_38 = arith.constant 0 : index
    %c0_39 = arith.constant 0 : index
    %40 = vector.load %arg1[%c0_36, %c1_37, %c0_38, %c0_39] : memref<2x8x12x4xf32, #tpu.memory_space<vmem>>, vector<1x1x12x4xf32>
    %41 = vector.shape_cast %40 : vector<1x1x12x4xf32> to vector<12x4xf32>
    %cst_40 = arith.constant dense<0.000000e+00> : vector<12x32xf32>
    %42 = tpu.matmul %41, %1, %cst_40 {dimension_numbers = #tpu.dot_dimension_numbers<[1], [0], [0], [1], [0, 0, 1, 1], [], []>} : vector<12x4xf32>, vector<4x32xf32>, vector<12x32xf32> -> vector<12x32xf32>
    %cst_41 = arith.constant dense<0.000000e+00> : vector<12x32xf32>
    %43 = tpu.matmul %0, %42, %cst_41 {dimension_numbers = #tpu.dot_dimension_numbers<[1], [0], [0], [1], [0, 0, 1, 1], [], []>} : vector<12x12xf32>, vector<12x32xf32>, vector<12x32xf32> -> vector<12x32xf32>
    %44 = vector.broadcast %2 : vector<1x32xf32> to vector<12x32xf32>
    %45 = arith.addf %43, %44 : vector<12x32xf32>
    %cst_42 = arith.constant 0.000000e+00 : f32
    %46 = vector.broadcast %cst_42 : f32 to vector<12x32xf32>
    %47 = arith.maximumf %45, %46 : vector<12x32xf32>
    %cst_43 = arith.constant dense<0.000000e+00> : vector<12x16xf32>
    %48 = tpu.matmul %47, %3, %cst_43 {dimension_numbers = #tpu.dot_dimension_numbers<[1], [0], [0], [1], [0, 0, 1, 1], [], []>} : vector<12x32xf32>, vector<32x16xf32>, vector<12x16xf32> -> vector<12x16xf32>
    %cst_44 = arith.constant dense<0.000000e+00> : vector<12x16xf32>
    %49 = tpu.matmul %0, %48, %cst_44 {dimension_numbers = #tpu.dot_dimension_numbers<[1], [0], [0], [1], [0, 0, 1, 1], [], []>} : vector<12x12xf32>, vector<12x16xf32>, vector<12x16xf32> -> vector<12x16xf32>
    %50 = vector.broadcast %4 : vector<1x16xf32> to vector<12x16xf32>
    %51 = arith.addf %49, %50 : vector<12x16xf32>
    %cst_45 = arith.constant 0.000000e+00 : f32
    %52 = vector.broadcast %cst_45 : f32 to vector<12x16xf32>
    %53 = arith.maximumf %51, %52 : vector<12x16xf32>
    %cst_46 = arith.constant dense<0.000000e+00> : vector<10x16xf32>
    %54 = tpu.matmul %5, %53, %cst_46 {dimension_numbers = #tpu.dot_dimension_numbers<[1], [0], [0], [1], [0, 0, 1, 1], [], []>} : vector<10x12xf32>, vector<12x16xf32>, vector<10x16xf32> -> vector<10x16xf32>
    %55 = vector.broadcast %6 : vector<10x1xf32> to vector<10x16xf32>
    %56 = arith.addf %54, %55 : vector<10x16xf32>
    %c1_47 = arith.constant 1 : index
    %c0_48 = arith.constant 0 : index
    %57 = memref.load %arg13[%c1_47, %c0_48] : memref<8x4xf32, #tpu.memory_space<smem>>
    %58 = vector.broadcast %57 : f32 to vector<10x16xf32>
    %59 = arith.mulf %58, %56 : vector<10x16xf32>
    %60 = arith.addf %30, %59 : vector<10x16xf32>
    %c1_49 = arith.constant 1 : index
    %c1_50 = arith.constant 1 : index
    %61 = memref.load %arg13[%c1_49, %c1_50] : memref<8x4xf32, #tpu.memory_space<smem>>
    %62 = vector.broadcast %61 : f32 to vector<10x16xf32>
    %63 = arith.mulf %62, %56 : vector<10x16xf32>
    %64 = arith.addf %33, %63 : vector<10x16xf32>
    %c1_51 = arith.constant 1 : index
    %c2_52 = arith.constant 2 : index
    %65 = memref.load %arg13[%c1_51, %c2_52] : memref<8x4xf32, #tpu.memory_space<smem>>
    %66 = vector.broadcast %65 : f32 to vector<10x16xf32>
    %67 = arith.mulf %66, %56 : vector<10x16xf32>
    %68 = arith.addf %36, %67 : vector<10x16xf32>
    %c1_53 = arith.constant 1 : index
    %c3_54 = arith.constant 3 : index
    %69 = memref.load %arg13[%c1_53, %c3_54] : memref<8x4xf32, #tpu.memory_space<smem>>
    %70 = vector.broadcast %69 : f32 to vector<10x16xf32>
    %71 = arith.mulf %70, %56 : vector<10x16xf32>
    %72 = arith.addf %39, %71 : vector<10x16xf32>
    %c0_55 = arith.constant 0 : index
    %c2_56 = arith.constant 2 : index
    %c0_57 = arith.constant 0 : index
    %c0_58 = arith.constant 0 : index
    %73 = vector.load %arg1[%c0_55, %c2_56, %c0_57, %c0_58] : memref<2x8x12x4xf32, #tpu.memory_space<vmem>>, vector<1x1x12x4xf32>
    %74 = vector.shape_cast %73 : vector<1x1x12x4xf32> to vector<12x4xf32>
    %cst_59 = arith.constant dense<0.000000e+00> : vector<12x32xf32>
    %75 = tpu.matmul %74, %1, %cst_59 {dimension_numbers = #tpu.dot_dimension_numbers<[1], [0], [0], [1], [0, 0, 1, 1], [], []>} : vector<12x4xf32>, vector<4x32xf32>, vector<12x32xf32> -> vector<12x32xf32>
    %cst_60 = arith.constant dense<0.000000e+00> : vector<12x32xf32>
    %76 = tpu.matmul %0, %75, %cst_60 {dimension_numbers = #tpu.dot_dimension_numbers<[1], [0], [0], [1], [0, 0, 1, 1], [], []>} : vector<12x12xf32>, vector<12x32xf32>, vector<12x32xf32> -> vector<12x32xf32>
    %77 = vector.broadcast %2 : vector<1x32xf32> to vector<12x32xf32>
    %78 = arith.addf %76, %77 : vector<12x32xf32>
    %cst_61 = arith.constant 0.000000e+00 : f32
    %79 = vector.broadcast %cst_61 : f32 to vector<12x32xf32>
    %80 = arith.maximumf %78, %79 : vector<12x32xf32>
    %cst_62 = arith.constant dense<0.000000e+00> : vector<12x16xf32>
    %81 = tpu.matmul %80, %3, %cst_62 {dimension_numbers = #tpu.dot_dimension_numbers<[1], [0], [0], [1], [0, 0, 1, 1], [], []>} : vector<12x32xf32>, vector<32x16xf32>, vector<12x16xf32> -> vector<12x16xf32>
    %cst_63 = arith.constant dense<0.000000e+00> : vector<12x16xf32>
    %82 = tpu.matmul %0, %81, %cst_63 {dimension_numbers = #tpu.dot_dimension_numbers<[1], [0], [0], [1], [0, 0, 1, 1], [], []>} : vector<12x12xf32>, vector<12x16xf32>, vector<12x16xf32> -> vector<12x16xf32>
    %83 = vector.broadcast %4 : vector<1x16xf32> to vector<12x16xf32>
    %84 = arith.addf %82, %83 : vector<12x16xf32>
    %cst_64 = arith.constant 0.000000e+00 : f32
    %85 = vector.broadcast %cst_64 : f32 to vector<12x16xf32>
    %86 = arith.maximumf %84, %85 : vector<12x16xf32>
    %cst_65 = arith.constant dense<0.000000e+00> : vector<10x16xf32>
    %87 = tpu.matmul %5, %86, %cst_65 {dimension_numbers = #tpu.dot_dimension_numbers<[1], [0], [0], [1], [0, 0, 1, 1], [], []>} : vector<10x12xf32>, vector<12x16xf32>, vector<10x16xf32> -> vector<10x16xf32>
    %88 = vector.broadcast %6 : vector<10x1xf32> to vector<10x16xf32>
    %89 = arith.addf %87, %88 : vector<10x16xf32>
    %c2_66 = arith.constant 2 : index
    %c0_67 = arith.constant 0 : index
    %90 = memref.load %arg13[%c2_66, %c0_67] : memref<8x4xf32, #tpu.memory_space<smem>>
    %91 = vector.broadcast %90 : f32 to vector<10x16xf32>
    %92 = arith.mulf %91, %89 : vector<10x16xf32>
    %93 = arith.addf %60, %92 : vector<10x16xf32>
    %c2_68 = arith.constant 2 : index
    %c1_69 = arith.constant 1 : index
    %94 = memref.load %arg13[%c2_68, %c1_69] : memref<8x4xf32, #tpu.memory_space<smem>>
    %95 = vector.broadcast %94 : f32 to vector<10x16xf32>
    %96 = arith.mulf %95, %89 : vector<10x16xf32>
    %97 = arith.addf %64, %96 : vector<10x16xf32>
    %c2_70 = arith.constant 2 : index
    %c2_71 = arith.constant 2 : index
    %98 = memref.load %arg13[%c2_70, %c2_71] : memref<8x4xf32, #tpu.memory_space<smem>>
    %99 = vector.broadcast %98 : f32 to vector<10x16xf32>
    %100 = arith.mulf %99, %89 : vector<10x16xf32>
    %101 = arith.addf %68, %100 : vector<10x16xf32>
    %c2_72 = arith.constant 2 : index
    %c3_73 = arith.constant 3 : index
    %102 = memref.load %arg13[%c2_72, %c3_73] : memref<8x4xf32, #tpu.memory_space<smem>>
    %103 = vector.broadcast %102 : f32 to vector<10x16xf32>
    %104 = arith.mulf %103, %89 : vector<10x16xf32>
    %105 = arith.addf %72, %104 : vector<10x16xf32>
    %c0_74 = arith.constant 0 : index
    %c3_75 = arith.constant 3 : index
    %c0_76 = arith.constant 0 : index
    %c0_77 = arith.constant 0 : index
    %106 = vector.load %arg1[%c0_74, %c3_75, %c0_76, %c0_77] : memref<2x8x12x4xf32, #tpu.memory_space<vmem>>, vector<1x1x12x4xf32>
    %107 = vector.shape_cast %106 : vector<1x1x12x4xf32> to vector<12x4xf32>
    %cst_78 = arith.constant dense<0.000000e+00> : vector<12x32xf32>
    %108 = tpu.matmul %107, %1, %cst_78 {dimension_numbers = #tpu.dot_dimension_numbers<[1], [0], [0], [1], [0, 0, 1, 1], [], []>} : vector<12x4xf32>, vector<4x32xf32>, vector<12x32xf32> -> vector<12x32xf32>
    %cst_79 = arith.constant dense<0.000000e+00> : vector<12x32xf32>
    %109 = tpu.matmul %0, %108, %cst_79 {dimension_numbers = #tpu.dot_dimension_numbers<[1], [0], [0], [1], [0, 0, 1, 1], [], []>} : vector<12x12xf32>, vector<12x32xf32>, vector<12x32xf32> -> vector<12x32xf32>
    %110 = vector.broadcast %2 : vector<1x32xf32> to vector<12x32xf32>
    %111 = arith.addf %109, %110 : vector<12x32xf32>
    %cst_80 = arith.constant 0.000000e+00 : f32
    %112 = vector.broadcast %cst_80 : f32 to vector<12x32xf32>
    %113 = arith.maximumf %111, %112 : vector<12x32xf32>
    %cst_81 = arith.constant dense<0.000000e+00> : vector<12x16xf32>
    %114 = tpu.matmul %113, %3, %cst_81 {dimension_numbers = #tpu.dot_dimension_numbers<[1], [0], [0], [1], [0, 0, 1, 1], [], []>} : vector<12x32xf32>, vector<32x16xf32>, vector<12x16xf32> -> vector<12x16xf32>
    %cst_82 = arith.constant dense<0.000000e+00> : vector<12x16xf32>
    %115 = tpu.matmul %0, %114, %cst_82 {dimension_numbers = #tpu.dot_dimension_numbers<[1], [0], [0], [1], [0, 0, 1, 1], [], []>} : vector<12x12xf32>, vector<12x16xf32>, vector<12x16xf32> -> vector<12x16xf32>
    %116 = vector.broadcast %4 : vector<1x16xf32> to vector<12x16xf32>
    %117 = arith.addf %115, %116 : vector<12x16xf32>
    %cst_83 = arith.constant 0.000000e+00 : f32
    %118 = vector.broadcast %cst_83 : f32 to vector<12x16xf32>
    %119 = arith.maximumf %117, %118 : vector<12x16xf32>
    %cst_84 = arith.constant dense<0.000000e+00> : vector<10x16xf32>
    %120 = tpu.matmul %5, %119, %cst_84 {dimension_numbers = #tpu.dot_dimension_numbers<[1], [0], [0], [1], [0, 0, 1, 1], [], []>} : vector<10x12xf32>, vector<12x16xf32>, vector<10x16xf32> -> vector<10x16xf32>
    %121 = vector.broadcast %6 : vector<10x1xf32> to vector<10x16xf32>
    %122 = arith.addf %120, %121 : vector<10x16xf32>
    %c3_85 = arith.constant 3 : index
    %c0_86 = arith.constant 0 : index
    %123 = memref.load %arg13[%c3_85, %c0_86] : memref<8x4xf32, #tpu.memory_space<smem>>
    %124 = vector.broadcast %123 : f32 to vector<10x16xf32>
    %125 = arith.mulf %124, %122 : vector<10x16xf32>
    %126 = arith.addf %93, %125 : vector<10x16xf32>
    %c3_87 = arith.constant 3 : index
    %c1_88 = arith.constant 1 : index
    %127 = memref.load %arg13[%c3_87, %c1_88] : memref<8x4xf32, #tpu.memory_space<smem>>
    %128 = vector.broadcast %127 : f32 to vector<10x16xf32>
    %129 = arith.mulf %128, %122 : vector<10x16xf32>
    %130 = arith.addf %97, %129 : vector<10x16xf32>
    %c3_89 = arith.constant 3 : index
    %c2_90 = arith.constant 2 : index
    %131 = memref.load %arg13[%c3_89, %c2_90] : memref<8x4xf32, #tpu.memory_space<smem>>
    %132 = vector.broadcast %131 : f32 to vector<10x16xf32>
    %133 = arith.mulf %132, %122 : vector<10x16xf32>
    %134 = arith.addf %101, %133 : vector<10x16xf32>
    %c3_91 = arith.constant 3 : index
    %c3_92 = arith.constant 3 : index
    %135 = memref.load %arg13[%c3_91, %c3_92] : memref<8x4xf32, #tpu.memory_space<smem>>
    %136 = vector.broadcast %135 : f32 to vector<10x16xf32>
    %137 = arith.mulf %136, %122 : vector<10x16xf32>
    %138 = arith.addf %105, %137 : vector<10x16xf32>
    %c0_93 = arith.constant 0 : index
    %c4 = arith.constant 4 : index
    %c0_94 = arith.constant 0 : index
    %c0_95 = arith.constant 0 : index
    %139 = vector.load %arg1[%c0_93, %c4, %c0_94, %c0_95] : memref<2x8x12x4xf32, #tpu.memory_space<vmem>>, vector<1x1x12x4xf32>
    %140 = vector.shape_cast %139 : vector<1x1x12x4xf32> to vector<12x4xf32>
    %cst_96 = arith.constant dense<0.000000e+00> : vector<12x32xf32>
    %141 = tpu.matmul %140, %1, %cst_96 {dimension_numbers = #tpu.dot_dimension_numbers<[1], [0], [0], [1], [0, 0, 1, 1], [], []>} : vector<12x4xf32>, vector<4x32xf32>, vector<12x32xf32> -> vector<12x32xf32>
    %cst_97 = arith.constant dense<0.000000e+00> : vector<12x32xf32>
    %142 = tpu.matmul %0, %141, %cst_97 {dimension_numbers = #tpu.dot_dimension_numbers<[1], [0], [0], [1], [0, 0, 1, 1], [], []>} : vector<12x12xf32>, vector<12x32xf32>, vector<12x32xf32> -> vector<12x32xf32>
    %143 = vector.broadcast %2 : vector<1x32xf32> to vector<12x32xf32>
    %144 = arith.addf %142, %143 : vector<12x32xf32>
    %cst_98 = arith.constant 0.000000e+00 : f32
    %145 = vector.broadcast %cst_98 : f32 to vector<12x32xf32>
    %146 = arith.maximumf %144, %145 : vector<12x32xf32>
    %cst_99 = arith.constant dense<0.000000e+00> : vector<12x16xf32>
    %147 = tpu.matmul %146, %3, %cst_99 {dimension_numbers = #tpu.dot_dimension_numbers<[1], [0], [0], [1], [0, 0, 1, 1], [], []>} : vector<12x32xf32>, vector<32x16xf32>, vector<12x16xf32> -> vector<12x16xf32>
    %cst_100 = arith.constant dense<0.000000e+00> : vector<12x16xf32>
    %148 = tpu.matmul %0, %147, %cst_100 {dimension_numbers = #tpu.dot_dimension_numbers<[1], [0], [0], [1], [0, 0, 1, 1], [], []>} : vector<12x12xf32>, vector<12x16xf32>, vector<12x16xf32> -> vector<12x16xf32>
    %149 = vector.broadcast %4 : vector<1x16xf32> to vector<12x16xf32>
    %150 = arith.addf %148, %149 : vector<12x16xf32>
    %cst_101 = arith.constant 0.000000e+00 : f32
    %151 = vector.broadcast %cst_101 : f32 to vector<12x16xf32>
    %152 = arith.maximumf %150, %151 : vector<12x16xf32>
    %cst_102 = arith.constant dense<0.000000e+00> : vector<10x16xf32>
    %153 = tpu.matmul %5, %152, %cst_102 {dimension_numbers = #tpu.dot_dimension_numbers<[1], [0], [0], [1], [0, 0, 1, 1], [], []>} : vector<10x12xf32>, vector<12x16xf32>, vector<10x16xf32> -> vector<10x16xf32>
    %154 = vector.broadcast %6 : vector<10x1xf32> to vector<10x16xf32>
    %155 = arith.addf %153, %154 : vector<10x16xf32>
    %c4_103 = arith.constant 4 : index
    %c0_104 = arith.constant 0 : index
    %156 = memref.load %arg13[%c4_103, %c0_104] : memref<8x4xf32, #tpu.memory_space<smem>>
    %157 = vector.broadcast %156 : f32 to vector<10x16xf32>
    %158 = arith.mulf %157, %155 : vector<10x16xf32>
    %159 = arith.addf %126, %158 : vector<10x16xf32>
    %c4_105 = arith.constant 4 : index
    %c1_106 = arith.constant 1 : index
    %160 = memref.load %arg13[%c4_105, %c1_106] : memref<8x4xf32, #tpu.memory_space<smem>>
    %161 = vector.broadcast %160 : f32 to vector<10x16xf32>
    %162 = arith.mulf %161, %155 : vector<10x16xf32>
    %163 = arith.addf %130, %162 : vector<10x16xf32>
    %c4_107 = arith.constant 4 : index
    %c2_108 = arith.constant 2 : index
    %164 = memref.load %arg13[%c4_107, %c2_108] : memref<8x4xf32, #tpu.memory_space<smem>>
    %165 = vector.broadcast %164 : f32 to vector<10x16xf32>
    %166 = arith.mulf %165, %155 : vector<10x16xf32>
    %167 = arith.addf %134, %166 : vector<10x16xf32>
    %c4_109 = arith.constant 4 : index
    %c3_110 = arith.constant 3 : index
    %168 = memref.load %arg13[%c4_109, %c3_110] : memref<8x4xf32, #tpu.memory_space<smem>>
    %169 = vector.broadcast %168 : f32 to vector<10x16xf32>
    %170 = arith.mulf %169, %155 : vector<10x16xf32>
    %171 = arith.addf %138, %170 : vector<10x16xf32>
    %c0_111 = arith.constant 0 : index
    %c5 = arith.constant 5 : index
    %c0_112 = arith.constant 0 : index
    %c0_113 = arith.constant 0 : index
    %172 = vector.load %arg1[%c0_111, %c5, %c0_112, %c0_113] : memref<2x8x12x4xf32, #tpu.memory_space<vmem>>, vector<1x1x12x4xf32>
    %173 = vector.shape_cast %172 : vector<1x1x12x4xf32> to vector<12x4xf32>
    %cst_114 = arith.constant dense<0.000000e+00> : vector<12x32xf32>
    %174 = tpu.matmul %173, %1, %cst_114 {dimension_numbers = #tpu.dot_dimension_numbers<[1], [0], [0], [1], [0, 0, 1, 1], [], []>} : vector<12x4xf32>, vector<4x32xf32>, vector<12x32xf32> -> vector<12x32xf32>
    %cst_115 = arith.constant dense<0.000000e+00> : vector<12x32xf32>
    %175 = tpu.matmul %0, %174, %cst_115 {dimension_numbers = #tpu.dot_dimension_numbers<[1], [0], [0], [1], [0, 0, 1, 1], [], []>} : vector<12x12xf32>, vector<12x32xf32>, vector<12x32xf32> -> vector<12x32xf32>
    %176 = vector.broadcast %2 : vector<1x32xf32> to vector<12x32xf32>
    %177 = arith.addf %175, %176 : vector<12x32xf32>
    %cst_116 = arith.constant 0.000000e+00 : f32
    %178 = vector.broadcast %cst_116 : f32 to vector<12x32xf32>
    %179 = arith.maximumf %177, %178 : vector<12x32xf32>
    %cst_117 = arith.constant dense<0.000000e+00> : vector<12x16xf32>
    %180 = tpu.matmul %179, %3, %cst_117 {dimension_numbers = #tpu.dot_dimension_numbers<[1], [0], [0], [1], [0, 0, 1, 1], [], []>} : vector<12x32xf32>, vector<32x16xf32>, vector<12x16xf32> -> vector<12x16xf32>
    %cst_118 = arith.constant dense<0.000000e+00> : vector<12x16xf32>
    %181 = tpu.matmul %0, %180, %cst_118 {dimension_numbers = #tpu.dot_dimension_numbers<[1], [0], [0], [1], [0, 0, 1, 1], [], []>} : vector<12x12xf32>, vector<12x16xf32>, vector<12x16xf32> -> vector<12x16xf32>
    %182 = vector.broadcast %4 : vector<1x16xf32> to vector<12x16xf32>
    %183 = arith.addf %181, %182 : vector<12x16xf32>
    %cst_119 = arith.constant 0.000000e+00 : f32
    %184 = vector.broadcast %cst_119 : f32 to vector<12x16xf32>
    %185 = arith.maximumf %183, %184 : vector<12x16xf32>
    %cst_120 = arith.constant dense<0.000000e+00> : vector<10x16xf32>
    %186 = tpu.matmul %5, %185, %cst_120 {dimension_numbers = #tpu.dot_dimension_numbers<[1], [0], [0], [1], [0, 0, 1, 1], [], []>} : vector<10x12xf32>, vector<12x16xf32>, vector<10x16xf32> -> vector<10x16xf32>
    %187 = vector.broadcast %6 : vector<10x1xf32> to vector<10x16xf32>
    %188 = arith.addf %186, %187 : vector<10x16xf32>
    %c5_121 = arith.constant 5 : index
    %c0_122 = arith.constant 0 : index
    %189 = memref.load %arg13[%c5_121, %c0_122] : memref<8x4xf32, #tpu.memory_space<smem>>
    %190 = vector.broadcast %189 : f32 to vector<10x16xf32>
    %191 = arith.mulf %190, %188 : vector<10x16xf32>
    %192 = arith.addf %159, %191 : vector<10x16xf32>
    %c5_123 = arith.constant 5 : index
    %c1_124 = arith.constant 1 : index
    %193 = memref.load %arg13[%c5_123, %c1_124] : memref<8x4xf32, #tpu.memory_space<smem>>
    %194 = vector.broadcast %193 : f32 to vector<10x16xf32>
    %195 = arith.mulf %194, %188 : vector<10x16xf32>
    %196 = arith.addf %163, %195 : vector<10x16xf32>
    %c5_125 = arith.constant 5 : index
    %c2_126 = arith.constant 2 : index
    %197 = memref.load %arg13[%c5_125, %c2_126] : memref<8x4xf32, #tpu.memory_space<smem>>
    %198 = vector.broadcast %197 : f32 to vector<10x16xf32>
    %199 = arith.mulf %198, %188 : vector<10x16xf32>
    %200 = arith.addf %167, %199 : vector<10x16xf32>
    %c5_127 = arith.constant 5 : index
    %c3_128 = arith.constant 3 : index
    %201 = memref.load %arg13[%c5_127, %c3_128] : memref<8x4xf32, #tpu.memory_space<smem>>
    %202 = vector.broadcast %201 : f32 to vector<10x16xf32>
    %203 = arith.mulf %202, %188 : vector<10x16xf32>
    %204 = arith.addf %171, %203 : vector<10x16xf32>
    %c0_129 = arith.constant 0 : index
    %c6 = arith.constant 6 : index
    %c0_130 = arith.constant 0 : index
    %c0_131 = arith.constant 0 : index
    %205 = vector.load %arg1[%c0_129, %c6, %c0_130, %c0_131] : memref<2x8x12x4xf32, #tpu.memory_space<vmem>>, vector<1x1x12x4xf32>
    %206 = vector.shape_cast %205 : vector<1x1x12x4xf32> to vector<12x4xf32>
    %cst_132 = arith.constant dense<0.000000e+00> : vector<12x32xf32>
    %207 = tpu.matmul %206, %1, %cst_132 {dimension_numbers = #tpu.dot_dimension_numbers<[1], [0], [0], [1], [0, 0, 1, 1], [], []>} : vector<12x4xf32>, vector<4x32xf32>, vector<12x32xf32> -> vector<12x32xf32>
    %cst_133 = arith.constant dense<0.000000e+00> : vector<12x32xf32>
    %208 = tpu.matmul %0, %207, %cst_133 {dimension_numbers = #tpu.dot_dimension_numbers<[1], [0], [0], [1], [0, 0, 1, 1], [], []>} : vector<12x12xf32>, vector<12x32xf32>, vector<12x32xf32> -> vector<12x32xf32>
    %209 = vector.broadcast %2 : vector<1x32xf32> to vector<12x32xf32>
    %210 = arith.addf %208, %209 : vector<12x32xf32>
    %cst_134 = arith.constant 0.000000e+00 : f32
    %211 = vector.broadcast %cst_134 : f32 to vector<12x32xf32>
    %212 = arith.maximumf %210, %211 : vector<12x32xf32>
    %cst_135 = arith.constant dense<0.000000e+00> : vector<12x16xf32>
    %213 = tpu.matmul %212, %3, %cst_135 {dimension_numbers = #tpu.dot_dimension_numbers<[1], [0], [0], [1], [0, 0, 1, 1], [], []>} : vector<12x32xf32>, vector<32x16xf32>, vector<12x16xf32> -> vector<12x16xf32>
    %cst_136 = arith.constant dense<0.000000e+00> : vector<12x16xf32>
    %214 = tpu.matmul %0, %213, %cst_136 {dimension_numbers = #tpu.dot_dimension_numbers<[1], [0], [0], [1], [0, 0, 1, 1], [], []>} : vector<12x12xf32>, vector<12x16xf32>, vector<12x16xf32> -> vector<12x16xf32>
    %215 = vector.broadcast %4 : vector<1x16xf32> to vector<12x16xf32>
    %216 = arith.addf %214, %215 : vector<12x16xf32>
    %cst_137 = arith.constant 0.000000e+00 : f32
    %217 = vector.broadcast %cst_137 : f32 to vector<12x16xf32>
    %218 = arith.maximumf %216, %217 : vector<12x16xf32>
    %cst_138 = arith.constant dense<0.000000e+00> : vector<10x16xf32>
    %219 = tpu.matmul %5, %218, %cst_138 {dimension_numbers = #tpu.dot_dimension_numbers<[1], [0], [0], [1], [0, 0, 1, 1], [], []>} : vector<10x12xf32>, vector<12x16xf32>, vector<10x16xf32> -> vector<10x16xf32>
    %220 = vector.broadcast %6 : vector<10x1xf32> to vector<10x16xf32>
    %221 = arith.addf %219, %220 : vector<10x16xf32>
    %c6_139 = arith.constant 6 : index
    %c0_140 = arith.constant 0 : index
    %222 = memref.load %arg13[%c6_139, %c0_140] : memref<8x4xf32, #tpu.memory_space<smem>>
    %223 = vector.broadcast %222 : f32 to vector<10x16xf32>
    %224 = arith.mulf %223, %221 : vector<10x16xf32>
    %225 = arith.addf %192, %224 : vector<10x16xf32>
    %c6_141 = arith.constant 6 : index
    %c1_142 = arith.constant 1 : index
    %226 = memref.load %arg13[%c6_141, %c1_142] : memref<8x4xf32, #tpu.memory_space<smem>>
    %227 = vector.broadcast %226 : f32 to vector<10x16xf32>
    %228 = arith.mulf %227, %221 : vector<10x16xf32>
    %229 = arith.addf %196, %228 : vector<10x16xf32>
    %c6_143 = arith.constant 6 : index
    %c2_144 = arith.constant 2 : index
    %230 = memref.load %arg13[%c6_143, %c2_144] : memref<8x4xf32, #tpu.memory_space<smem>>
    %231 = vector.broadcast %230 : f32 to vector<10x16xf32>
    %232 = arith.mulf %231, %221 : vector<10x16xf32>
    %233 = arith.addf %200, %232 : vector<10x16xf32>
    %c6_145 = arith.constant 6 : index
    %c3_146 = arith.constant 3 : index
    %234 = memref.load %arg13[%c6_145, %c3_146] : memref<8x4xf32, #tpu.memory_space<smem>>
    %235 = vector.broadcast %234 : f32 to vector<10x16xf32>
    %236 = arith.mulf %235, %221 : vector<10x16xf32>
    %237 = arith.addf %204, %236 : vector<10x16xf32>
    %c0_147 = arith.constant 0 : index
    %c7 = arith.constant 7 : index
    %c0_148 = arith.constant 0 : index
    %c0_149 = arith.constant 0 : index
    %238 = vector.load %arg1[%c0_147, %c7, %c0_148, %c0_149] : memref<2x8x12x4xf32, #tpu.memory_space<vmem>>, vector<1x1x12x4xf32>
    %239 = vector.shape_cast %238 : vector<1x1x12x4xf32> to vector<12x4xf32>
    %cst_150 = arith.constant dense<0.000000e+00> : vector<12x32xf32>
    %240 = tpu.matmul %239, %1, %cst_150 {dimension_numbers = #tpu.dot_dimension_numbers<[1], [0], [0], [1], [0, 0, 1, 1], [], []>} : vector<12x4xf32>, vector<4x32xf32>, vector<12x32xf32> -> vector<12x32xf32>
    %cst_151 = arith.constant dense<0.000000e+00> : vector<12x32xf32>
    %241 = tpu.matmul %0, %240, %cst_151 {dimension_numbers = #tpu.dot_dimension_numbers<[1], [0], [0], [1], [0, 0, 1, 1], [], []>} : vector<12x12xf32>, vector<12x32xf32>, vector<12x32xf32> -> vector<12x32xf32>
    %242 = vector.broadcast %2 : vector<1x32xf32> to vector<12x32xf32>
    %243 = arith.addf %241, %242 : vector<12x32xf32>
    %cst_152 = arith.constant 0.000000e+00 : f32
    %244 = vector.broadcast %cst_152 : f32 to vector<12x32xf32>
    %245 = arith.maximumf %243, %244 : vector<12x32xf32>
    %cst_153 = arith.constant dense<0.000000e+00> : vector<12x16xf32>
    %246 = tpu.matmul %245, %3, %cst_153 {dimension_numbers = #tpu.dot_dimension_numbers<[1], [0], [0], [1], [0, 0, 1, 1], [], []>} : vector<12x32xf32>, vector<32x16xf32>, vector<12x16xf32> -> vector<12x16xf32>
    %cst_154 = arith.constant dense<0.000000e+00> : vector<12x16xf32>
    %247 = tpu.matmul %0, %246, %cst_154 {dimension_numbers = #tpu.dot_dimension_numbers<[1], [0], [0], [1], [0, 0, 1, 1], [], []>} : vector<12x12xf32>, vector<12x16xf32>, vector<12x16xf32> -> vector<12x16xf32>
    %248 = vector.broadcast %4 : vector<1x16xf32> to vector<12x16xf32>
    %249 = arith.addf %247, %248 : vector<12x16xf32>
    %cst_155 = arith.constant 0.000000e+00 : f32
    %250 = vector.broadcast %cst_155 : f32 to vector<12x16xf32>
    %251 = arith.maximumf %249, %250 : vector<12x16xf32>
    %cst_156 = arith.constant dense<0.000000e+00> : vector<10x16xf32>
    %252 = tpu.matmul %5, %251, %cst_156 {dimension_numbers = #tpu.dot_dimension_numbers<[1], [0], [0], [1], [0, 0, 1, 1], [], []>} : vector<10x12xf32>, vector<12x16xf32>, vector<10x16xf32> -> vector<10x16xf32>
    %253 = vector.broadcast %6 : vector<10x1xf32> to vector<10x16xf32>
    %254 = arith.addf %252, %253 : vector<10x16xf32>
    %c7_157 = arith.constant 7 : index
    %c0_158 = arith.constant 0 : index
    %255 = memref.load %arg13[%c7_157, %c0_158] : memref<8x4xf32, #tpu.memory_space<smem>>
    %256 = vector.broadcast %255 : f32 to vector<10x16xf32>
    %257 = arith.mulf %256, %254 : vector<10x16xf32>
    %258 = arith.addf %225, %257 : vector<10x16xf32>
    %c7_159 = arith.constant 7 : index
    %c1_160 = arith.constant 1 : index
    %259 = memref.load %arg13[%c7_159, %c1_160] : memref<8x4xf32, #tpu.memory_space<smem>>
    %260 = vector.broadcast %259 : f32 to vector<10x16xf32>
    %261 = arith.mulf %260, %254 : vector<10x16xf32>
    %262 = arith.addf %229, %261 : vector<10x16xf32>
    %c7_161 = arith.constant 7 : index
    %c2_162 = arith.constant 2 : index
    %263 = memref.load %arg13[%c7_161, %c2_162] : memref<8x4xf32, #tpu.memory_space<smem>>
    %264 = vector.broadcast %263 : f32 to vector<10x16xf32>
    %265 = arith.mulf %264, %254 : vector<10x16xf32>
    %266 = arith.addf %233, %265 : vector<10x16xf32>
    %c7_163 = arith.constant 7 : index
    %c3_164 = arith.constant 3 : index
    %267 = memref.load %arg13[%c7_163, %c3_164] : memref<8x4xf32, #tpu.memory_space<smem>>
    %268 = vector.broadcast %267 : f32 to vector<10x16xf32>
    %269 = arith.mulf %268, %254 : vector<10x16xf32>
    %270 = arith.addf %237, %269 : vector<10x16xf32>
    %c0_165 = arith.constant 0 : index
    %c0_166 = arith.constant 0 : index
    %271 = memref.load %arg14[%c0_165, %c0_166] : memref<1x4xf32, #tpu.memory_space<smem>>
    %272 = vector.broadcast %271 : f32 to vector<10x16xf32>
    %273 = arith.addf %258, %272 : vector<10x16xf32>
    %cst_167 = arith.constant dense<0.000000e+00> : vector<10x16xf32>
    %274 = tpu.matmul %273, %7, %cst_167 {dimension_numbers = #tpu.dot_dimension_numbers<[1], [0], [0], [1], [0, 0, 1, 1], [], []>} : vector<10x16xf32>, vector<16x16xf32>, vector<10x16xf32> -> vector<10x16xf32>
    %275 = vector.broadcast %8 : vector<1x16xf32> to vector<10x16xf32>
    %276 = arith.addf %274, %275 : vector<10x16xf32>
    %cst_168 = arith.constant 0.000000e+00 : f32
    %277 = vector.broadcast %cst_168 : f32 to vector<10x16xf32>
    %278 = arith.maximumf %276, %277 : vector<10x16xf32>
    %cst_169 = arith.constant dense<0.000000e+00> : vector<10x16xf32>
    %279 = tpu.matmul %278, %9, %cst_169 {dimension_numbers = #tpu.dot_dimension_numbers<[1], [0], [0], [1], [0, 0, 1, 1], [], []>} : vector<10x16xf32>, vector<16x16xf32>, vector<10x16xf32> -> vector<10x16xf32>
    %280 = vector.broadcast %10 : vector<1x16xf32> to vector<10x16xf32>
    %281 = arith.addf %279, %280 : vector<10x16xf32>
    %c0_170 = arith.constant 0 : index
    %c0_171 = arith.constant 0 : index
    %c0_172 = arith.constant 0 : index
    %c0_173 = arith.constant 0 : index
    %282 = vector.load %arg15[%c0_170, %c0_171, %c0_172, %c0_173] : memref<2x4x10x16xf32, #tpu.memory_space<vmem>>, vector<1x1x10x16xf32>
    %283 = vector.shape_cast %282 : vector<1x1x10x16xf32> to vector<10x16xf32>
    %284 = vector.shape_cast %281 : vector<10x16xf32> to vector<1x1x10x16xf32>
    tpu.vector_store %arg15[%c0_170, %c0_171, %c0_172, %c0_173], %284 {strides = array<i32>} : memref<2x4x10x16xf32, #tpu.memory_space<vmem>>, vector<1x1x10x16xf32>,
    %c0_174 = arith.constant 0 : index
    %c1_175 = arith.constant 1 : index
    %285 = memref.load %arg14[%c0_174, %c1_175] : memref<1x4xf32, #tpu.memory_space<smem>>
    %286 = vector.broadcast %285 : f32 to vector<10x16xf32>
    %287 = arith.addf %262, %286 : vector<10x16xf32>
    %cst_176 = arith.constant dense<0.000000e+00> : vector<10x16xf32>
    %288 = tpu.matmul %287, %7, %cst_176 {dimension_numbers = #tpu.dot_dimension_numbers<[1], [0], [0], [1], [0, 0, 1, 1], [], []>} : vector<10x16xf32>, vector<16x16xf32>, vector<10x16xf32> -> vector<10x16xf32>
    %289 = vector.broadcast %8 : vector<1x16xf32> to vector<10x16xf32>
    %290 = arith.addf %288, %289 : vector<10x16xf32>
    %cst_177 = arith.constant 0.000000e+00 : f32
    %291 = vector.broadcast %cst_177 : f32 to vector<10x16xf32>
    %292 = arith.maximumf %290, %291 : vector<10x16xf32>
    %cst_178 = arith.constant dense<0.000000e+00> : vector<10x16xf32>
    %293 = tpu.matmul %292, %9, %cst_178 {dimension_numbers = #tpu.dot_dimension_numbers<[1], [0], [0], [1], [0, 0, 1, 1], [], []>} : vector<10x16xf32>, vector<16x16xf32>, vector<10x16xf32> -> vector<10x16xf32>
    %294 = vector.broadcast %10 : vector<1x16xf32> to vector<10x16xf32>
    %295 = arith.addf %293, %294 : vector<10x16xf32>
    %c0_179 = arith.constant 0 : index
    %c1_180 = arith.constant 1 : index
    %c0_181 = arith.constant 0 : index
    %c0_182 = arith.constant 0 : index
    %296 = vector.load %arg15[%c0_179, %c1_180, %c0_181, %c0_182] : memref<2x4x10x16xf32, #tpu.memory_space<vmem>>, vector<1x1x10x16xf32>
    %297 = vector.shape_cast %296 : vector<1x1x10x16xf32> to vector<10x16xf32>
    %298 = vector.shape_cast %295 : vector<10x16xf32> to vector<1x1x10x16xf32>
    tpu.vector_store %arg15[%c0_179, %c1_180, %c0_181, %c0_182], %298 {strides = array<i32>} : memref<2x4x10x16xf32, #tpu.memory_space<vmem>>, vector<1x1x10x16xf32>,
    %c0_183 = arith.constant 0 : index
    %c2_184 = arith.constant 2 : index
    %299 = memref.load %arg14[%c0_183, %c2_184] : memref<1x4xf32, #tpu.memory_space<smem>>
    %300 = vector.broadcast %299 : f32 to vector<10x16xf32>
    %301 = arith.addf %266, %300 : vector<10x16xf32>
    %cst_185 = arith.constant dense<0.000000e+00> : vector<10x16xf32>
    %302 = tpu.matmul %301, %7, %cst_185 {dimension_numbers = #tpu.dot_dimension_numbers<[1], [0], [0], [1], [0, 0, 1, 1], [], []>} : vector<10x16xf32>, vector<16x16xf32>, vector<10x16xf32> -> vector<10x16xf32>
    %303 = vector.broadcast %8 : vector<1x16xf32> to vector<10x16xf32>
    %304 = arith.addf %302, %303 : vector<10x16xf32>
    %cst_186 = arith.constant 0.000000e+00 : f32
    %305 = vector.broadcast %cst_186 : f32 to vector<10x16xf32>
    %306 = arith.maximumf %304, %305 : vector<10x16xf32>
    %cst_187 = arith.constant dense<0.000000e+00> : vector<10x16xf32>
    %307 = tpu.matmul %306, %9, %cst_187 {dimension_numbers = #tpu.dot_dimension_numbers<[1], [0], [0], [1], [0, 0, 1, 1], [], []>} : vector<10x16xf32>, vector<16x16xf32>, vector<10x16xf32> -> vector<10x16xf32>
    %308 = vector.broadcast %10 : vector<1x16xf32> to vector<10x16xf32>
    %309 = arith.addf %307, %308 : vector<10x16xf32>
    %c0_188 = arith.constant 0 : index
    %c2_189 = arith.constant 2 : index
    %c0_190 = arith.constant 0 : index
    %c0_191 = arith.constant 0 : index
    %310 = vector.load %arg15[%c0_188, %c2_189, %c0_190, %c0_191] : memref<2x4x10x16xf32, #tpu.memory_space<vmem>>, vector<1x1x10x16xf32>
    %311 = vector.shape_cast %310 : vector<1x1x10x16xf32> to vector<10x16xf32>
    %312 = vector.shape_cast %309 : vector<10x16xf32> to vector<1x1x10x16xf32>
    tpu.vector_store %arg15[%c0_188, %c2_189, %c0_190, %c0_191], %312 {strides = array<i32>} : memref<2x4x10x16xf32, #tpu.memory_space<vmem>>, vector<1x1x10x16xf32>,
    %c0_192 = arith.constant 0 : index
    %c3_193 = arith.constant 3 : index
    %313 = memref.load %arg14[%c0_192, %c3_193] : memref<1x4xf32, #tpu.memory_space<smem>>
    %314 = vector.broadcast %313 : f32 to vector<10x16xf32>
    %315 = arith.addf %270, %314 : vector<10x16xf32>
    %cst_194 = arith.constant dense<0.000000e+00> : vector<10x16xf32>
    %316 = tpu.matmul %315, %7, %cst_194 {dimension_numbers = #tpu.dot_dimension_numbers<[1], [0], [0], [1], [0, 0, 1, 1], [], []>} : vector<10x16xf32>, vector<16x16xf32>, vector<10x16xf32> -> vector<10x16xf32>
    %317 = vector.broadcast %8 : vector<1x16xf32> to vector<10x16xf32>
    %318 = arith.addf %316, %317 : vector<10x16xf32>
    %cst_195 = arith.constant 0.000000e+00 : f32
    %319 = vector.broadcast %cst_195 : f32 to vector<10x16xf32>
    %320 = arith.maximumf %318, %319 : vector<10x16xf32>
    %cst_196 = arith.constant dense<0.000000e+00> : vector<10x16xf32>
    %321 = tpu.matmul %320, %9, %cst_196 {dimension_numbers = #tpu.dot_dimension_numbers<[1], [0], [0], [1], [0, 0, 1, 1], [], []>} : vector<10x16xf32>, vector<16x16xf32>, vector<10x16xf32> -> vector<10x16xf32>
    %322 = vector.broadcast %10 : vector<1x16xf32> to vector<10x16xf32>
    %323 = arith.addf %321, %322 : vector<10x16xf32>
    %c0_197 = arith.constant 0 : index
    %c3_198 = arith.constant 3 : index
    %c0_199 = arith.constant 0 : index
    %c0_200 = arith.constant 0 : index
    %324 = vector.load %arg15[%c0_197, %c3_198, %c0_199, %c0_200] : memref<2x4x10x16xf32, #tpu.memory_space<vmem>>, vector<1x1x10x16xf32>
    %325 = vector.shape_cast %324 : vector<1x1x10x16xf32> to vector<10x16xf32>
    %326 = vector.shape_cast %323 : vector<10x16xf32> to vector<1x1x10x16xf32>
    tpu.vector_store %arg15[%c0_197, %c3_198, %c0_199, %c0_200], %326 {strides = array<i32>} : memref<2x4x10x16xf32, #tpu.memory_space<vmem>>, vector<1x1x10x16xf32>,
    %c1_201 = arith.constant 1 : index
    %c0_202 = arith.constant 0 : index
    %c0_203 = arith.constant 0 : index
    %c0_204 = arith.constant 0 : index
    %327 = vector.load %arg1[%c1_201, %c0_202, %c0_203, %c0_204] : memref<2x8x12x4xf32, #tpu.memory_space<vmem>>, vector<1x1x12x4xf32>
    %328 = vector.shape_cast %327 : vector<1x1x12x4xf32> to vector<12x4xf32>
    %cst_205 = arith.constant dense<0.000000e+00> : vector<12x32xf32>
    %329 = tpu.matmul %328, %1, %cst_205 {dimension_numbers = #tpu.dot_dimension_numbers<[1], [0], [0], [1], [0, 0, 1, 1], [], []>} : vector<12x4xf32>, vector<4x32xf32>, vector<12x32xf32> -> vector<12x32xf32>
    %cst_206 = arith.constant dense<0.000000e+00> : vector<12x32xf32>
    %330 = tpu.matmul %0, %329, %cst_206 {dimension_numbers = #tpu.dot_dimension_numbers<[1], [0], [0], [1], [0, 0, 1, 1], [], []>} : vector<12x12xf32>, vector<12x32xf32>, vector<12x32xf32> -> vector<12x32xf32>
    %331 = vector.broadcast %2 : vector<1x32xf32> to vector<12x32xf32>
    %332 = arith.addf %330, %331 : vector<12x32xf32>
    %cst_207 = arith.constant 0.000000e+00 : f32
    %333 = vector.broadcast %cst_207 : f32 to vector<12x32xf32>
    %334 = arith.maximumf %332, %333 : vector<12x32xf32>
    %cst_208 = arith.constant dense<0.000000e+00> : vector<12x16xf32>
    %335 = tpu.matmul %334, %3, %cst_208 {dimension_numbers = #tpu.dot_dimension_numbers<[1], [0], [0], [1], [0, 0, 1, 1], [], []>} : vector<12x32xf32>, vector<32x16xf32>, vector<12x16xf32> -> vector<12x16xf32>
    %cst_209 = arith.constant dense<0.000000e+00> : vector<12x16xf32>
    %336 = tpu.matmul %0, %335, %cst_209 {dimension_numbers = #tpu.dot_dimension_numbers<[1], [0], [0], [1], [0, 0, 1, 1], [], []>} : vector<12x12xf32>, vector<12x16xf32>, vector<12x16xf32> -> vector<12x16xf32>
    %337 = vector.broadcast %4 : vector<1x16xf32> to vector<12x16xf32>
    %338 = arith.addf %336, %337 : vector<12x16xf32>
    %cst_210 = arith.constant 0.000000e+00 : f32
    %339 = vector.broadcast %cst_210 : f32 to vector<12x16xf32>
    %340 = arith.maximumf %338, %339 : vector<12x16xf32>
    %cst_211 = arith.constant dense<0.000000e+00> : vector<10x16xf32>
    %341 = tpu.matmul %5, %340, %cst_211 {dimension_numbers = #tpu.dot_dimension_numbers<[1], [0], [0], [1], [0, 0, 1, 1], [], []>} : vector<10x12xf32>, vector<12x16xf32>, vector<10x16xf32> -> vector<10x16xf32>
    %342 = vector.broadcast %6 : vector<10x1xf32> to vector<10x16xf32>
    %343 = arith.addf %341, %342 : vector<10x16xf32>
    %c0_212 = arith.constant 0 : index
    %c0_213 = arith.constant 0 : index
    %344 = memref.load %arg13[%c0_212, %c0_213] : memref<8x4xf32, #tpu.memory_space<smem>>
    %345 = vector.broadcast %344 : f32 to vector<10x16xf32>
    %346 = arith.mulf %345, %343 : vector<10x16xf32>
    %c0_214 = arith.constant 0 : index
    %c1_215 = arith.constant 1 : index
    %347 = memref.load %arg13[%c0_214, %c1_215] : memref<8x4xf32, #tpu.memory_space<smem>>
    %348 = vector.broadcast %347 : f32 to vector<10x16xf32>
    %349 = arith.mulf %348, %343 : vector<10x16xf32>
    %c0_216 = arith.constant 0 : index
    %c2_217 = arith.constant 2 : index
    %350 = memref.load %arg13[%c0_216, %c2_217] : memref<8x4xf32, #tpu.memory_space<smem>>
    %351 = vector.broadcast %350 : f32 to vector<10x16xf32>
    %352 = arith.mulf %351, %343 : vector<10x16xf32>
    %c0_218 = arith.constant 0 : index
    %c3_219 = arith.constant 3 : index
    %353 = memref.load %arg13[%c0_218, %c3_219] : memref<8x4xf32, #tpu.memory_space<smem>>
    %354 = vector.broadcast %353 : f32 to vector<10x16xf32>
    %355 = arith.mulf %354, %343 : vector<10x16xf32>
    %c1_220 = arith.constant 1 : index
    %c1_221 = arith.constant 1 : index
    %c0_222 = arith.constant 0 : index
    %c0_223 = arith.constant 0 : index
    %356 = vector.load %arg1[%c1_220, %c1_221, %c0_222, %c0_223] : memref<2x8x12x4xf32, #tpu.memory_space<vmem>>, vector<1x1x12x4xf32>
    %357 = vector.shape_cast %356 : vector<1x1x12x4xf32> to vector<12x4xf32>
    %cst_224 = arith.constant dense<0.000000e+00> : vector<12x32xf32>
    %358 = tpu.matmul %357, %1, %cst_224 {dimension_numbers = #tpu.dot_dimension_numbers<[1], [0], [0], [1], [0, 0, 1, 1], [], []>} : vector<12x4xf32>, vector<4x32xf32>, vector<12x32xf32> -> vector<12x32xf32>
    %cst_225 = arith.constant dense<0.000000e+00> : vector<12x32xf32>
    %359 = tpu.matmul %0, %358, %cst_225 {dimension_numbers = #tpu.dot_dimension_numbers<[1], [0], [0], [1], [0, 0, 1, 1], [], []>} : vector<12x12xf32>, vector<12x32xf32>, vector<12x32xf32> -> vector<12x32xf32>
    %360 = vector.broadcast %2 : vector<1x32xf32> to vector<12x32xf32>
    %361 = arith.addf %359, %360 : vector<12x32xf32>
    %cst_226 = arith.constant 0.000000e+00 : f32
    %362 = vector.broadcast %cst_226 : f32 to vector<12x32xf32>
    %363 = arith.maximumf %361, %362 : vector<12x32xf32>
    %cst_227 = arith.constant dense<0.000000e+00> : vector<12x16xf32>
    %364 = tpu.matmul %363, %3, %cst_227 {dimension_numbers = #tpu.dot_dimension_numbers<[1], [0], [0], [1], [0, 0, 1, 1], [], []>} : vector<12x32xf32>, vector<32x16xf32>, vector<12x16xf32> -> vector<12x16xf32>
    %cst_228 = arith.constant dense<0.000000e+00> : vector<12x16xf32>
    %365 = tpu.matmul %0, %364, %cst_228 {dimension_numbers = #tpu.dot_dimension_numbers<[1], [0], [0], [1], [0, 0, 1, 1], [], []>} : vector<12x12xf32>, vector<12x16xf32>, vector<12x16xf32> -> vector<12x16xf32>
    %366 = vector.broadcast %4 : vector<1x16xf32> to vector<12x16xf32>
    %367 = arith.addf %365, %366 : vector<12x16xf32>
    %cst_229 = arith.constant 0.000000e+00 : f32
    %368 = vector.broadcast %cst_229 : f32 to vector<12x16xf32>
    %369 = arith.maximumf %367, %368 : vector<12x16xf32>
    %cst_230 = arith.constant dense<0.000000e+00> : vector<10x16xf32>
    %370 = tpu.matmul %5, %369, %cst_230 {dimension_numbers = #tpu.dot_dimension_numbers<[1], [0], [0], [1], [0, 0, 1, 1], [], []>} : vector<10x12xf32>, vector<12x16xf32>, vector<10x16xf32> -> vector<10x16xf32>
    %371 = vector.broadcast %6 : vector<10x1xf32> to vector<10x16xf32>
    %372 = arith.addf %370, %371 : vector<10x16xf32>
    %c1_231 = arith.constant 1 : index
    %c0_232 = arith.constant 0 : index
    %373 = memref.load %arg13[%c1_231, %c0_232] : memref<8x4xf32, #tpu.memory_space<smem>>
    %374 = vector.broadcast %373 : f32 to vector<10x16xf32>
    %375 = arith.mulf %374, %372 : vector<10x16xf32>
    %376 = arith.addf %346, %375 : vector<10x16xf32>
    %c1_233 = arith.constant 1 : index
    %c1_234 = arith.constant 1 : index
    %377 = memref.load %arg13[%c1_233, %c1_234] : memref<8x4xf32, #tpu.memory_space<smem>>
    %378 = vector.broadcast %377 : f32 to vector<10x16xf32>
    %379 = arith.mulf %378, %372 : vector<10x16xf32>
    %380 = arith.addf %349, %379 : vector<10x16xf32>
    %c1_235 = arith.constant 1 : index
    %c2_236 = arith.constant 2 : index
    %381 = memref.load %arg13[%c1_235, %c2_236] : memref<8x4xf32, #tpu.memory_space<smem>>
    %382 = vector.broadcast %381 : f32 to vector<10x16xf32>
    %383 = arith.mulf %382, %372 : vector<10x16xf32>
    %384 = arith.addf %352, %383 : vector<10x16xf32>
    %c1_237 = arith.constant 1 : index
    %c3_238 = arith.constant 3 : index
    %385 = memref.load %arg13[%c1_237, %c3_238] : memref<8x4xf32, #tpu.memory_space<smem>>
    %386 = vector.broadcast %385 : f32 to vector<10x16xf32>
    %387 = arith.mulf %386, %372 : vector<10x16xf32>
    %388 = arith.addf %355, %387 : vector<10x16xf32>
    %c1_239 = arith.constant 1 : index
    %c2_240 = arith.constant 2 : index
    %c0_241 = arith.constant 0 : index
    %c0_242 = arith.constant 0 : index
    %389 = vector.load %arg1[%c1_239, %c2_240, %c0_241, %c0_242] : memref<2x8x12x4xf32, #tpu.memory_space<vmem>>, vector<1x1x12x4xf32>
    %390 = vector.shape_cast %389 : vector<1x1x12x4xf32> to vector<12x4xf32>
    %cst_243 = arith.constant dense<0.000000e+00> : vector<12x32xf32>
    %391 = tpu.matmul %390, %1, %cst_243 {dimension_numbers = #tpu.dot_dimension_numbers<[1], [0], [0], [1], [0, 0, 1, 1], [], []>} : vector<12x4xf32>, vector<4x32xf32>, vector<12x32xf32> -> vector<12x32xf32>
    %cst_244 = arith.constant dense<0.000000e+00> : vector<12x32xf32>
    %392 = tpu.matmul %0, %391, %cst_244 {dimension_numbers = #tpu.dot_dimension_numbers<[1], [0], [0], [1], [0, 0, 1, 1], [], []>} : vector<12x12xf32>, vector<12x32xf32>, vector<12x32xf32> -> vector<12x32xf32>
    %393 = vector.broadcast %2 : vector<1x32xf32> to vector<12x32xf32>
    %394 = arith.addf %392, %393 : vector<12x32xf32>
    %cst_245 = arith.constant 0.000000e+00 : f32
    %395 = vector.broadcast %cst_245 : f32 to vector<12x32xf32>
    %396 = arith.maximumf %394, %395 : vector<12x32xf32>
    %cst_246 = arith.constant dense<0.000000e+00> : vector<12x16xf32>
    %397 = tpu.matmul %396, %3, %cst_246 {dimension_numbers = #tpu.dot_dimension_numbers<[1], [0], [0], [1], [0, 0, 1, 1], [], []>} : vector<12x32xf32>, vector<32x16xf32>, vector<12x16xf32> -> vector<12x16xf32>
    %cst_247 = arith.constant dense<0.000000e+00> : vector<12x16xf32>
    %398 = tpu.matmul %0, %397, %cst_247 {dimension_numbers = #tpu.dot_dimension_numbers<[1], [0], [0], [1], [0, 0, 1, 1], [], []>} : vector<12x12xf32>, vector<12x16xf32>, vector<12x16xf32> -> vector<12x16xf32>
    %399 = vector.broadcast %4 : vector<1x16xf32> to vector<12x16xf32>
    %400 = arith.addf %398, %399 : vector<12x16xf32>
    %cst_248 = arith.constant 0.000000e+00 : f32
    %401 = vector.broadcast %cst_248 : f32 to vector<12x16xf32>
    %402 = arith.maximumf %400, %401 : vector<12x16xf32>
    %cst_249 = arith.constant dense<0.000000e+00> : vector<10x16xf32>
    %403 = tpu.matmul %5, %402, %cst_249 {dimension_numbers = #tpu.dot_dimension_numbers<[1], [0], [0], [1], [0, 0, 1, 1], [], []>} : vector<10x12xf32>, vector<12x16xf32>, vector<10x16xf32> -> vector<10x16xf32>
    %404 = vector.broadcast %6 : vector<10x1xf32> to vector<10x16xf32>
    %405 = arith.addf %403, %404 : vector<10x16xf32>
    %c2_250 = arith.constant 2 : index
    %c0_251 = arith.constant 0 : index
    %406 = memref.load %arg13[%c2_250, %c0_251] : memref<8x4xf32, #tpu.memory_space<smem>>
    %407 = vector.broadcast %406 : f32 to vector<10x16xf32>
    %408 = arith.mulf %407, %405 : vector<10x16xf32>
    %409 = arith.addf %376, %408 : vector<10x16xf32>
    %c2_252 = arith.constant 2 : index
    %c1_253 = arith.constant 1 : index
    %410 = memref.load %arg13[%c2_252, %c1_253] : memref<8x4xf32, #tpu.memory_space<smem>>
    %411 = vector.broadcast %410 : f32 to vector<10x16xf32>
    %412 = arith.mulf %411, %405 : vector<10x16xf32>
    %413 = arith.addf %380, %412 : vector<10x16xf32>
    %c2_254 = arith.constant 2 : index
    %c2_255 = arith.constant 2 : index
    %414 = memref.load %arg13[%c2_254, %c2_255] : memref<8x4xf32, #tpu.memory_space<smem>>
    %415 = vector.broadcast %414 : f32 to vector<10x16xf32>
    %416 = arith.mulf %415, %405 : vector<10x16xf32>
    %417 = arith.addf %384, %416 : vector<10x16xf32>
    %c2_256 = arith.constant 2 : index
    %c3_257 = arith.constant 3 : index
    %418 = memref.load %arg13[%c2_256, %c3_257] : memref<8x4xf32, #tpu.memory_space<smem>>
    %419 = vector.broadcast %418 : f32 to vector<10x16xf32>
    %420 = arith.mulf %419, %405 : vector<10x16xf32>
    %421 = arith.addf %388, %420 : vector<10x16xf32>
    %c1_258 = arith.constant 1 : index
    %c3_259 = arith.constant 3 : index
    %c0_260 = arith.constant 0 : index
    %c0_261 = arith.constant 0 : index
    %422 = vector.load %arg1[%c1_258, %c3_259, %c0_260, %c0_261] : memref<2x8x12x4xf32, #tpu.memory_space<vmem>>, vector<1x1x12x4xf32>
    %423 = vector.shape_cast %422 : vector<1x1x12x4xf32> to vector<12x4xf32>
    %cst_262 = arith.constant dense<0.000000e+00> : vector<12x32xf32>
    %424 = tpu.matmul %423, %1, %cst_262 {dimension_numbers = #tpu.dot_dimension_numbers<[1], [0], [0], [1], [0, 0, 1, 1], [], []>} : vector<12x4xf32>, vector<4x32xf32>, vector<12x32xf32> -> vector<12x32xf32>
    %cst_263 = arith.constant dense<0.000000e+00> : vector<12x32xf32>
    %425 = tpu.matmul %0, %424, %cst_263 {dimension_numbers = #tpu.dot_dimension_numbers<[1], [0], [0], [1], [0, 0, 1, 1], [], []>} : vector<12x12xf32>, vector<12x32xf32>, vector<12x32xf32> -> vector<12x32xf32>
    %426 = vector.broadcast %2 : vector<1x32xf32> to vector<12x32xf32>
    %427 = arith.addf %425, %426 : vector<12x32xf32>
    %cst_264 = arith.constant 0.000000e+00 : f32
    %428 = vector.broadcast %cst_264 : f32 to vector<12x32xf32>
    %429 = arith.maximumf %427, %428 : vector<12x32xf32>
    %cst_265 = arith.constant dense<0.000000e+00> : vector<12x16xf32>
    %430 = tpu.matmul %429, %3, %cst_265 {dimension_numbers = #tpu.dot_dimension_numbers<[1], [0], [0], [1], [0, 0, 1, 1], [], []>} : vector<12x32xf32>, vector<32x16xf32>, vector<12x16xf32> -> vector<12x16xf32>
    %cst_266 = arith.constant dense<0.000000e+00> : vector<12x16xf32>
    %431 = tpu.matmul %0, %430, %cst_266 {dimension_numbers = #tpu.dot_dimension_numbers<[1], [0], [0], [1], [0, 0, 1, 1], [], []>} : vector<12x12xf32>, vector<12x16xf32>, vector<12x16xf32> -> vector<12x16xf32>
    %432 = vector.broadcast %4 : vector<1x16xf32> to vector<12x16xf32>
    %433 = arith.addf %431, %432 : vector<12x16xf32>
    %cst_267 = arith.constant 0.000000e+00 : f32
    %434 = vector.broadcast %cst_267 : f32 to vector<12x16xf32>
    %435 = arith.maximumf %433, %434 : vector<12x16xf32>
    %cst_268 = arith.constant dense<0.000000e+00> : vector<10x16xf32>
    %436 = tpu.matmul %5, %435, %cst_268 {dimension_numbers = #tpu.dot_dimension_numbers<[1], [0], [0], [1], [0, 0, 1, 1], [], []>} : vector<10x12xf32>, vector<12x16xf32>, vector<10x16xf32> -> vector<10x16xf32>
    %437 = vector.broadcast %6 : vector<10x1xf32> to vector<10x16xf32>
    %438 = arith.addf %436, %437 : vector<10x16xf32>
    %c3_269 = arith.constant 3 : index
    %c0_270 = arith.constant 0 : index
    %439 = memref.load %arg13[%c3_269, %c0_270] : memref<8x4xf32, #tpu.memory_space<smem>>
    %440 = vector.broadcast %439 : f32 to vector<10x16xf32>
    %441 = arith.mulf %440, %438 : vector<10x16xf32>
    %442 = arith.addf %409, %441 : vector<10x16xf32>
    %c3_271 = arith.constant 3 : index
    %c1_272 = arith.constant 1 : index
    %443 = memref.load %arg13[%c3_271, %c1_272] : memref<8x4xf32, #tpu.memory_space<smem>>
    %444 = vector.broadcast %443 : f32 to vector<10x16xf32>
    %445 = arith.mulf %444, %438 : vector<10x16xf32>
    %446 = arith.addf %413, %445 : vector<10x16xf32>
    %c3_273 = arith.constant 3 : index
    %c2_274 = arith.constant 2 : index
    %447 = memref.load %arg13[%c3_273, %c2_274] : memref<8x4xf32, #tpu.memory_space<smem>>
    %448 = vector.broadcast %447 : f32 to vector<10x16xf32>
    %449 = arith.mulf %448, %438 : vector<10x16xf32>
    %450 = arith.addf %417, %449 : vector<10x16xf32>
    %c3_275 = arith.constant 3 : index
    %c3_276 = arith.constant 3 : index
    %451 = memref.load %arg13[%c3_275, %c3_276] : memref<8x4xf32, #tpu.memory_space<smem>>
    %452 = vector.broadcast %451 : f32 to vector<10x16xf32>
    %453 = arith.mulf %452, %438 : vector<10x16xf32>
    %454 = arith.addf %421, %453 : vector<10x16xf32>
    %c1_277 = arith.constant 1 : index
    %c4_278 = arith.constant 4 : index
    %c0_279 = arith.constant 0 : index
    %c0_280 = arith.constant 0 : index
    %455 = vector.load %arg1[%c1_277, %c4_278, %c0_279, %c0_280] : memref<2x8x12x4xf32, #tpu.memory_space<vmem>>, vector<1x1x12x4xf32>
    %456 = vector.shape_cast %455 : vector<1x1x12x4xf32> to vector<12x4xf32>
    %cst_281 = arith.constant dense<0.000000e+00> : vector<12x32xf32>
    %457 = tpu.matmul %456, %1, %cst_281 {dimension_numbers = #tpu.dot_dimension_numbers<[1], [0], [0], [1], [0, 0, 1, 1], [], []>} : vector<12x4xf32>, vector<4x32xf32>, vector<12x32xf32> -> vector<12x32xf32>
    %cst_282 = arith.constant dense<0.000000e+00> : vector<12x32xf32>
    %458 = tpu.matmul %0, %457, %cst_282 {dimension_numbers = #tpu.dot_dimension_numbers<[1], [0], [0], [1], [0, 0, 1, 1], [], []>} : vector<12x12xf32>, vector<12x32xf32>, vector<12x32xf32> -> vector<12x32xf32>
    %459 = vector.broadcast %2 : vector<1x32xf32> to vector<12x32xf32>
    %460 = arith.addf %458, %459 : vector<12x32xf32>
    %cst_283 = arith.constant 0.000000e+00 : f32
    %461 = vector.broadcast %cst_283 : f32 to vector<12x32xf32>
    %462 = arith.maximumf %460, %461 : vector<12x32xf32>
    %cst_284 = arith.constant dense<0.000000e+00> : vector<12x16xf32>
    %463 = tpu.matmul %462, %3, %cst_284 {dimension_numbers = #tpu.dot_dimension_numbers<[1], [0], [0], [1], [0, 0, 1, 1], [], []>} : vector<12x32xf32>, vector<32x16xf32>, vector<12x16xf32> -> vector<12x16xf32>
    %cst_285 = arith.constant dense<0.000000e+00> : vector<12x16xf32>
    %464 = tpu.matmul %0, %463, %cst_285 {dimension_numbers = #tpu.dot_dimension_numbers<[1], [0], [0], [1], [0, 0, 1, 1], [], []>} : vector<12x12xf32>, vector<12x16xf32>, vector<12x16xf32> -> vector<12x16xf32>
    %465 = vector.broadcast %4 : vector<1x16xf32> to vector<12x16xf32>
    %466 = arith.addf %464, %465 : vector<12x16xf32>
    %cst_286 = arith.constant 0.000000e+00 : f32
    %467 = vector.broadcast %cst_286 : f32 to vector<12x16xf32>
    %468 = arith.maximumf %466, %467 : vector<12x16xf32>
    %cst_287 = arith.constant dense<0.000000e+00> : vector<10x16xf32>
    %469 = tpu.matmul %5, %468, %cst_287 {dimension_numbers = #tpu.dot_dimension_numbers<[1], [0], [0], [1], [0, 0, 1, 1], [], []>} : vector<10x12xf32>, vector<12x16xf32>, vector<10x16xf32> -> vector<10x16xf32>
    %470 = vector.broadcast %6 : vector<10x1xf32> to vector<10x16xf32>
    %471 = arith.addf %469, %470 : vector<10x16xf32>
    %c4_288 = arith.constant 4 : index
    %c0_289 = arith.constant 0 : index
    %472 = memref.load %arg13[%c4_288, %c0_289] : memref<8x4xf32, #tpu.memory_space<smem>>
    %473 = vector.broadcast %472 : f32 to vector<10x16xf32>
    %474 = arith.mulf %473, %471 : vector<10x16xf32>
    %475 = arith.addf %442, %474 : vector<10x16xf32>
    %c4_290 = arith.constant 4 : index
    %c1_291 = arith.constant 1 : index
    %476 = memref.load %arg13[%c4_290, %c1_291] : memref<8x4xf32, #tpu.memory_space<smem>>
    %477 = vector.broadcast %476 : f32 to vector<10x16xf32>
    %478 = arith.mulf %477, %471 : vector<10x16xf32>
    %479 = arith.addf %446, %478 : vector<10x16xf32>
    %c4_292 = arith.constant 4 : index
    %c2_293 = arith.constant 2 : index
    %480 = memref.load %arg13[%c4_292, %c2_293] : memref<8x4xf32, #tpu.memory_space<smem>>
    %481 = vector.broadcast %480 : f32 to vector<10x16xf32>
    %482 = arith.mulf %481, %471 : vector<10x16xf32>
    %483 = arith.addf %450, %482 : vector<10x16xf32>
    %c4_294 = arith.constant 4 : index
    %c3_295 = arith.constant 3 : index
    %484 = memref.load %arg13[%c4_294, %c3_295] : memref<8x4xf32, #tpu.memory_space<smem>>
    %485 = vector.broadcast %484 : f32 to vector<10x16xf32>
    %486 = arith.mulf %485, %471 : vector<10x16xf32>
    %487 = arith.addf %454, %486 : vector<10x16xf32>
    %c1_296 = arith.constant 1 : index
    %c5_297 = arith.constant 5 : index
    %c0_298 = arith.constant 0 : index
    %c0_299 = arith.constant 0 : index
    %488 = vector.load %arg1[%c1_296, %c5_297, %c0_298, %c0_299] : memref<2x8x12x4xf32, #tpu.memory_space<vmem>>, vector<1x1x12x4xf32>
    %489 = vector.shape_cast %488 : vector<1x1x12x4xf32> to vector<12x4xf32>
    %cst_300 = arith.constant dense<0.000000e+00> : vector<12x32xf32>
    %490 = tpu.matmul %489, %1, %cst_300 {dimension_numbers = #tpu.dot_dimension_numbers<[1], [0], [0], [1], [0, 0, 1, 1], [], []>} : vector<12x4xf32>, vector<4x32xf32>, vector<12x32xf32> -> vector<12x32xf32>
    %cst_301 = arith.constant dense<0.000000e+00> : vector<12x32xf32>
    %491 = tpu.matmul %0, %490, %cst_301 {dimension_numbers = #tpu.dot_dimension_numbers<[1], [0], [0], [1], [0, 0, 1, 1], [], []>} : vector<12x12xf32>, vector<12x32xf32>, vector<12x32xf32> -> vector<12x32xf32>
    %492 = vector.broadcast %2 : vector<1x32xf32> to vector<12x32xf32>
    %493 = arith.addf %491, %492 : vector<12x32xf32>
    %cst_302 = arith.constant 0.000000e+00 : f32
    %494 = vector.broadcast %cst_302 : f32 to vector<12x32xf32>
    %495 = arith.maximumf %493, %494 : vector<12x32xf32>
    %cst_303 = arith.constant dense<0.000000e+00> : vector<12x16xf32>
    %496 = tpu.matmul %495, %3, %cst_303 {dimension_numbers = #tpu.dot_dimension_numbers<[1], [0], [0], [1], [0, 0, 1, 1], [], []>} : vector<12x32xf32>, vector<32x16xf32>, vector<12x16xf32> -> vector<12x16xf32>
    %cst_304 = arith.constant dense<0.000000e+00> : vector<12x16xf32>
    %497 = tpu.matmul %0, %496, %cst_304 {dimension_numbers = #tpu.dot_dimension_numbers<[1], [0], [0], [1], [0, 0, 1, 1], [], []>} : vector<12x12xf32>, vector<12x16xf32>, vector<12x16xf32> -> vector<12x16xf32>
    %498 = vector.broadcast %4 : vector<1x16xf32> to vector<12x16xf32>
    %499 = arith.addf %497, %498 : vector<12x16xf32>
    %cst_305 = arith.constant 0.000000e+00 : f32
    %500 = vector.broadcast %cst_305 : f32 to vector<12x16xf32>
    %501 = arith.maximumf %499, %500 : vector<12x16xf32>
    %cst_306 = arith.constant dense<0.000000e+00> : vector<10x16xf32>
    %502 = tpu.matmul %5, %501, %cst_306 {dimension_numbers = #tpu.dot_dimension_numbers<[1], [0], [0], [1], [0, 0, 1, 1], [], []>} : vector<10x12xf32>, vector<12x16xf32>, vector<10x16xf32> -> vector<10x16xf32>
    %503 = vector.broadcast %6 : vector<10x1xf32> to vector<10x16xf32>
    %504 = arith.addf %502, %503 : vector<10x16xf32>
    %c5_307 = arith.constant 5 : index
    %c0_308 = arith.constant 0 : index
    %505 = memref.load %arg13[%c5_307, %c0_308] : memref<8x4xf32, #tpu.memory_space<smem>>
    %506 = vector.broadcast %505 : f32 to vector<10x16xf32>
    %507 = arith.mulf %506, %504 : vector<10x16xf32>
    %508 = arith.addf %475, %507 : vector<10x16xf32>
    %c5_309 = arith.constant 5 : index
    %c1_310 = arith.constant 1 : index
    %509 = memref.load %arg13[%c5_309, %c1_310] : memref<8x4xf32, #tpu.memory_space<smem>>
    %510 = vector.broadcast %509 : f32 to vector<10x16xf32>
    %511 = arith.mulf %510, %504 : vector<10x16xf32>
    %512 = arith.addf %479, %511 : vector<10x16xf32>
    %c5_311 = arith.constant 5 : index
    %c2_312 = arith.constant 2 : index
    %513 = memref.load %arg13[%c5_311, %c2_312] : memref<8x4xf32, #tpu.memory_space<smem>>
    %514 = vector.broadcast %513 : f32 to vector<10x16xf32>
    %515 = arith.mulf %514, %504 : vector<10x16xf32>
    %516 = arith.addf %483, %515 : vector<10x16xf32>
    %c5_313 = arith.constant 5 : index
    %c3_314 = arith.constant 3 : index
    %517 = memref.load %arg13[%c5_313, %c3_314] : memref<8x4xf32, #tpu.memory_space<smem>>
    %518 = vector.broadcast %517 : f32 to vector<10x16xf32>
    %519 = arith.mulf %518, %504 : vector<10x16xf32>
    %520 = arith.addf %487, %519 : vector<10x16xf32>
    %c1_315 = arith.constant 1 : index
    %c6_316 = arith.constant 6 : index
    %c0_317 = arith.constant 0 : index
    %c0_318 = arith.constant 0 : index
    %521 = vector.load %arg1[%c1_315, %c6_316, %c0_317, %c0_318] : memref<2x8x12x4xf32, #tpu.memory_space<vmem>>, vector<1x1x12x4xf32>
    %522 = vector.shape_cast %521 : vector<1x1x12x4xf32> to vector<12x4xf32>
    %cst_319 = arith.constant dense<0.000000e+00> : vector<12x32xf32>
    %523 = tpu.matmul %522, %1, %cst_319 {dimension_numbers = #tpu.dot_dimension_numbers<[1], [0], [0], [1], [0, 0, 1, 1], [], []>} : vector<12x4xf32>, vector<4x32xf32>, vector<12x32xf32> -> vector<12x32xf32>
    %cst_320 = arith.constant dense<0.000000e+00> : vector<12x32xf32>
    %524 = tpu.matmul %0, %523, %cst_320 {dimension_numbers = #tpu.dot_dimension_numbers<[1], [0], [0], [1], [0, 0, 1, 1], [], []>} : vector<12x12xf32>, vector<12x32xf32>, vector<12x32xf32> -> vector<12x32xf32>
    %525 = vector.broadcast %2 : vector<1x32xf32> to vector<12x32xf32>
    %526 = arith.addf %524, %525 : vector<12x32xf32>
    %cst_321 = arith.constant 0.000000e+00 : f32
    %527 = vector.broadcast %cst_321 : f32 to vector<12x32xf32>
    %528 = arith.maximumf %526, %527 : vector<12x32xf32>
    %cst_322 = arith.constant dense<0.000000e+00> : vector<12x16xf32>
    %529 = tpu.matmul %528, %3, %cst_322 {dimension_numbers = #tpu.dot_dimension_numbers<[1], [0], [0], [1], [0, 0, 1, 1], [], []>} : vector<12x32xf32>, vector<32x16xf32>, vector<12x16xf32> -> vector<12x16xf32>
    %cst_323 = arith.constant dense<0.000000e+00> : vector<12x16xf32>
    %530 = tpu.matmul %0, %529, %cst_323 {dimension_numbers = #tpu.dot_dimension_numbers<[1], [0], [0], [1], [0, 0, 1, 1], [], []>} : vector<12x12xf32>, vector<12x16xf32>, vector<12x16xf32> -> vector<12x16xf32>
    %531 = vector.broadcast %4 : vector<1x16xf32> to vector<12x16xf32>
    %532 = arith.addf %530, %531 : vector<12x16xf32>
    %cst_324 = arith.constant 0.000000e+00 : f32
    %533 = vector.broadcast %cst_324 : f32 to vector<12x16xf32>
    %534 = arith.maximumf %532, %533 : vector<12x16xf32>
    %cst_325 = arith.constant dense<0.000000e+00> : vector<10x16xf32>
    %535 = tpu.matmul %5, %534, %cst_325 {dimension_numbers = #tpu.dot_dimension_numbers<[1], [0], [0], [1], [0, 0, 1, 1], [], []>} : vector<10x12xf32>, vector<12x16xf32>, vector<10x16xf32> -> vector<10x16xf32>
    %536 = vector.broadcast %6 : vector<10x1xf32> to vector<10x16xf32>
    %537 = arith.addf %535, %536 : vector<10x16xf32>
    %c6_326 = arith.constant 6 : index
    %c0_327 = arith.constant 0 : index
    %538 = memref.load %arg13[%c6_326, %c0_327] : memref<8x4xf32, #tpu.memory_space<smem>>
    %539 = vector.broadcast %538 : f32 to vector<10x16xf32>
    %540 = arith.mulf %539, %537 : vector<10x16xf32>
    %541 = arith.addf %508, %540 : vector<10x16xf32>
    %c6_328 = arith.constant 6 : index
    %c1_329 = arith.constant 1 : index
    %542 = memref.load %arg13[%c6_328, %c1_329] : memref<8x4xf32, #tpu.memory_space<smem>>
    %543 = vector.broadcast %542 : f32 to vector<10x16xf32>
    %544 = arith.mulf %543, %537 : vector<10x16xf32>
    %545 = arith.addf %512, %544 : vector<10x16xf32>
    %c6_330 = arith.constant 6 : index
    %c2_331 = arith.constant 2 : index
    %546 = memref.load %arg13[%c6_330, %c2_331] : memref<8x4xf32, #tpu.memory_space<smem>>
    %547 = vector.broadcast %546 : f32 to vector<10x16xf32>
    %548 = arith.mulf %547, %537 : vector<10x16xf32>
    %549 = arith.addf %516, %548 : vector<10x16xf32>
    %c6_332 = arith.constant 6 : index
    %c3_333 = arith.constant 3 : index
    %550 = memref.load %arg13[%c6_332, %c3_333] : memref<8x4xf32, #tpu.memory_space<smem>>
    %551 = vector.broadcast %550 : f32 to vector<10x16xf32>
    %552 = arith.mulf %551, %537 : vector<10x16xf32>
    %553 = arith.addf %520, %552 : vector<10x16xf32>
    %c1_334 = arith.constant 1 : index
    %c7_335 = arith.constant 7 : index
    %c0_336 = arith.constant 0 : index
    %c0_337 = arith.constant 0 : index
    %554 = vector.load %arg1[%c1_334, %c7_335, %c0_336, %c0_337] : memref<2x8x12x4xf32, #tpu.memory_space<vmem>>, vector<1x1x12x4xf32>
    %555 = vector.shape_cast %554 : vector<1x1x12x4xf32> to vector<12x4xf32>
    %cst_338 = arith.constant dense<0.000000e+00> : vector<12x32xf32>
    %556 = tpu.matmul %555, %1, %cst_338 {dimension_numbers = #tpu.dot_dimension_numbers<[1], [0], [0], [1], [0, 0, 1, 1], [], []>} : vector<12x4xf32>, vector<4x32xf32>, vector<12x32xf32> -> vector<12x32xf32>
    %cst_339 = arith.constant dense<0.000000e+00> : vector<12x32xf32>
    %557 = tpu.matmul %0, %556, %cst_339 {dimension_numbers = #tpu.dot_dimension_numbers<[1], [0], [0], [1], [0, 0, 1, 1], [], []>} : vector<12x12xf32>, vector<12x32xf32>, vector<12x32xf32> -> vector<12x32xf32>
    %558 = vector.broadcast %2 : vector<1x32xf32> to vector<12x32xf32>
    %559 = arith.addf %557, %558 : vector<12x32xf32>
    %cst_340 = arith.constant 0.000000e+00 : f32
    %560 = vector.broadcast %cst_340 : f32 to vector<12x32xf32>
    %561 = arith.maximumf %559, %560 : vector<12x32xf32>
    %cst_341 = arith.constant dense<0.000000e+00> : vector<12x16xf32>
    %562 = tpu.matmul %561, %3, %cst_341 {dimension_numbers = #tpu.dot_dimension_numbers<[1], [0], [0], [1], [0, 0, 1, 1], [], []>} : vector<12x32xf32>, vector<32x16xf32>, vector<12x16xf32> -> vector<12x16xf32>
    %cst_342 = arith.constant dense<0.000000e+00> : vector<12x16xf32>
    %563 = tpu.matmul %0, %562, %cst_342 {dimension_numbers = #tpu.dot_dimension_numbers<[1], [0], [0], [1], [0, 0, 1, 1], [], []>} : vector<12x12xf32>, vector<12x16xf32>, vector<12x16xf32> -> vector<12x16xf32>
    %564 = vector.broadcast %4 : vector<1x16xf32> to vector<12x16xf32>
    %565 = arith.addf %563, %564 : vector<12x16xf32>
    %cst_343 = arith.constant 0.000000e+00 : f32
    %566 = vector.broadcast %cst_343 : f32 to vector<12x16xf32>
    %567 = arith.maximumf %565, %566 : vector<12x16xf32>
    %cst_344 = arith.constant dense<0.000000e+00> : vector<10x16xf32>
    %568 = tpu.matmul %5, %567, %cst_344 {dimension_numbers = #tpu.dot_dimension_numbers<[1], [0], [0], [1], [0, 0, 1, 1], [], []>} : vector<10x12xf32>, vector<12x16xf32>, vector<10x16xf32> -> vector<10x16xf32>
    %569 = vector.broadcast %6 : vector<10x1xf32> to vector<10x16xf32>
    %570 = arith.addf %568, %569 : vector<10x16xf32>
    %c7_345 = arith.constant 7 : index
    %c0_346 = arith.constant 0 : index
    %571 = memref.load %arg13[%c7_345, %c0_346] : memref<8x4xf32, #tpu.memory_space<smem>>
    %572 = vector.broadcast %571 : f32 to vector<10x16xf32>
    %573 = arith.mulf %572, %570 : vector<10x16xf32>
    %574 = arith.addf %541, %573 : vector<10x16xf32>
    %c7_347 = arith.constant 7 : index
    %c1_348 = arith.constant 1 : index
    %575 = memref.load %arg13[%c7_347, %c1_348] : memref<8x4xf32, #tpu.memory_space<smem>>
    %576 = vector.broadcast %575 : f32 to vector<10x16xf32>
    %577 = arith.mulf %576, %570 : vector<10x16xf32>
    %578 = arith.addf %545, %577 : vector<10x16xf32>
    %c7_349 = arith.constant 7 : index
    %c2_350 = arith.constant 2 : index
    %579 = memref.load %arg13[%c7_349, %c2_350] : memref<8x4xf32, #tpu.memory_space<smem>>
    %580 = vector.broadcast %579 : f32 to vector<10x16xf32>
    %581 = arith.mulf %580, %570 : vector<10x16xf32>
    %582 = arith.addf %549, %581 : vector<10x16xf32>
    %c7_351 = arith.constant 7 : index
    %c3_352 = arith.constant 3 : index
    %583 = memref.load %arg13[%c7_351, %c3_352] : memref<8x4xf32, #tpu.memory_space<smem>>
    %584 = vector.broadcast %583 : f32 to vector<10x16xf32>
    %585 = arith.mulf %584, %570 : vector<10x16xf32>
    %586 = arith.addf %553, %585 : vector<10x16xf32>
    %c0_353 = arith.constant 0 : index
    %c0_354 = arith.constant 0 : index
    %587 = memref.load %arg14[%c0_353, %c0_354] : memref<1x4xf32, #tpu.memory_space<smem>>
    %588 = vector.broadcast %587 : f32 to vector<10x16xf32>
    %589 = arith.addf %574, %588 : vector<10x16xf32>
    %cst_355 = arith.constant dense<0.000000e+00> : vector<10x16xf32>
    %590 = tpu.matmul %589, %7, %cst_355 {dimension_numbers = #tpu.dot_dimension_numbers<[1], [0], [0], [1], [0, 0, 1, 1], [], []>} : vector<10x16xf32>, vector<16x16xf32>, vector<10x16xf32> -> vector<10x16xf32>
    %591 = vector.broadcast %8 : vector<1x16xf32> to vector<10x16xf32>
    %592 = arith.addf %590, %591 : vector<10x16xf32>
    %cst_356 = arith.constant 0.000000e+00 : f32
    %593 = vector.broadcast %cst_356 : f32 to vector<10x16xf32>
    %594 = arith.maximumf %592, %593 : vector<10x16xf32>
    %cst_357 = arith.constant dense<0.000000e+00> : vector<10x16xf32>
    %595 = tpu.matmul %594, %9, %cst_357 {dimension_numbers = #tpu.dot_dimension_numbers<[1], [0], [0], [1], [0, 0, 1, 1], [], []>} : vector<10x16xf32>, vector<16x16xf32>, vector<10x16xf32> -> vector<10x16xf32>
    %596 = vector.broadcast %10 : vector<1x16xf32> to vector<10x16xf32>
    %597 = arith.addf %595, %596 : vector<10x16xf32>
    %c1_358 = arith.constant 1 : index
    %c0_359 = arith.constant 0 : index
    %c0_360 = arith.constant 0 : index
    %c0_361 = arith.constant 0 : index
    %598 = vector.load %arg15[%c1_358, %c0_359, %c0_360, %c0_361] : memref<2x4x10x16xf32, #tpu.memory_space<vmem>>, vector<1x1x10x16xf32>
    %599 = vector.shape_cast %598 : vector<1x1x10x16xf32> to vector<10x16xf32>
    %600 = vector.shape_cast %597 : vector<10x16xf32> to vector<1x1x10x16xf32>
    tpu.vector_store %arg15[%c1_358, %c0_359, %c0_360, %c0_361], %600 {strides = array<i32>} : memref<2x4x10x16xf32, #tpu.memory_space<vmem>>, vector<1x1x10x16xf32>,
    %c0_362 = arith.constant 0 : index
    %c1_363 = arith.constant 1 : index
    %601 = memref.load %arg14[%c0_362, %c1_363] : memref<1x4xf32, #tpu.memory_space<smem>>
    %602 = vector.broadcast %601 : f32 to vector<10x16xf32>
    %603 = arith.addf %578, %602 : vector<10x16xf32>
    %cst_364 = arith.constant dense<0.000000e+00> : vector<10x16xf32>
    %604 = tpu.matmul %603, %7, %cst_364 {dimension_numbers = #tpu.dot_dimension_numbers<[1], [0], [0], [1], [0, 0, 1, 1], [], []>} : vector<10x16xf32>, vector<16x16xf32>, vector<10x16xf32> -> vector<10x16xf32>
    %605 = vector.broadcast %8 : vector<1x16xf32> to vector<10x16xf32>
    %606 = arith.addf %604, %605 : vector<10x16xf32>
    %cst_365 = arith.constant 0.000000e+00 : f32
    %607 = vector.broadcast %cst_365 : f32 to vector<10x16xf32>
    %608 = arith.maximumf %606, %607 : vector<10x16xf32>
    %cst_366 = arith.constant dense<0.000000e+00> : vector<10x16xf32>
    %609 = tpu.matmul %608, %9, %cst_366 {dimension_numbers = #tpu.dot_dimension_numbers<[1], [0], [0], [1], [0, 0, 1, 1], [], []>} : vector<10x16xf32>, vector<16x16xf32>, vector<10x16xf32> -> vector<10x16xf32>
    %610 = vector.broadcast %10 : vector<1x16xf32> to vector<10x16xf32>
    %611 = arith.addf %609, %610 : vector<10x16xf32>
    %c1_367 = arith.constant 1 : index
    %c1_368 = arith.constant 1 : index
    %c0_369 = arith.constant 0 : index
    %c0_370 = arith.constant 0 : index
    %612 = vector.load %arg15[%c1_367, %c1_368, %c0_369, %c0_370] : memref<2x4x10x16xf32, #tpu.memory_space<vmem>>, vector<1x1x10x16xf32>
    %613 = vector.shape_cast %612 : vector<1x1x10x16xf32> to vector<10x16xf32>
    %614 = vector.shape_cast %611 : vector<10x16xf32> to vector<1x1x10x16xf32>
    tpu.vector_store %arg15[%c1_367, %c1_368, %c0_369, %c0_370], %614 {strides = array<i32>} : memref<2x4x10x16xf32, #tpu.memory_space<vmem>>, vector<1x1x10x16xf32>,
    %c0_371 = arith.constant 0 : index
    %c2_372 = arith.constant 2 : index
    %615 = memref.load %arg14[%c0_371, %c2_372] : memref<1x4xf32, #tpu.memory_space<smem>>
    %616 = vector.broadcast %615 : f32 to vector<10x16xf32>
    %617 = arith.addf %582, %616 : vector<10x16xf32>
    %cst_373 = arith.constant dense<0.000000e+00> : vector<10x16xf32>
    %618 = tpu.matmul %617, %7, %cst_373 {dimension_numbers = #tpu.dot_dimension_numbers<[1], [0], [0], [1], [0, 0, 1, 1], [], []>} : vector<10x16xf32>, vector<16x16xf32>, vector<10x16xf32> -> vector<10x16xf32>
    %619 = vector.broadcast %8 : vector<1x16xf32> to vector<10x16xf32>
    %620 = arith.addf %618, %619 : vector<10x16xf32>
    %cst_374 = arith.constant 0.000000e+00 : f32
    %621 = vector.broadcast %cst_374 : f32 to vector<10x16xf32>
    %622 = arith.maximumf %620, %621 : vector<10x16xf32>
    %cst_375 = arith.constant dense<0.000000e+00> : vector<10x16xf32>
    %623 = tpu.matmul %622, %9, %cst_375 {dimension_numbers = #tpu.dot_dimension_numbers<[1], [0], [0], [1], [0, 0, 1, 1], [], []>} : vector<10x16xf32>, vector<16x16xf32>, vector<10x16xf32> -> vector<10x16xf32>
    %624 = vector.broadcast %10 : vector<1x16xf32> to vector<10x16xf32>
    %625 = arith.addf %623, %624 : vector<10x16xf32>
    %c1_376 = arith.constant 1 : index
    %c2_377 = arith.constant 2 : index
    %c0_378 = arith.constant 0 : index
    %c0_379 = arith.constant 0 : index
    %626 = vector.load %arg15[%c1_376, %c2_377, %c0_378, %c0_379] : memref<2x4x10x16xf32, #tpu.memory_space<vmem>>, vector<1x1x10x16xf32>
    %627 = vector.shape_cast %626 : vector<1x1x10x16xf32> to vector<10x16xf32>
    %628 = vector.shape_cast %625 : vector<10x16xf32> to vector<1x1x10x16xf32>
    tpu.vector_store %arg15[%c1_376, %c2_377, %c0_378, %c0_379], %628 {strides = array<i32>} : memref<2x4x10x16xf32, #tpu.memory_space<vmem>>, vector<1x1x10x16xf32>,
    %c0_380 = arith.constant 0 : index
    %c3_381 = arith.constant 3 : index
    %629 = memref.load %arg14[%c0_380, %c3_381] : memref<1x4xf32, #tpu.memory_space<smem>>
    %630 = vector.broadcast %629 : f32 to vector<10x16xf32>
    %631 = arith.addf %586, %630 : vector<10x16xf32>
    %cst_382 = arith.constant dense<0.000000e+00> : vector<10x16xf32>
    %632 = tpu.matmul %631, %7, %cst_382 {dimension_numbers = #tpu.dot_dimension_numbers<[1], [0], [0], [1], [0, 0, 1, 1], [], []>} : vector<10x16xf32>, vector<16x16xf32>, vector<10x16xf32> -> vector<10x16xf32>
    %633 = vector.broadcast %8 : vector<1x16xf32> to vector<10x16xf32>
    %634 = arith.addf %632, %633 : vector<10x16xf32>
    %cst_383 = arith.constant 0.000000e+00 : f32
    %635 = vector.broadcast %cst_383 : f32 to vector<10x16xf32>
    %636 = arith.maximumf %634, %635 : vector<10x16xf32>
    %cst_384 = arith.constant dense<0.000000e+00> : vector<10x16xf32>
    %637 = tpu.matmul %636, %9, %cst_384 {dimension_numbers = #tpu.dot_dimension_numbers<[1], [0], [0], [1], [0, 0, 1, 1], [], []>} : vector<10x16xf32>, vector<16x16xf32>, vector<10x16xf32> -> vector<10x16xf32>
    %638 = vector.broadcast %10 : vector<1x16xf32> to vector<10x16xf32>
    %639 = arith.addf %637, %638 : vector<10x16xf32>
    %c1_385 = arith.constant 1 : index
    %c3_386 = arith.constant 3 : index
    %c0_387 = arith.constant 0 : index
    %c0_388 = arith.constant 0 : index
    %640 = vector.load %arg15[%c1_385, %c3_386, %c0_387, %c0_388] : memref<2x4x10x16xf32, #tpu.memory_space<vmem>>, vector<1x1x10x16xf32>
    %641 = vector.shape_cast %640 : vector<1x1x10x16xf32> to vector<10x16xf32>
    %642 = vector.shape_cast %639 : vector<10x16xf32> to vector<1x1x10x16xf32>
    tpu.vector_store %arg15[%c1_385, %c3_386, %c0_387, %c0_388], %642 {strides = array<i32>} : memref<2x4x10x16xf32, #tpu.memory_space<vmem>>, vector<1x1x10x16xf32>,
    return
  }
  func.func @transform_0(%arg0: i32) -> (i32, i32, i32, i32) {
    %c0_i32 = arith.constant 0 : i32
    %c0_i32_0 = arith.constant 0 : i32
    %c0_i32_1 = arith.constant 0 : i32
    %c0_i32_2 = arith.constant 0 : i32
    %c0_i32_3 = arith.constant 0 : i32
    return %c0_i32, %c0_i32_0, %c0_i32_1, %c0_i32_2 : i32, i32, i32, i32
  }
  func.func @transform_1(%arg0: i32) -> (i32, i32) {
    %c0_i32 = arith.constant 0 : i32
    %c0_i32_0 = arith.constant 0 : i32
    %c0_i32_1 = arith.constant 0 : i32
    return %c0_i32, %c0_i32_0 : i32, i32
  }
  func.func @transform_2(%arg0: i32) -> (i32, i32) {
    %c0_i32 = arith.constant 0 : i32
    %c0_i32_0 = arith.constant 0 : i32
    %c0_i32_1 = arith.constant 0 : i32
    return %c0_i32, %c0_i32_0 : i32, i32
  }
  func.func @transform_3(%arg0: i32) -> (i32, i32) {
    %c0_i32 = arith.constant 0 : i32
    %c0_i32_0 = arith.constant 0 : i32
    %c0_i32_1 = arith.constant 0 : i32
    return %c0_i32, %c0_i32_0 : i32, i32
  }
  func.func @transform_4(%arg0: i32) -> (i32, i32) {
    %c0_i32 = arith.constant 0 : i32
    %c0_i32_0 = arith.constant 0 : i32
    %c0_i32_1 = arith.constant 0 : i32
    return %c0_i32, %c0_i32_0 : i32, i32
  }
  func.func @transform_5(%arg0: i32) -> (i32, i32) {
    %c0_i32 = arith.constant 0 : i32
    %c0_i32_0 = arith.constant 0 : i32
    %c0_i32_1 = arith.constant 0 : i32
    return %c0_i32, %c0_i32_0 : i32, i32
  }
  func.func @transform_6(%arg0: i32) -> (i32, i32) {
    %c0_i32 = arith.constant 0 : i32
    %c0_i32_0 = arith.constant 0 : i32
    %c0_i32_1 = arith.constant 0 : i32
    return %c0_i32, %c0_i32_0 : i32, i32
  }
  func.func @transform_7(%arg0: i32) -> (i32, i32) {
    %c0_i32 = arith.constant 0 : i32
    %c0_i32_0 = arith.constant 0 : i32
    %c0_i32_1 = arith.constant 0 : i32
    return %c0_i32, %c0_i32_0 : i32, i32
  }
  func.func @transform_8(%arg0: i32) -> (i32, i32) {
    %c0_i32 = arith.constant 0 : i32
    %c0_i32_0 = arith.constant 0 : i32
    %c0_i32_1 = arith.constant 0 : i32
    return %c0_i32, %c0_i32_0 : i32, i32
  }
  func.func @transform_9(%arg0: i32) -> (i32, i32) {
    %c0_i32 = arith.constant 0 : i32
    %c0_i32_0 = arith.constant 0 : i32
    %c0_i32_1 = arith.constant 0 : i32
    return %c0_i32, %c0_i32_0 : i32, i32
  }
  func.func @transform_10(%arg0: i32) -> (i32, i32) {
    %c0_i32 = arith.constant 0 : i32
    %c0_i32_0 = arith.constant 0 : i32
    %c0_i32_1 = arith.constant 0 : i32
    return %c0_i32, %c0_i32_0 : i32, i32
  }
  func.func @transform_11(%arg0: i32) -> (i32, i32) {
    %c0_i32 = arith.constant 0 : i32
    %c0_i32_0 = arith.constant 0 : i32
    %c0_i32_1 = arith.constant 0 : i32
    return %c0_i32, %c0_i32_0 : i32, i32
  }
  func.func @transform_12(%arg0: i32) -> (i32, i32) {
    %c0_i32 = arith.constant 0 : i32
    %c0_i32_0 = arith.constant 0 : i32
    %c0_i32_1 = arith.constant 0 : i32
    return %c0_i32, %c0_i32_0 : i32, i32
  }
  func.func @transform_13(%arg0: i32) -> (i32, i32) {
    %c0_i32 = arith.constant 0 : i32
    %c0_i32_0 = arith.constant 0 : i32
    %c0_i32_1 = arith.constant 0 : i32
    return %c0_i32, %c0_i32_0 : i32, i32
  }
  func.func @transform_14(%arg0: i32) -> (i32, i32, i32, i32) {
    %c0_i32 = arith.constant 0 : i32
    %c0_i32_0 = arith.constant 0 : i32
    %c0_i32_1 = arith.constant 0 : i32
    %c0_i32_2 = arith.constant 0 : i32
    %c0_i32_3 = arith.constant 0 : i32
    return %c0_i32, %c0_i32_0, %c0_i32_1, %c0_i32_2 : i32, i32, i32, i32
  }
}

</mosaic_0001>

<llo_original>
// kernel: mmwp_forward.2
$region0: #{mmwp_forward.2}
  #allocation0 [shape = 'u32[]', space=smem, size = 0x4, offset = 0x4, fixed_abs, tag = 'smem constant byte address 0x4 - core index']
  #allocation1 [shape = 'u32[72,128]{1,0:T(1,128)}', space=vmem, size = 0x9000, scoped, tag = 'internal scratch']
  %s0 = inlined_call_operand.vmem [shape: f32[8,8,128], index: 0, kind: input, shape index: {}]
  %s1 = inlined_call_operand.vmem [shape: f32[32,8], index: 1, kind: input, shape index: {}]
  %s2 = inlined_call_operand.vmem [shape: f32[32,1], index: 2, kind: input, shape index: {}]
  %s3 = inlined_call_operand.vmem [shape: f32[16,32], index: 3, kind: input, shape index: {}]
  %s4 = inlined_call_operand.vmem [shape: f32[16,1], index: 4, kind: input, shape index: {}]
  %s5 = inlined_call_operand.vmem [shape: f32[16,16], index: 5, kind: input, shape index: {}]
  %s6 = inlined_call_operand.vmem [shape: f32[16,1], index: 6, kind: input, shape index: {}]
  %s7 = inlined_call_operand.vmem [shape: f32[16,16], index: 7, kind: input, shape index: {}]
  %s8 = inlined_call_operand.vmem [shape: f32[16,1], index: 8, kind: input, shape index: {}]
  %s9 = inlined_call_operand.vmem [shape: f32[8,4], index: 9, kind: input, shape index: {}]
  %s10 = inlined_call_operand.vmem [shape: f32[1,4], index: 10, kind: input, shape index: {}]
  %s11 = inlined_call_operand.vmem [shape: f32[4,16,128], index: 11, kind: output, shape index: {}]
  %s12 = sld [smem:[#allocation0]]
  $region62: #{mmwp_forward.2} parent=0
    _
  %s14 = ssub.s32 1, %s12
  %s15 = scalar_select 0, %s14, %s12
  $region1: #{mmwp_forward.2} parent=0
    #allocation2 [shape = 'u8[4096]{0}', space=smem, size = 0x1000, scoped, tag = 'input window, operand 9, single buffered']
    #allocation3 [shape = 's32[1]{0}', space=sflag, size = 0x4, scoped, tag = 'scoped memory for mmwp_forward.2']
    #allocation4 [shape = 'u8[512]{0}', space=smem, size = 0x200, scoped, tag = 'input window, operand 10, single buffered']
    #allocation5 [shape = 's32[1]{0}', space=sflag, size = 0x4, scoped, tag = 'scoped memory for mmwp_forward.2']
    %16 = vsyncpa [#allocation3], 0
    %17 = vsyncpa [#allocation5], 0
    // Predicated region
    $region2: #{mmwp_forward.2} parent=1 // pred_check
      _
    $region3: #{mmwp_forward.2} parent=1 // pred_check_branch
      %19 = sbr.rel (0) target = $region5
    $region4: #{mmwp_forward.2} parent=1 // pred_region
      _
    $region5: #{mmwp_forward.2} parent=1 // pred_fallthru
      _
    // Predicated region
    $region6: #{mmwp_forward.2} parent=1 // pred_check
      _
    $region7: #{mmwp_forward.2} parent=1 // pred_check_branch
      %21 = sbr.rel (0) target = $region9
    $region8: #{mmwp_forward.2} parent=1 // pred_region
      _
    $region9: #{mmwp_forward.2} parent=1 // pred_fallthru
      _
    // Predicated region
    $region10: #{mmwp_forward.2} parent=1 // pred_check
      _
    $region11: #{mmwp_forward.2} parent=1 // pred_check_branch
      %23 = sbr.rel (0) target = $region13
    $region12: #{mmwp_forward.2} parent=1 // pred_region
      _
    $region13: #{mmwp_forward.2} parent=1 // pred_fallthru
      _
    // Predicated region
    $region14: #{mmwp_forward.2} parent=1 // pred_check
      _
    $region15: #{mmwp_forward.2} parent=1 // pred_check_branch
      %25 = sbr.rel (0) target = $region17
    $region16: #{mmwp_forward.2} parent=1 // pred_region
      _
    $region17: #{mmwp_forward.2} parent=1 // pred_fallthru
      _
    // Predicated region
    $region18: #{mmwp_forward.2} parent=1 // pred_check
      _
    $region19: #{mmwp_forward.2} parent=1 // pred_check_branch
      %27 = sbr.rel (0) target = $region21
    $region20: #{mmwp_forward.2} parent=1 // pred_region
      _
    $region21: #{mmwp_forward.2} parent=1 // pred_fallthru
      _
    // Predicated region
    $region22: #{mmwp_forward.2} parent=1 // pred_check
      _
    $region23: #{mmwp_forward.2} parent=1 // pred_check_branch
      %29 = sbr.rel (0) target = $region25
    $region24: #{mmwp_forward.2} parent=1 // pred_region
      _
    $region25: #{mmwp_forward.2} parent=1 // pred_fallthru
      _
    // Predicated region
    $region26: #{mmwp_forward.2} parent=1 // pred_check
      _
    $region27: #{mmwp_forward.2} parent=1 // pred_check_branch
      %31 = sbr.rel (0) target = $region29
    $region28: #{mmwp_forward.2} parent=1 // pred_region
      _
    $region29: #{mmwp_forward.2} parent=1 // pred_fallthru
      _
    // Predicated region
    $region30: #{mmwp_forward.2} parent=1 // pred_check
      _
    $region31: #{mmwp_forward.2} parent=1 // pred_check_branch
      %33 = sbr.rel (0) target = $region33
    $region32: #{mmwp_forward.2} parent=1 // pred_region
      _
    $region33: #{mmwp_forward.2} parent=1 // pred_fallthru
      _
    // Predicated region
    $region34: #{mmwp_forward.2} parent=1 // pred_check
      _
    $region35: #{mmwp_forward.2} parent=1 // pred_check_branch
      %35 = sbr.rel (0) target = $region37
    $region36: #{mmwp_forward.2} parent=1 // pred_region
      _
    $region37: #{mmwp_forward.2} parent=1 // pred_fallthru
      _
    // Predicated region
    $region38: #{mmwp_forward.2} parent=1 // pred_check
      _
    $region39: #{mmwp_forward.2} parent=1 // pred_check_branch
      %37 = sbr.rel (0) target = $region41
    $region40: #{mmwp_forward.2} parent=1 // pred_region
      %39 = vsyncadd [#allocation3], 0
      %s41 = sshll.u32 %s9, 4
      %s42 = int_to_ptr.vmem [resolvable:$true] %s41
      %44 = dma.vmem_to_smem %s42, 128, [#allocation2], [#allocation3]
    $region41: #{mmwp_forward.2} parent=1 // pred_fallthru
      _
    // Predicated region
    $region42: #{mmwp_forward.2} parent=1 // pred_check
      _
    $region43: #{mmwp_forward.2} parent=1 // pred_check_branch
      %46 = sbr.rel (0) target = $region45
    $region44: #{mmwp_forward.2} parent=1 // pred_region
      %48 = vsyncadd [#allocation5], 0
      %s50 = sshll.u32 %s10, 4
      %s51 = int_to_ptr.vmem [resolvable:$true] %s50
      %53 = dma.vmem_to_smem %s51, 16, [#allocation4], [#allocation5]
    $region45: #{mmwp_forward.2} parent=1 // pred_fallthru
      _
    // Predicated region
    $region46: #{mmwp_forward.2} parent=1 // pred_check
      _
    $region47: #{mmwp_forward.2} parent=1 // pred_check_branch
      %55 = sbr.rel (0) target = $region49
    $region48: #{mmwp_forward.2} parent=1 // pred_region
      %57 = dma.done [#allocation3], 128
    $region49: #{mmwp_forward.2} parent=1 // pred_fallthru
      _
    // Predicated region
    $region50: #{mmwp_forward.2} parent=1 // pred_check
      _
    $region51: #{mmwp_forward.2} parent=1 // pred_check_branch
      %59 = sbr.rel (0) target = $region53
    $region52: #{mmwp_forward.2} parent=1 // pred_region
      %61 = dma.done [#allocation5], 16
    $region53: #{mmwp_forward.2} parent=1 // pred_fallthru
      _
    %62 = sfence
    %v63 = vld [vmem:[%s1] sm:$0xff]
    %v64 = vld [vmem:[%s1 + $0x8] sm:$0xff]
    %v65 = vld [vmem:[%s1 + $0x10] sm:$0xff]
    %v66 = vld [vmem:[%s1 + $0x18] sm:$0xff]
    %v67 = vld [vmem:[%s2] sm:$0xff]
    %v68 = vld [vmem:[%s2 + $0x8] sm:$0xff]
    %v69 = vld [vmem:[%s2 + $0x10] sm:$0xff]
    %v70 = vld [vmem:[%s2 + $0x18] sm:$0xff]
    %v71 = vld [vmem:[%s3] sm:$0xff]
    %v72 = vld [vmem:[%s3 + $0x8] sm:$0xff]
    %v73 = vld [vmem:[%s4] sm:$0xff]
    %v74 = vld [vmem:[%s4 + $0x8] sm:$0xff]
    %v75 = vld [vmem:[%s5] sm:$0xff]
    %v76 = vld [vmem:[%s5 + $0x8] sm:$0xff]
    %v77 = vld [vmem:[%s6] sm:$0xff]
    %v78 = vld [vmem:[%s6 + $0x8] sm:$0xff]
    %v79 = vld [vmem:[%s7] sm:$0xff]
    %v80 = vld [vmem:[%s7 + $0x8] sm:$0xff]
    %v81 = vld [vmem:[%s8] sm:$0xff]
    %v82 = vld [vmem:[%s8 + $0x8] sm:$0xff]
    %v83 = vld [vmem:[%s0] sm:$0xff]
    %85 = vset.pattern.permute.xlu0 0
    %86 = vperm.xlu0 %85, %v67
    %v87 = vpop.permute.xlu0 %86
    %90 = vset.pattern.permute.xlu0 0
    %91 = vperm.xlu0 %90, %v68
    %v92 = vpop.permute.xlu0 %91
    %95 = vset.pattern.permute.xlu0 0
    %96 = vperm.xlu0 %95, %v69
    %v97 = vpop.permute.xlu0 %96
    %100 = vset.pattern.permute.xlu0 0
    %101 = vperm.xlu0 %100, %v70
    %v102 = vpop.permute.xlu0 %101
    %vm104 = vcmask 64512
    %v106 = vsel %vm104, %v63, 0
    %v109 = vsel %vm104, %v64, 0
    %v112 = vsel %vm104, %v65, 0
    %v115 = vsel %vm104, %v66, 0
    %117 = vmatpush.msra.mxu0 0.0
    %118 = vmatpush.msra.mxu0 0.0
    %119 = vmatpush.msra.mxu0 0.0
    %120 = vmatpush.msra.mxu0 0.0
    %121 = vmatpush.msra.mxu0 0.0
    %122 = vmatpush.msra.mxu0 0.0
    %123 = vmatpush.msra.mxu0 0.0
    %124 = vmatpush.msra.mxu0 0.0
    %125 = vmatpush.msra.mxu0 0.0
    %126 = vmatpush.msra.mxu0 0.0
    %127 = vmatpush.msra.mxu0 0.0
    %128 = vmatpush.msra.mxu0 0.0
    %129 = vmatpush.msra.mxu0 0.0
    %130 = vmatpush.msra.mxu0 0.0
    %131 = vmatpush.msra.mxu0 0.0
    %132 = vmatpush.msra.mxu0 %v83
    %133 = vmatmul.f32.gmra.mxu0 %v106
    %v134 = vpop.f32.mrf.mxu0
    %v135 = vadd.f32 %v87, %v134
    %136 = vmatmul.f32.gmra.mxu0 %v109
    %v137 = vpop.f32.mrf.mxu0
    %v138 = vadd.f32 %v92, %v137
    %139 = vmatmul.f32.gmra.mxu0 %v112
    %v140 = vpop.f32.mrf.mxu0
    %v141 = vadd.f32 %v97, %v140
    %142 = vmatmul.f32.gmra.mxu0 %v115
    %v143 = vpop.f32.mrf.mxu0
    %v144 = vadd.f32 %v102, %v143
    %145 = vdwg.mxu0
    %v146 = vmax.f32 %v135, 0.0
    %v147 = vmax.f32 %v138, 0.0
    %v148 = vmax.f32 %v141, 0.0
    %v149 = vmax.f32 %v144, 0.0
    %151 = vset.pattern.permute.xlu0 0
    %152 = vperm.xlu0 %151, %v73
    %v153 = vpop.permute.xlu0 %152
    %156 = vset.pattern.permute.xlu0 0
    %157 = vperm.xlu0 %156, %v74
    %v158 = vpop.permute.xlu0 %157
    %vm160 = vcmask 261120
    %v162 = vsel %vm160, %v71, 0
    %v165 = vsel %vm160, %v72, 0
    %167 = vmatpush.msra.mxu0 0.0
    %168 = vmatpush.msra.mxu0 0.0
    %169 = vmatpush.msra.mxu0 0.0
    %170 = vmatpush.msra.mxu0 0.0
    %171 = vmatpush.msra.mxu0 0.0
    %172 = vmatpush.msra.mxu0 0.0
    %173 = vmatpush.msra.mxu0 0.0
    %174 = vmatpush.msra.mxu0 0.0
    %175 = vmatpush.msra.mxu0 0.0
    %176 = vmatpush.msra.mxu0 0.0
    %177 = vmatpush.msra.mxu0 0.0
    %178 = vmatpush.msra.mxu0 0.0
    %179 = vmatpush.msra.mxu0 %v149
    %180 = vmatpush.msra.mxu0 %v148
    %181 = vmatpush.msra.mxu0 %v147
    %182 = vmatpush.msra.mxu0 %v146
    %183 = vmatmul.f32.gmra.mxu0 %v162
    %v184 = vpop.f32.mrf.mxu0
    %v185 = vadd.f32 %v153, %v184
    %186 = vmatmul.f32.gmra.mxu0 %v165
    %v187 = vpop.f32.mrf.mxu0
    %v188 = vadd.f32 %v158, %v187
    %189 = vdwg.mxu0
    %s190 = sld [smem:[#allocation2]]
    %v191 = vstv %s190
    %v192 = vmul.f32 %v191, %v185
    %v193 = vmul.f32 %v191, %v188
    %s194 = sld [smem:[#allocation2 + $0x1]]
    %v195 = vstv %s194
    %v196 = vmul.f32 %v195, %v185
    %v197 = vmul.f32 %v195, %v188
    %s198 = sld [smem:[#allocation2 + $0x2]]
    %v199 = vstv %s198
    %v200 = vmul.f32 %v199, %v185
    %v201 = vmul.f32 %v199, %v188
    %s202 = sld [smem:[#allocation2 + $0x3]]
    %v203 = vstv %s202
    %v204 = vmul.f32 %v203, %v185
    %v205 = vmul.f32 %v203, %v188
    %s206 = scalar_lea.vmem %s0, 8
    %v207 = vld [vmem:[%s206] sm:$0xff]
    %208 = vmatpush.msra.mxu0 0.0
    %209 = vmatpush.msra.mxu0 0.0
    %210 = vmatpush.msra.mxu0 0.0
    %211 = vmatpush.msra.mxu0 0.0
    %212 = vmatpush.msra.mxu0 0.0
    %213 = vmatpush.msra.mxu0 0.0
    %214 = vmatpush.msra.mxu0 0.0
    %215 = vmatpush.msra.mxu0 0.0
    %216 = vmatpush.msra.mxu0 0.0
    %217 = vmatpush.msra.mxu0 0.0
    %218 = vmatpush.msra.mxu0 0.0
    %219 = vmatpush.msra.mxu0 0.0
    %220 = vmatpush.msra.mxu0 0.0
    %221 = vmatpush.msra.mxu0 0.0
    %222 = vmatpush.msra.mxu0 0.0
    %223 = vmatpush.msra.mxu0 %v207
    %224 = vmatmul.f32.gmra.mxu0 %v106
    %v225 = vpop.f32.mrf.mxu0
    %v226 = vadd.f32 %v87, %v225
    %227 = vmatmul.f32.gmra.mxu0 %v109
    %v228 = vpop.f32.mrf.mxu0
    %v229 = vadd.f32 %v92, %v228
    %230 = vmatmul.f32.gmra.mxu0 %v112
    %v231 = vpop.f32.mrf.mxu0
    %v232 = vadd.f32 %v97, %v231
    %233 = vmatmul.f32.gmra.mxu0 %v115
    %v234 = vpop.f32.mrf.mxu0
    %v235 = vadd.f32 %v102, %v234
    %236 = vdwg.mxu0
    %v237 = vmax.f32 %v226, 0.0
    %v238 = vmax.f32 %v229, 0.0
    %v239 = vmax.f32 %v232, 0.0
    %v240 = vmax.f32 %v235, 0.0
    %241 = vmatpush.msra.mxu0 0.0
    %242 = vmatpush.msra.mxu0 0.0
    %243 = vmatpush.msra.mxu0 0.0
    %244 = vmatpush.msra.mxu0 0.0
    %245 = vmatpush.msra.mxu0 0.0
    %246 = vmatpush.msra.mxu0 0.0
    %247 = vmatpush.msra.mxu0 0.0
    %248 = vmatpush.msra.mxu0 0.0
    %249 = vmatpush.msra.mxu0 0.0
    %250 = vmatpush.msra.mxu0 0.0
    %251 = vmatpush.msra.mxu0 0.0
    %252 = vmatpush.msra.mxu0 0.0
    %253 = vmatpush.msra.mxu0 %v240
    %254 = vmatpush.msra.mxu0 %v239
    %255 = vmatpush.msra.mxu0 %v238
    %256 = vmatpush.msra.mxu0 %v237
    %257 = vmatmul.f32.gmra.mxu0 %v162
    %v258 = vpop.f32.mrf.mxu0
    %v259 = vadd.f32 %v153, %v258
    %260 = vmatmul.f32.gmra.mxu0 %v165
    %v261 = vpop.f32.mrf.mxu0
    %v262 = vadd.f32 %v158, %v261
    %263 = vdwg.mxu0
    %s264 = sld [smem:[#allocation2 + $0x80]]
    %v265 = vstv %s264
    %v266 = vmul.f32 %v265, %v259
    %v267 = vmul.f32 %v265, %v262
    %v268 = vadd.f32 %v192, %v266
    %v269 = vadd.f32 %v193, %v267
    %s270 = sld [smem:[#allocation2 + $0x81]]
    %v271 = vstv %s270
    %v272 = vmul.f32 %v271, %v259
    %v273 = vmul.f32 %v271, %v262
    %v274 = vadd.f32 %v196, %v272
    %v275 = vadd.f32 %v197, %v273
    %s276 = sld [smem:[#allocation2 + $0x82]]
    %v277 = vstv %s276
    %v278 = vmul.f32 %v277, %v259
    %v279 = vmul.f32 %v277, %v262
    %v280 = vadd.f32 %v200, %v278
    %v281 = vadd.f32 %v201, %v279
    %s282 = sld [smem:[#allocation2 + $0x83]]
    %v283 = vstv %s282
    %v284 = vmul.f32 %v283, %v259
    %v285 = vmul.f32 %v283, %v262
    %v286 = vadd.f32 %v204, %v284
    %v287 = vadd.f32 %v205, %v285
    %s288 = scalar_lea.vmem %s0, 16
    %v289 = vld [vmem:[%s288] sm:$0xff]
    %290 = vmatpush.msra.mxu0 0.0
    %291 = vmatpush.msra.mxu0 0.0
    %292 = vmatpush.msra.mxu0 0.0
    %293 = vmatpush.msra.mxu0 0.0
    %294 = vmatpush.msra.mxu0 0.0
    %295 = vmatpush.msra.mxu0 0.0
    %296 = vmatpush.msra.mxu0 0.0
    %297 = vmatpush.msra.mxu0 0.0
    %298 = vmatpush.msra.mxu0 0.0
    %299 = vmatpush.msra.mxu0 0.0
    %300 = vmatpush.msra.mxu0 0.0
    %301 = vmatpush.msra.mxu0 0.0
    %302 = vmatpush.msra.mxu0 0.0
    %303 = vmatpush.msra.mxu0 0.0
    %304 = vmatpush.msra.mxu0 0.0
    %305 = vmatpush.msra.mxu0 %v289
    %306 = vmatmul.f32.gmra.mxu0 %v106
    %v307 = vpop.f32.mrf.mxu0
    %v308 = vadd.f32 %v87, %v307
    %309 = vmatmul.f32.gmra.mxu0 %v109
    %v310 = vpop.f32.mrf.mxu0
    %v311 = vadd.f32 %v92, %v310
    %312 = vmatmul.f32.gmra.mxu0 %v112
    %v313 = vpop.f32.mrf.mxu0
    %v314 = vadd.f32 %v97, %v313
    %315 = vmatmul.f32.gmra.mxu0 %v115
    %v316 = vpop.f32.mrf.mxu0
    %v317 = vadd.f32 %v102, %v316
    %318 = vdwg.mxu0
    %v319 = vmax.f32 %v308, 0.0
    %v320 = vmax.f32 %v311, 0.0
    %v321 = vmax.f32 %v314, 0.0
    %v322 = vmax.f32 %v317, 0.0
    %323 = vmatpush.msra.mxu0 0.0
    %324 = vmatpush.msra.mxu0 0.0
    %325 = vmatpush.msra.mxu0 0.0
    %326 = vmatpush.msra.mxu0 0.0
    %327 = vmatpush.msra.mxu0 0.0
    %328 = vmatpush.msra.mxu0 0.0
    %329 = vmatpush.msra.mxu0 0.0
    %330 = vmatpush.msra.mxu0 0.0
    %331 = vmatpush.msra.mxu0 0.0
    %332 = vmatpush.msra.mxu0 0.0
    %333 = vmatpush.msra.mxu0 0.0
    %334 = vmatpush.msra.mxu0 0.0
    %335 = vmatpush.msra.mxu0 %v322
    %336 = vmatpush.msra.mxu0 %v321
    %337 = vmatpush.msra.mxu0 %v320
    %338 = vmatpush.msra.mxu0 %v319
    %339 = vmatmul.f32.gmra.mxu0 %v162
    %v340 = vpop.f32.mrf.mxu0
    %v341 = vadd.f32 %v153, %v340
    %342 = vmatmul.f32.gmra.mxu0 %v165
    %v343 = vpop.f32.mrf.mxu0
    %v344 = vadd.f32 %v158, %v343
    %345 = vdwg.mxu0
    %s346 = sld [smem:[#allocation2 + $0x100]]
    %v347 = vstv %s346
    %v348 = vmul.f32 %v347, %v341
    %v349 = vmul.f32 %v347, %v344
    %v350 = vadd.f32 %v268, %v348
    %v351 = vadd.f32 %v269, %v349
    %s352 = sld [smem:[#allocation2 + $0x101]]
    %v353 = vstv %s352
    %v354 = vmul.f32 %v353, %v341
    %v355 = vmul.f32 %v353, %v344
    %v356 = vadd.f32 %v274, %v354
    %v357 = vadd.f32 %v275, %v355
    %s358 = sld [smem:[#allocation2 + $0x102]]
    %v359 = vstv %s358
    %v360 = vmul.f32 %v359, %v341
    %v361 = vmul.f32 %v359, %v344
    %v362 = vadd.f32 %v280, %v360
    %v363 = vadd.f32 %v281, %v361
    %s364 = sld [smem:[#allocation2 + $0x103]]
    %v365 = vstv %s364
    %v366 = vmul.f32 %v365, %v341
    %v367 = vmul.f32 %v365, %v344
    %v368 = vadd.f32 %v286, %v366
    %v369 = vadd.f32 %v287, %v367
    %s370 = scalar_lea.vmem %s0, 24
    %v371 = vld [vmem:[%s370] sm:$0xff]
    %372 = vmatpush.msra.mxu0 0.0
    %373 = vmatpush.msra.mxu0 0.0
    %374 = vmatpush.msra.mxu0 0.0
    %375 = vmatpush.msra.mxu0 0.0
    %376 = vmatpush.msra.mxu0 0.0
    %377 = vmatpush.msra.mxu0 0.0
    %378 = vmatpush.msra.mxu0 0.0
    %379 = vmatpush.msra.mxu0 0.0
    %380 = vmatpush.msra.mxu0 0.0
    %381 = vmatpush.msra.mxu0 0.0
    %382 = vmatpush.msra.mxu0 0.0
    %383 = vmatpush.msra.mxu0 0.0
    %384 = vmatpush.msra.mxu0 0.0
    %385 = vmatpush.msra.mxu0 0.0
    %386 = vmatpush.msra.mxu0 0.0
    %387 = vmatpush.msra.mxu0 %v371
    %388 = vmatmul.f32.gmra.mxu0 %v106
    %v389 = vpop.f32.mrf.mxu0
    %v390 = vadd.f32 %v87, %v389
    %391 = vmatmul.f32.gmra.mxu0 %v109
    %v392 = vpop.f32.mrf.mxu0
    %v393 = vadd.f32 %v92, %v392
    %394 = vmatmul.f32.gmra.mxu0 %v112
    %v395 = vpop.f32.mrf.mxu0
    %v396 = vadd.f32 %v97, %v395
    %397 = vmatmul.f32.gmra.mxu0 %v115
    %v398 = vpop.f32.mrf.mxu0
    %v399 = vadd.f32 %v102, %v398
    %400 = vdwg.mxu0
    %v401 = vmax.f32 %v390, 0.0
    %v402 = vmax.f32 %v393, 0.0
    %v403 = vmax.f32 %v396, 0.0
    %v404 = vmax.f32 %v399, 0.0
    %405 = vmatpush.msra.mxu0 0.0
    %406 = vmatpush.msra.mxu0 0.0
    %407 = vmatpush.msra.mxu0 0.0
    %408 = vmatpush.msra.mxu0 0.0
    %409 = vmatpush.msra.mxu0 0.0
    %410 = vmatpush.msra.mxu0 0.0
    %411 = vmatpush.msra.mxu0 0.0
    %412 = vmatpush.msra.mxu0 0.0
    %413 = vmatpush.msra.mxu0 0.0
    %414 = vmatpush.msra.mxu0 0.0
    %415 = vmatpush.msra.mxu0 0.0
    %416 = vmatpush.msra.mxu0 0.0
    %417 = vmatpush.msra.mxu0 %v404
    %418 = vmatpush.msra.mxu0 %v403
    %419 = vmatpush.msra.mxu0 %v402
    %420 = vmatpush.msra.mxu0 %v401
    %421 = vmatmul.f32.gmra.mxu0 %v162
    %v422 = vpop.f32.mrf.mxu0
    %v423 = vadd.f32 %v153, %v422
    %424 = vmatmul.f32.gmra.mxu0 %v165
    %v425 = vpop.f32.mrf.mxu0
    %v426 = vadd.f32 %v158, %v425
    %427 = vdwg.mxu0
    %s428 = sld [smem:[#allocation2 + $0x180]]
    %v429 = vstv %s428
    %v430 = vmul.f32 %v429, %v423
    %v431 = vmul.f32 %v429, %v426
    %v432 = vadd.f32 %v350, %v430
    %v433 = vadd.f32 %v351, %v431
    %s434 = sld [smem:[#allocation2 + $0x181]]
    %v435 = vstv %s434
    %v436 = vmul.f32 %v435, %v423
    %v437 = vmul.f32 %v435, %v426
    %v438 = vadd.f32 %v356, %v436
    %v439 = vadd.f32 %v357, %v437
    %s440 = sld [smem:[#allocation2 + $0x182]]
    %v441 = vstv %s440
    %v442 = vmul.f32 %v441, %v423
    %v443 = vmul.f32 %v441, %v426
    %v444 = vadd.f32 %v362, %v442
    %v445 = vadd.f32 %v363, %v443
    %s446 = sld [smem:[#allocation2 + $0x183]]
    %v447 = vstv %s446
    %v448 = vmul.f32 %v447, %v423
    %v449 = vmul.f32 %v447, %v426
    %v450 = vadd.f32 %v368, %v448
    %v451 = vadd.f32 %v369, %v449
    %s452 = scalar_lea.vmem %s0, 32
    %v453 = vld [vmem:[%s452] sm:$0xff]
    %454 = vmatpush.msra.mxu0 0.0
    %455 = vmatpush.msra.mxu0 0.0
    %456 = vmatpush.msra.mxu0 0.0
    %457 = vmatpush.msra.mxu0 0.0
    %458 = vmatpush.msra.mxu0 0.0
    %459 = vmatpush.msra.mxu0 0.0
    %460 = vmatpush.msra.mxu0 0.0
    %461 = vmatpush.msra.mxu0 0.0
    %462 = vmatpush.msra.mxu0 0.0
    %463 = vmatpush.msra.mxu0 0.0
    %464 = vmatpush.msra.mxu0 0.0
    %465 = vmatpush.msra.mxu0 0.0
    %466 = vmatpush.msra.mxu0 0.0
    %467 = vmatpush.msra.mxu0 0.0
    %468 = vmatpush.msra.mxu0 0.0
    %469 = vmatpush.msra.mxu0 %v453
    %470 = vmatmul.f32.gmra.mxu0 %v106
    %v471 = vpop.f32.mrf.mxu0
    %v472 = vadd.f32 %v87, %v471
    %473 = vmatmul.f32.gmra.mxu0 %v109
    %v474 = vpop.f32.mrf.mxu0
    %v475 = vadd.f32 %v92, %v474
    %476 = vmatmul.f32.gmra.mxu0 %v112
    %v477 = vpop.f32.mrf.mxu0
    %v478 = vadd.f32 %v97, %v477
    %479 = vmatmul.f32.gmra.mxu0 %v115
    %v480 = vpop.f32.mrf.mxu0
    %v481 = vadd.f32 %v102, %v480
    %482 = vdwg.mxu0
    %v483 = vmax.f32 %v472, 0.0
    %v484 = vmax.f32 %v475, 0.0
    %v485 = vmax.f32 %v478, 0.0
    %v486 = vmax.f32 %v481, 0.0
    %487 = vmatpush.msra.mxu0 0.0
    %488 = vmatpush.msra.mxu0 0.0
    %489 = vmatpush.msra.mxu0 0.0
    %490 = vmatpush.msra.mxu0 0.0
    %491 = vmatpush.msra.mxu0 0.0
    %492 = vmatpush.msra.mxu0 0.0
    %493 = vmatpush.msra.mxu0 0.0
    %494 = vmatpush.msra.mxu0 0.0
    %495 = vmatpush.msra.mxu0 0.0
    %496 = vmatpush.msra.mxu0 0.0
    %497 = vmatpush.msra.mxu0 0.0
    %498 = vmatpush.msra.mxu0 0.0
    %499 = vmatpush.msra.mxu0 %v486
    %500 = vmatpush.msra.mxu0 %v485
    %501 = vmatpush.msra.mxu0 %v484
    %502 = vmatpush.msra.mxu0 %v483
    %503 = vmatmul.f32.gmra.mxu0 %v162
    %v504 = vpop.f32.mrf.mxu0
    %v505 = vadd.f32 %v153, %v504
    %506 = vmatmul.f32.gmra.mxu0 %v165
    %v507 = vpop.f32.mrf.mxu0
    %v508 = vadd.f32 %v158, %v507
    %509 = vdwg.mxu0
    %s510 = sld [smem:[#allocation2 + $0x200]]
    %v511 = vstv %s510
    %v512 = vmul.f32 %v511, %v505
    %v513 = vmul.f32 %v511, %v508
    %v514 = vadd.f32 %v432, %v512
    %v515 = vadd.f32 %v433, %v513
    %s516 = sld [smem:[#allocation2 + $0x201]]
    %v517 = vstv %s516
    %v518 = vmul.f32 %v517, %v505
    %v519 = vmul.f32 %v517, %v508
    %v520 = vadd.f32 %v438, %v518
    %v521 = vadd.f32 %v439, %v519
    %s522 = sld [smem:[#allocation2 + $0x202]]
    %v523 = vstv %s522
    %v524 = vmul.f32 %v523, %v505
    %v525 = vmul.f32 %v523, %v508
    %v526 = vadd.f32 %v444, %v524
    %v527 = vadd.f32 %v445, %v525
    %s528 = sld [smem:[#allocation2 + $0x203]]
    %v529 = vstv %s528
    %v530 = vmul.f32 %v529, %v505
    %v531 = vmul.f32 %v529, %v508
    %v532 = vadd.f32 %v450, %v530
    %v533 = vadd.f32 %v451, %v531
    %s534 = scalar_lea.vmem %s0, 40
    %v535 = vld [vmem:[%s534] sm:$0xff]
    %536 = vmatpush.msra.mxu0 0.0
    %537 = vmatpush.msra.mxu0 0.0
    %538 = vmatpush.msra.mxu0 0.0
    %539 = vmatpush.msra.mxu0 0.0
    %540 = vmatpush.msra.mxu0 0.0
    %541 = vmatpush.msra.mxu0 0.0
    %542 = vmatpush.msra.mxu0 0.0
    %543 = vmatpush.msra.mxu0 0.0
    %544 = vmatpush.msra.mxu0 0.0
    %545 = vmatpush.msra.mxu0 0.0
    %546 = vmatpush.msra.mxu0 0.0
    %547 = vmatpush.msra.mxu0 0.0
    %548 = vmatpush.msra.mxu0 0.0
    %549 = vmatpush.msra.mxu0 0.0
    %550 = vmatpush.msra.mxu0 0.0
    %551 = vmatpush.msra.mxu0 %v535
    %552 = vmatmul.f32.gmra.mxu0 %v106
    %v553 = vpop.f32.mrf.mxu0
    %v554 = vadd.f32 %v87, %v553
    %555 = vmatmul.f32.gmra.mxu0 %v109
    %v556 = vpop.f32.mrf.mxu0
    %v557 = vadd.f32 %v92, %v556
    %558 = vmatmul.f32.gmra.mxu0 %v112
    %v559 = vpop.f32.mrf.mxu0
    %v560 = vadd.f32 %v97, %v559
    %561 = vmatmul.f32.gmra.mxu0 %v115
    %v562 = vpop.f32.mrf.mxu0
    %v563 = vadd.f32 %v102, %v562
    %564 = vdwg.mxu0
    %v565 = vmax.f32 %v554, 0.0
    %v566 = vmax.f32 %v557, 0.0
    %v567 = vmax.f32 %v560, 0.0
    %v568 = vmax.f32 %v563, 0.0
    %569 = vmatpush.msra.mxu0 0.0
    %570 = vmatpush.msra.mxu0 0.0
    %571 = vmatpush.msra.mxu0 0.0
    %572 = vmatpush.msra.mxu0 0.0
    %573 = vmatpush.msra.mxu0 0.0
    %574 = vmatpush.msra.mxu0 0.0
    %575 = vmatpush.msra.mxu0 0.0
    %576 = vmatpush.msra.mxu0 0.0
    %577 = vmatpush.msra.mxu0 0.0
    %578 = vmatpush.msra.mxu0 0.0
    %579 = vmatpush.msra.mxu0 0.0
    %580 = vmatpush.msra.mxu0 0.0
    %581 = vmatpush.msra.mxu0 %v568
    %582 = vmatpush.msra.mxu0 %v567
    %583 = vmatpush.msra.mxu0 %v566
    %584 = vmatpush.msra.mxu0 %v565
    %585 = vmatmul.f32.gmra.mxu0 %v162
    %v586 = vpop.f32.mrf.mxu0
    %v587 = vadd.f32 %v153, %v586
    %588 = vmatmul.f32.gmra.mxu0 %v165
    %v589 = vpop.f32.mrf.mxu0
    %v590 = vadd.f32 %v158, %v589
    %591 = vdwg.mxu0
    %s592 = sld [smem:[#allocation2 + $0x280]]
    %v593 = vstv %s592
    %v594 = vmul.f32 %v593, %v587
    %v595 = vmul.f32 %v593, %v590
    %v596 = vadd.f32 %v514, %v594
    %v597 = vadd.f32 %v515, %v595
    %s598 = sld [smem:[#allocation2 + $0x281]]
    %v599 = vstv %s598
    %v600 = vmul.f32 %v599, %v587
    %v601 = vmul.f32 %v599, %v590
    %v602 = vadd.f32 %v520, %v600
    %v603 = vadd.f32 %v521, %v601
    %s604 = sld [smem:[#allocation2 + $0x282]]
    %v605 = vstv %s604
    %v606 = vmul.f32 %v605, %v587
    %v607 = vmul.f32 %v605, %v590
    %v608 = vadd.f32 %v526, %v606
    %v609 = vadd.f32 %v527, %v607
    %s610 = sld [smem:[#allocation2 + $0x283]]
    %v611 = vstv %s610
    %v612 = vmul.f32 %v611, %v587
    %v613 = vmul.f32 %v611, %v590
    %v614 = vadd.f32 %v532, %v612
    %v615 = vadd.f32 %v533, %v613
    %s616 = scalar_lea.vmem %s0, 48
    %v617 = vld [vmem:[%s616] sm:$0xff]
    %618 = vmatpush.msra.mxu0 0.0
    %619 = vmatpush.msra.mxu0 0.0
    %620 = vmatpush.msra.mxu0 0.0
    %621 = vmatpush.msra.mxu0 0.0
    %622 = vmatpush.msra.mxu0 0.0
    %623 = vmatpush.msra.mxu0 0.0
    %624 = vmatpush.msra.mxu0 0.0
    %625 = vmatpush.msra.mxu0 0.0
    %626 = vmatpush.msra.mxu0 0.0
    %627 = vmatpush.msra.mxu0 0.0
    %628 = vmatpush.msra.mxu0 0.0
    %629 = vmatpush.msra.mxu0 0.0
    %630 = vmatpush.msra.mxu0 0.0
    %631 = vmatpush.msra.mxu0 0.0
    %632 = vmatpush.msra.mxu0 0.0
    %633 = vmatpush.msra.mxu0 %v617
    %634 = vmatmul.f32.gmra.mxu0 %v106
    %v635 = vpop.f32.mrf.mxu0
    %v636 = vadd.f32 %v87, %v635
    %637 = vmatmul.f32.gmra.mxu0 %v109
    %v638 = vpop.f32.mrf.mxu0
    %v639 = vadd.f32 %v92, %v638
    %640 = vmatmul.f32.gmra.mxu0 %v112
    %v641 = vpop.f32.mrf.mxu0
    %v642 = vadd.f32 %v97, %v641
    %643 = vmatmul.f32.gmra.mxu0 %v115
    %v644 = vpop.f32.mrf.mxu0
    %v645 = vadd.f32 %v102, %v644
    %646 = vdwg.mxu0
    %v647 = vmax.f32 %v636, 0.0
    %v648 = vmax.f32 %v639, 0.0
    %v649 = vmax.f32 %v642, 0.0
    %v650 = vmax.f32 %v645, 0.0
    %651 = vmatpush.msra.mxu0 0.0
    %652 = vmatpush.msra.mxu0 0.0
    %653 = vmatpush.msra.mxu0 0.0
    %654 = vmatpush.msra.mxu0 0.0
    %655 = vmatpush.msra.mxu0 0.0
    %656 = vmatpush.msra.mxu0 0.0
    %657 = vmatpush.msra.mxu0 0.0
    %658 = vmatpush.msra.mxu0 0.0
    %659 = vmatpush.msra.mxu0 0.0
    %660 = vmatpush.msra.mxu0 0.0
    %661 = vmatpush.msra.mxu0 0.0
    %662 = vmatpush.msra.mxu0 0.0
    %663 = vmatpush.msra.mxu0 %v650
    %664 = vmatpush.msra.mxu0 %v649
    %665 = vmatpush.msra.mxu0 %v648
    %666 = vmatpush.msra.mxu0 %v647
    %667 = vmatmul.f32.gmra.mxu0 %v162
    %v668 = vpop.f32.mrf.mxu0
    %v669 = vadd.f32 %v153, %v668
    %670 = vmatmul.f32.gmra.mxu0 %v165
    %v671 = vpop.f32.mrf.mxu0
    %v672 = vadd.f32 %v158, %v671
    %673 = vdwg.mxu0
    %s674 = sld [smem:[#allocation2 + $0x300]]
    %v675 = vstv %s674
    %v676 = vmul.f32 %v675, %v669
    %v677 = vmul.f32 %v675, %v672
    %v678 = vadd.f32 %v596, %v676
    %v679 = vadd.f32 %v597, %v677
    %s680 = sld [smem:[#allocation2 + $0x301]]
    %v681 = vstv %s680
    %v682 = vmul.f32 %v681, %v669
    %v683 = vmul.f32 %v681, %v672
    %v684 = vadd.f32 %v602, %v682
    %v685 = vadd.f32 %v603, %v683
    %s686 = sld [smem:[#allocation2 + $0x302]]
    %v687 = vstv %s686
    %v688 = vmul.f32 %v687, %v669
    %v689 = vmul.f32 %v687, %v672
    %v690 = vadd.f32 %v608, %v688
    %v691 = vadd.f32 %v609, %v689
    %s692 = sld [smem:[#allocation2 + $0x303]]
    %v693 = vstv %s692
    %v694 = vmul.f32 %v693, %v669
    %v695 = vmul.f32 %v693, %v672
    %v696 = vadd.f32 %v614, %v694
    %v697 = vadd.f32 %v615, %v695
    %s698 = scalar_lea.vmem %s0, 56
    %v699 = vld [vmem:[%s698] sm:$0xff]
    %700 = vmatpush.msra.mxu0 0.0
    %701 = vmatpush.msra.mxu0 0.0
    %702 = vmatpush.msra.mxu0 0.0
    %703 = vmatpush.msra.mxu0 0.0
    %704 = vmatpush.msra.mxu0 0.0
    %705 = vmatpush.msra.mxu0 0.0
    %706 = vmatpush.msra.mxu0 0.0
    %707 = vmatpush.msra.mxu0 0.0
    %708 = vmatpush.msra.mxu0 0.0
    %709 = vmatpush.msra.mxu0 0.0
    %710 = vmatpush.msra.mxu0 0.0
    %711 = vmatpush.msra.mxu0 0.0
    %712 = vmatpush.msra.mxu0 0.0
    %713 = vmatpush.msra.mxu0 0.0
    %714 = vmatpush.msra.mxu0 0.0
    %715 = vmatpush.msra.mxu0 %v699
    %716 = vmatmul.f32.gmra.mxu0 %v106
    %v717 = vpop.f32.mrf.mxu0
    %v718 = vadd.f32 %v87, %v717
    %719 = vmatmul.f32.gmra.mxu0 %v109
    %v720 = vpop.f32.mrf.mxu0
    %v721 = vadd.f32 %v92, %v720
    %722 = vmatmul.f32.gmra.mxu0 %v112
    %v723 = vpop.f32.mrf.mxu0
    %v724 = vadd.f32 %v97, %v723
    %725 = vmatmul.f32.gmra.mxu0 %v115
    %v726 = vpop.f32.mrf.mxu0
    %v727 = vadd.f32 %v102, %v726
    %728 = vdwg.mxu0
    %v729 = vmax.f32 %v718, 0.0
    %v730 = vmax.f32 %v721, 0.0
    %v731 = vmax.f32 %v724, 0.0
    %v732 = vmax.f32 %v727, 0.0
    %733 = vmatpush.msra.mxu0 0.0
    %734 = vmatpush.msra.mxu0 0.0
    %735 = vmatpush.msra.mxu0 0.0
    %736 = vmatpush.msra.mxu0 0.0
    %737 = vmatpush.msra.mxu0 0.0
    %738 = vmatpush.msra.mxu0 0.0
    %739 = vmatpush.msra.mxu0 0.0
    %740 = vmatpush.msra.mxu0 0.0
    %741 = vmatpush.msra.mxu0 0.0
    %742 = vmatpush.msra.mxu0 0.0
    %743 = vmatpush.msra.mxu0 0.0
    %744 = vmatpush.msra.mxu0 0.0
    %745 = vmatpush.msra.mxu0 %v732
    %746 = vmatpush.msra.mxu0 %v731
    %747 = vmatpush.msra.mxu0 %v730
    %748 = vmatpush.msra.mxu0 %v729
    %749 = vmatmul.f32.gmra.mxu0 %v162
    %v750 = vpop.f32.mrf.mxu0
    %v751 = vadd.f32 %v153, %v750
    %752 = vmatmul.f32.gmra.mxu0 %v165
    %v753 = vpop.f32.mrf.mxu0
    %v754 = vadd.f32 %v158, %v753
    %755 = vdwg.mxu0
    %s756 = sld [smem:[#allocation2 + $0x380]]
    %v757 = vstv %s756
    %v758 = vmul.f32 %v757, %v751
    %v759 = vmul.f32 %v757, %v754
    %v760 = vadd.f32 %v678, %v758
    %v761 = vadd.f32 %v679, %v759
    %s762 = sld [smem:[#allocation2 + $0x381]]
    %v763 = vstv %s762
    %v764 = vmul.f32 %v763, %v751
    %v765 = vmul.f32 %v763, %v754
    %v766 = vadd.f32 %v684, %v764
    %v767 = vadd.f32 %v685, %v765
    %s768 = sld [smem:[#allocation2 + $0x382]]
    %v769 = vstv %s768
    %v770 = vmul.f32 %v769, %v751
    %v771 = vmul.f32 %v769, %v754
    %v772 = vadd.f32 %v690, %v770
    %v773 = vadd.f32 %v691, %v771
    %s774 = sld [smem:[#allocation2 + $0x383]]
    %v775 = vstv %s774
    %v776 = vmul.f32 %v775, %v751
    %v777 = vmul.f32 %v775, %v754
    %v778 = vadd.f32 %v696, %v776
    %v779 = vadd.f32 %v697, %v777
    %s780 = sld [smem:[#allocation4]]
    %v781 = vstv %s780
    %v782 = vadd.f32 %v760, %v781
    %v783 = vadd.f32 %v761, %v781
    %785 = vset.pattern.permute.xlu0 0
    %786 = vperm.xlu0 %785, %v77
    %v787 = vpop.permute.xlu0 %786
    %790 = vset.pattern.permute.xlu0 0
    %791 = vperm.xlu0 %790, %v78
    %v792 = vpop.permute.xlu0 %791
    %vm794 = vcmask 130048
    %v796 = vsel %vm794, %v75, 0
    %v799 = vsel %vm794, %v76, 0
    %801 = vmatpush.msra.mxu0 0.0
    %802 = vmatpush.msra.mxu0 0.0
    %803 = vmatpush.msra.mxu0 0.0
    %804 = vmatpush.msra.mxu0 0.0
    %805 = vmatpush.msra.mxu0 0.0
    %806 = vmatpush.msra.mxu0 0.0
    %807 = vmatpush.msra.mxu0 0.0
    %808 = vmatpush.msra.mxu0 0.0
    %809 = vmatpush.msra.mxu0 0.0
    %810 = vmatpush.msra.mxu0 0.0
    %811 = vmatpush.msra.mxu0 0.0
    %812 = vmatpush.msra.mxu0 0.0
    %813 = vmatpush.msra.mxu0 0.0
    %814 = vmatpush.msra.mxu0 0.0
    %815 = vmatpush.msra.mxu0 %v783
    %816 = vmatpush.msra.mxu0 %v782
    %817 = vmatmul.f32.gmra.mxu0 %v796
    %v818 = vpop.f32.mrf.mxu0
    %v819 = vadd.f32 %v787, %v818
    %820 = vmatmul.f32.gmra.mxu0 %v799
    %v821 = vpop.f32.mrf.mxu0
    %v822 = vadd.f32 %v792, %v821
    %823 = vdwg.mxu0
    %v824 = vmax.f32 %v819, 0.0
    %v825 = vmax.f32 %v822, 0.0
    %827 = vset.pattern.permute.xlu0 0
    %828 = vperm.xlu0 %827, %v81
    %v829 = vpop.permute.xlu0 %828
    %832 = vset.pattern.permute.xlu0 0
    %833 = vperm.xlu0 %832, %v82
    %v834 = vpop.permute.xlu0 %833
    %v837 = vsel %vm794, %v79, 0
    %v840 = vsel %vm794, %v80, 0
    %842 = vmatpush.msra.mxu0 0.0
    %843 = vmatpush.msra.mxu0 0.0
    %844 = vmatpush.msra.mxu0 0.0
    %845 = vmatpush.msra.mxu0 0.0
    %846 = vmatpush.msra.mxu0 0.0
    %847 = vmatpush.msra.mxu0 0.0
    %848 = vmatpush.msra.mxu0 0.0
    %849 = vmatpush.msra.mxu0 0.0
    %850 = vmatpush.msra.mxu0 0.0
    %851 = vmatpush.msra.mxu0 0.0
    %852 = vmatpush.msra.mxu0 0.0
    %853 = vmatpush.msra.mxu0 0.0
    %854 = vmatpush.msra.mxu0 0.0
    %855 = vmatpush.msra.mxu0 0.0
    %856 = vmatpush.msra.mxu0 %v825
    %857 = vmatpush.msra.mxu0 %v824
    %858 = vmatmul.f32.gmra.mxu0 %v837
    %v859 = vpop.f32.mrf.mxu0
    %v860 = vadd.f32 %v829, %v859
    %861 = vmatmul.f32.gmra.mxu0 %v840
    %v862 = vpop.f32.mrf.mxu0
    %v863 = vadd.f32 %v834, %v862
    %864 = vdwg.mxu0
    %865 = vst [vmem:[%s11] sm:$0xff] %v860
    %866 = vst [vmem:[%s11 + $0x8] sm:$0xff] %v863
    %s867 = sld [smem:[#allocation4 + $0x1]]
    %v868 = vstv %s867
    %v869 = vadd.f32 %v766, %v868
    %v870 = vadd.f32 %v767, %v868
    %871 = vmatpush.msra.mxu0 0.0
    %872 = vmatpush.msra.mxu0 0.0
    %873 = vmatpush.msra.mxu0 0.0
    %874 = vmatpush.msra.mxu0 0.0
    %875 = vmatpush.msra.mxu0 0.0
    %876 = vmatpush.msra.mxu0 0.0
    %877 = vmatpush.msra.mxu0 0.0
    %878 = vmatpush.msra.mxu0 0.0
    %879 = vmatpush.msra.mxu0 0.0
    %880 = vmatpush.msra.mxu0 0.0
    %881 = vmatpush.msra.mxu0 0.0
    %882 = vmatpush.msra.mxu0 0.0
    %883 = vmatpush.msra.mxu0 0.0
    %884 = vmatpush.msra.mxu0 0.0
    %885 = vmatpush.msra.mxu0 %v870
    %886 = vmatpush.msra.mxu0 %v869
    %887 = vmatmul.f32.gmra.mxu0 %v796
    %v888 = vpop.f32.mrf.mxu0
    %v889 = vadd.f32 %v787, %v888
    %890 = vmatmul.f32.gmra.mxu0 %v799
    %v891 = vpop.f32.mrf.mxu0
    %v892 = vadd.f32 %v792, %v891
    %893 = vdwg.mxu0
    %v894 = vmax.f32 %v889, 0.0
    %v895 = vmax.f32 %v892, 0.0
    %896 = vmatpush.msra.mxu0 0.0
    %897 = vmatpush.msra.mxu0 0.0
    %898 = vmatpush.msra.mxu0 0.0
    %899 = vmatpush.msra.mxu0 0.0
    %900 = vmatpush.msra.mxu0 0.0
    %901 = vmatpush.msra.mxu0 0.0
    %902 = vmatpush.msra.mxu0 0.0
    %903 = vmatpush.msra.mxu0 0.0
    %904 = vmatpush.msra.mxu0 0.0
    %905 = vmatpush.msra.mxu0 0.0
    %906 = vmatpush.msra.mxu0 0.0
    %907 = vmatpush.msra.mxu0 0.0
    %908 = vmatpush.msra.mxu0 0.0
    %909 = vmatpush.msra.mxu0 0.0
    %910 = vmatpush.msra.mxu0 %v895
    %911 = vmatpush.msra.mxu0 %v894
    %912 = vmatmul.f32.gmra.mxu0 %v837
    %v913 = vpop.f32.mrf.mxu0
    %v914 = vadd.f32 %v829, %v913
    %915 = vmatmul.f32.gmra.mxu0 %v840
    %v916 = vpop.f32.mrf.mxu0
    %v917 = vadd.f32 %v834, %v916
    %918 = vdwg.mxu0
    %s919 = scalar_lea.vmem %s11, 16
    %920 = vst [vmem:[%s919] sm:$0xff] %v914
    %921 = vst [vmem:[%s919 + $0x8] sm:$0xff] %v917
    %s922 = sld [smem:[#allocation4 + $0x2]]
    %v923 = vstv %s922
    %v924 = vadd.f32 %v772, %v923
    %v925 = vadd.f32 %v773, %v923
    %926 = vmatpush.msra.mxu0 0.0
    %927 = vmatpush.msra.mxu0 0.0
    %928 = vmatpush.msra.mxu0 0.0
    %929 = vmatpush.msra.mxu0 0.0
    %930 = vmatpush.msra.mxu0 0.0
    %931 = vmatpush.msra.mxu0 0.0
    %932 = vmatpush.msra.mxu0 0.0
    %933 = vmatpush.msra.mxu0 0.0
    %934 = vmatpush.msra.mxu0 0.0
    %935 = vmatpush.msra.mxu0 0.0
    %936 = vmatpush.msra.mxu0 0.0
    %937 = vmatpush.msra.mxu0 0.0
    %938 = vmatpush.msra.mxu0 0.0
    %939 = vmatpush.msra.mxu0 0.0
    %940 = vmatpush.msra.mxu0 %v925
    %941 = vmatpush.msra.mxu0 %v924
    %942 = vmatmul.f32.gmra.mxu0 %v796
    %v943 = vpop.f32.mrf.mxu0
    %v944 = vadd.f32 %v787, %v943
    %945 = vmatmul.f32.gmra.mxu0 %v799
    %v946 = vpop.f32.mrf.mxu0
    %v947 = vadd.f32 %v792, %v946
    %948 = vdwg.mxu0
    %v949 = vmax.f32 %v944, 0.0
    %v950 = vmax.f32 %v947, 0.0
    %951 = vmatpush.msra.mxu0 0.0
    %952 = vmatpush.msra.mxu0 0.0
    %953 = vmatpush.msra.mxu0 0.0
    %954 = vmatpush.msra.mxu0 0.0
    %955 = vmatpush.msra.mxu0 0.0
    %956 = vmatpush.msra.mxu0 0.0
    %957 = vmatpush.msra.mxu0 0.0
    %958 = vmatpush.msra.mxu0 0.0
    %959 = vmatpush.msra.mxu0 0.0
    %960 = vmatpush.msra.mxu0 0.0
    %961 = vmatpush.msra.mxu0 0.0
    %962 = vmatpush.msra.mxu0 0.0
    %963 = vmatpush.msra.mxu0 0.0
    %964 = vmatpush.msra.mxu0 0.0
    %965 = vmatpush.msra.mxu0 %v950
    %966 = vmatpush.msra.mxu0 %v949
    %967 = vmatmul.f32.gmra.mxu0 %v837
    %v968 = vpop.f32.mrf.mxu0
    %v969 = vadd.f32 %v829, %v968
    %970 = vmatmul.f32.gmra.mxu0 %v840
    %v971 = vpop.f32.mrf.mxu0
    %v972 = vadd.f32 %v834, %v971
    %973 = vdwg.mxu0
    %s974 = scalar_lea.vmem %s11, 32
    %975 = vst [vmem:[%s974] sm:$0xff] %v969
    %976 = vst [vmem:[%s974 + $0x8] sm:$0xff] %v972
    %s977 = sld [smem:[#allocation4 + $0x3]]
    %v978 = vstv %s977
    %v979 = vadd.f32 %v778, %v978
    %v980 = vadd.f32 %v779, %v978
    %981 = vmatpush.msra.mxu0 0.0
    %982 = vmatpush.msra.mxu0 0.0
    %983 = vmatpush.msra.mxu0 0.0
    %984 = vmatpush.msra.mxu0 0.0
    %985 = vmatpush.msra.mxu0 0.0
    %986 = vmatpush.msra.mxu0 0.0
    %987 = vmatpush.msra.mxu0 0.0
    %988 = vmatpush.msra.mxu0 0.0
    %989 = vmatpush.msra.mxu0 0.0
    %990 = vmatpush.msra.mxu0 0.0
    %991 = vmatpush.msra.mxu0 0.0
    %992 = vmatpush.msra.mxu0 0.0
    %993 = vmatpush.msra.mxu0 0.0
    %994 = vmatpush.msra.mxu0 0.0
    %995 = vmatpush.msra.mxu0 %v980
    %996 = vmatpush.msra.mxu0 %v979
    %997 = vmatmul.f32.gmra.mxu0 %v796
    %v998 = vpop.f32.mrf.mxu0
    %v999 = vadd.f32 %v787, %v998
    %1000 = vmatmul.f32.gmra.mxu0 %v799
    %v1001 = vpop.f32.mrf.mxu0
    %v1002 = vadd.f32 %v792, %v1001
    %1003 = vdwg.mxu0
    %v1004 = vmax.f32 %v999, 0.0
    %v1005 = vmax.f32 %v1002, 0.0
    %1006 = vmatpush.msra.mxu0 0.0
    %1007 = vmatpush.msra.mxu0 0.0
    %1008 = vmatpush.msra.mxu0 0.0
    %1009 = vmatpush.msra.mxu0 0.0
    %1010 = vmatpush.msra.mxu0 0.0
    %1011 = vmatpush.msra.mxu0 0.0
    %1012 = vmatpush.msra.mxu0 0.0
    %1013 = vmatpush.msra.mxu0 0.0
    %1014 = vmatpush.msra.mxu0 0.0
    %1015 = vmatpush.msra.mxu0 0.0
    %1016 = vmatpush.msra.mxu0 0.0
    %1017 = vmatpush.msra.mxu0 0.0
    %1018 = vmatpush.msra.mxu0 0.0
    %1019 = vmatpush.msra.mxu0 0.0
    %1020 = vmatpush.msra.mxu0 %v1005
    %1021 = vmatpush.msra.mxu0 %v1004
    %1022 = vmatmul.f32.gmra.mxu0 %v837
    %v1023 = vpop.f32.mrf.mxu0
    %v1024 = vadd.f32 %v829, %v1023
    %1025 = vmatmul.f32.gmra.mxu0 %v840
    %v1026 = vpop.f32.mrf.mxu0
    %v1027 = vadd.f32 %v834, %v1026
    %1028 = vdwg.mxu0
    %s1029 = scalar_lea.vmem %s11, 48
    %1030 = vst [vmem:[%s1029] sm:$0xff] %v1024
    %1031 = vst [vmem:[%s1029 + $0x8] sm:$0xff] %v1027
    // Predicated region
    $region54: #{mmwp_forward.2} parent=1 // pred_check
      _
    $region55: #{mmwp_forward.2} parent=1 // pred_check_branch
      %1033 = sbr.rel (0) target = $region57
    $region56: #{mmwp_forward.2} parent=1 // pred_region
      _
    $region57: #{mmwp_forward.2} parent=1 // pred_fallthru
      _
    // Predicated region
    $region58: #{mmwp_forward.2} parent=1 // pred_check
      _
    $region59: #{mmwp_forward.2} parent=1 // pred_check_branch
      %1035 = sbr.rel (0) target = $region61
    $region60: #{mmwp_forward.2} parent=1 // pred_region
      _
    $region61: #{mmwp_forward.2} parent=1 // pred_fallthru
      _
    %1036 = vsyncpa [#allocation3], 1
    %1037 = vsyncpa [#allocation5], 1

// kernel: mmwp_forward.3
$region0: #{mmwp_forward.3}
  #allocation0 [shape = 'u32[]', space=smem, size = 0x4, offset = 0x4, fixed_abs, tag = 'smem constant byte address 0x4 - core index']
  #allocation1 [shape = 'u32[72,128]{1,0:T(1,128)}', space=vmem, size = 0x9000, scoped, tag = 'internal scratch']
  %s0 = inlined_call_operand.vmem [shape: f32[2,8,12,4], index: 0, kind: input, shape index: {}]
  %s1 = inlined_call_operand.vmem [shape: f32[12,12], index: 1, kind: input, shape index: {}]
  %s2 = inlined_call_operand.vmem [shape: f32[4,32], index: 2, kind: input, shape index: {}]
  %s3 = inlined_call_operand.vmem [shape: f32[1,32], index: 3, kind: input, shape index: {}]
  %s4 = inlined_call_operand.vmem [shape: f32[32,16], index: 4, kind: input, shape index: {}]
  %s5 = inlined_call_operand.vmem [shape: f32[1,16], index: 5, kind: input, shape index: {}]
  %s6 = inlined_call_operand.vmem [shape: f32[10,12], index: 6, kind: input, shape index: {}]
  %s7 = inlined_call_operand.vmem [shape: f32[10,1], index: 7, kind: input, shape index: {}]
  %s8 = inlined_call_operand.vmem [shape: f32[16,16], index: 8, kind: input, shape index: {}]
  %s9 = inlined_call_operand.vmem [shape: f32[1,16], index: 9, kind: input, shape index: {}]
  %s10 = inlined_call_operand.vmem [shape: f32[16,16], index: 10, kind: input, shape index: {}]
  %s11 = inlined_call_operand.vmem [shape: f32[1,16], index: 11, kind: input, shape index: {}]
  %s12 = inlined_call_operand.vmem [shape: f32[8,4], index: 12, kind: input, shape index: {}]
  %s13 = inlined_call_operand.vmem [shape: f32[1,4], index: 13, kind: input, shape index: {}]
  %s14 = inlined_call_operand.vmem [shape: f32[2,4,10,16], index: 14, kind: output, shape index: {}]
  %s15 = sld [smem:[#allocation0]]
  $region74: #{mmwp_forward.3} parent=0
    _
  %s17 = ssub.s32 1, %s15
  %s18 = scalar_select 0, %s17, %s15
  $region1: #{mmwp_forward.3} parent=0
    #allocation2 [shape = 'u8[4096]{0}', space=smem, size = 0x1000, scoped, tag = 'input window, operand 12, single buffered']
    #allocation3 [shape = 's32[1]{0}', space=sflag, size = 0x4, scoped, tag = 'scoped memory for mmwp_forward.3']
    #allocation4 [shape = 'u8[512]{0}', space=smem, size = 0x200, scoped, tag = 'input window, operand 13, single buffered']
    #allocation5 [shape = 's32[1]{0}', space=sflag, size = 0x4, scoped, tag = 'scoped memory for mmwp_forward.3']
    %19 = vsyncpa [#allocation3], 0
    %20 = vsyncpa [#allocation5], 0
    // Predicated region
    $region2: #{mmwp_forward.3} parent=1 // pred_check
      _
    $region3: #{mmwp_forward.3} parent=1 // pred_check_branch
      %22 = sbr.rel (0) target = $region5
    $region4: #{mmwp_forward.3} parent=1 // pred_region
      _
    $region5: #{mmwp_forward.3} parent=1 // pred_fallthru
      _
    // Predicated region
    $region6: #{mmwp_forward.3} parent=1 // pred_check
      _
    $region7: #{mmwp_forward.3} parent=1 // pred_check_branch
      %24 = sbr.rel (0) target = $region9
    $region8: #{mmwp_forward.3} parent=1 // pred_region
      _
    $region9: #{mmwp_forward.3} parent=1 // pred_fallthru
      _
    // Predicated region
    $region10: #{mmwp_forward.3} parent=1 // pred_check
      _
    $region11: #{mmwp_forward.3} parent=1 // pred_check_branch
      %26 = sbr.rel (0) target = $region13
    $region12: #{mmwp_forward.3} parent=1 // pred_region
      _
    $region13: #{mmwp_forward.3} parent=1 // pred_fallthru
      _
    // Predicated region
    $region14: #{mmwp_forward.3} parent=1 // pred_check
      _
    $region15: #{mmwp_forward.3} parent=1 // pred_check_branch
      %28 = sbr.rel (0) target = $region17
    $region16: #{mmwp_forward.3} parent=1 // pred_region
      _
    $region17: #{mmwp_forward.3} parent=1 // pred_fallthru
      _
    // Predicated region
    $region18: #{mmwp_forward.3} parent=1 // pred_check
      _
    $region19: #{mmwp_forward.3} parent=1 // pred_check_branch
      %30 = sbr.rel (0) target = $region21
    $region20: #{mmwp_forward.3} parent=1 // pred_region
      _
    $region21: #{mmwp_forward.3} parent=1 // pred_fallthru
      _
    // Predicated region
    $region22: #{mmwp_forward.3} parent=1 // pred_check
      _
    $region23: #{mmwp_forward.3} parent=1 // pred_check_branch
      %32 = sbr.rel (0) target = $region25
    $region24: #{mmwp_forward.3} parent=1 // pred_region
      _
    $region25: #{mmwp_forward.3} parent=1 // pred_fallthru
      _
    // Predicated region
    $region26: #{mmwp_forward.3} parent=1 // pred_check
      _
    $region27: #{mmwp_forward.3} parent=1 // pred_check_branch
      %34 = sbr.rel (0) target = $region29
    $region28: #{mmwp_forward.3} parent=1 // pred_region
      _
    $region29: #{mmwp_forward.3} parent=1 // pred_fallthru
      _
    // Predicated region
    $region30: #{mmwp_forward.3} parent=1 // pred_check
      _
    $region31: #{mmwp_forward.3} parent=1 // pred_check_branch
      %36 = sbr.rel (0) target = $region33
    $region32: #{mmwp_forward.3} parent=1 // pred_region
      _
    $region33: #{mmwp_forward.3} parent=1 // pred_fallthru
      _
    // Predicated region
    $region34: #{mmwp_forward.3} parent=1 // pred_check
      _
    $region35: #{mmwp_forward.3} parent=1 // pred_check_branch
      %38 = sbr.rel (0) target = $region37
    $region36: #{mmwp_forward.3} parent=1 // pred_region
      _
    $region37: #{mmwp_forward.3} parent=1 // pred_fallthru
      _
    // Predicated region
    $region38: #{mmwp_forward.3} parent=1 // pred_check
      _
    $region39: #{mmwp_forward.3} parent=1 // pred_check_branch
      %40 = sbr.rel (0) target = $region41
    $region40: #{mmwp_forward.3} parent=1 // pred_region
      _
    $region41: #{mmwp_forward.3} parent=1 // pred_fallthru
      _
    // Predicated region
    $region42: #{mmwp_forward.3} parent=1 // pred_check
      _
    $region43: #{mmwp_forward.3} parent=1 // pred_check_branch
      %42 = sbr.rel (0) target = $region45
    $region44: #{mmwp_forward.3} parent=1 // pred_region
      _
    $region45: #{mmwp_forward.3} parent=1 // pred_fallthru
      _
    // Predicated region
    $region46: #{mmwp_forward.3} parent=1 // pred_check
      _
    $region47: #{mmwp_forward.3} parent=1 // pred_check_branch
      %44 = sbr.rel (0) target = $region49
    $region48: #{mmwp_forward.3} parent=1 // pred_region
      _
    $region49: #{mmwp_forward.3} parent=1 // pred_fallthru
      _
    // Predicated region
    $region50: #{mmwp_forward.3} parent=1 // pred_check
      _
    $region51: #{mmwp_forward.3} parent=1 // pred_check_branch
      %46 = sbr.rel (0) target = $region53
    $region52: #{mmwp_forward.3} parent=1 // pred_region
      %48 = vsyncadd [#allocation3], 0
      %s50 = sshll.u32 %s12, 4
      %s51 = int_to_ptr.vmem [resolvable:$true] %s50
      %53 = dma.vmem_to_smem %s51, 128, [#allocation2], [#allocation3]
    $region53: #{mmwp_forward.3} parent=1 // pred_fallthru
      _
    // Predicated region
    $region54: #{mmwp_forward.3} parent=1 // pred_check
      _
    $region55: #{mmwp_forward.3} parent=1 // pred_check_branch
      %55 = sbr.rel (0) target = $region57
    $region56: #{mmwp_forward.3} parent=1 // pred_region
      %57 = vsyncadd [#allocation5], 0
      %s59 = sshll.u32 %s13, 4
      %s60 = int_to_ptr.vmem [resolvable:$true] %s59
      %62 = dma.vmem_to_smem %s60, 16, [#allocation4], [#allocation5]
    $region57: #{mmwp_forward.3} parent=1 // pred_fallthru
      _
    // Predicated region
    $region58: #{mmwp_forward.3} parent=1 // pred_check
      _
    $region59: #{mmwp_forward.3} parent=1 // pred_check_branch
      %64 = sbr.rel (0) target = $region61
    $region60: #{mmwp_forward.3} parent=1 // pred_region
      %66 = dma.done [#allocation3], 128
    $region61: #{mmwp_forward.3} parent=1 // pred_fallthru
      _
    // Predicated region
    $region62: #{mmwp_forward.3} parent=1 // pred_check
      _
    $region63: #{mmwp_forward.3} parent=1 // pred_check_branch
      %68 = sbr.rel (0) target = $region65
    $region64: #{mmwp_forward.3} parent=1 // pred_region
      %70 = dma.done [#allocation5], 16
    $region65: #{mmwp_forward.3} parent=1 // pred_fallthru
      _
    %71 = sfence
    %v72 = vld [vmem:[%s1] sm:$0xff]
    %v73 = vld [vmem:[%s1 + $0x8] sm:$0xf]
    %v74 = vld [vmem:[%s2] sm:$0xf]
    %v75 = vld [vmem:[%s3] sm:$0x1]
    %v76 = vld [vmem:[%s4] sm:$0xff]
    %v77 = vld [vmem:[%s4 + $0x8] sm:$0xff]
    %v78 = vld [vmem:[%s4 + $0x10] sm:$0xff]
    %v79 = vld [vmem:[%s4 + $0x18] sm:$0xff]
    %v80 = vld [vmem:[%s5] sm:$0x1]
    %v81 = vld [vmem:[%s6] sm:$0xff]
    %v82 = vld [vmem:[%s6 + $0x8] sm:$0x3]
    %v83 = vld [vmem:[%s7] sm:$0xff]
    %v84 = vld [vmem:[%s7 + $0x8] sm:$0x3]
    %v85 = vld [vmem:[%s8] sm:$0xff]
    %v86 = vld [vmem:[%s8 + $0x8] sm:$0xff]
    %v87 = vld [vmem:[%s9] sm:$0x1]
    %v88 = vld [vmem:[%s10] sm:$0xff]
    %v89 = vld [vmem:[%s10 + $0x8] sm:$0xff]
    %v90 = vld [vmem:[%s11] sm:$0x1]
    %v91 = vld [vmem:[%s0] sm:$0xff]
    %v92 = vld [vmem:[%s0 + $0x8] sm:$0xf]
    %vm93 = vcmask 31744
    %v95 = vsel %vm93, %v91, 0
    %v98 = vsel %vm93, %v92, 0
    %vm100 = vcmask 1043456
    %v102 = vsel %vm100, %v74, 0
    %104 = vmatpush.msra.mxu0 0.0
    %105 = vmatpush.msra.mxu0 0.0
    %106 = vmatpush.msra.mxu0 0.0
    %107 = vmatpush.msra.mxu0 0.0
    %108 = vmatpush.msra.mxu0 0.0
    %109 = vmatpush.msra.mxu0 0.0
    %110 = vmatpush.msra.mxu0 0.0
    %111 = vmatpush.msra.mxu0 0.0
    %112 = vmatpush.msra.mxu0 0.0
    %113 = vmatpush.msra.mxu0 0.0
    %114 = vmatpush.msra.mxu0 0.0
    %115 = vmatpush.msra.mxu0 0.0
    %116 = vmatpush.msra.mxu0 0.0
    %117 = vmatpush.msra.mxu0 0.0
    %118 = vmatpush.msra.mxu0 0.0
    %119 = vmatpush.msra.mxu0 %v102
    %120 = vmatmul.f32.gmra.mxu0 %v95
    %v121 = vpop.f32.mrf.mxu0
    %v122 = vadd.f32 0.0, %v121
    %123 = vmatmul.f32.gmra.mxu0 %v98
    %v124 = vpop.f32.mrf.mxu0
    %v125 = vadd.f32 0.0, %v124
    %126 = vdwg.mxu0
    %v128 = vperm.slane %v75, 0
    %vm130 = vcmask 97280
    %v132 = vsel %vm130, %v72, 0
    %v135 = vsel %vm130, %v73, 0
    %v138 = vsel %vm100, %v125, 0
    %140 = vmatpush.msra.mxu0 0.0
    %141 = vmatpush.msra.mxu0 0.0
    %142 = vmatpush.msra.mxu0 0.0
    %143 = vmatpush.msra.mxu0 0.0
    %144 = vmatpush.msra.mxu0 0.0
    %145 = vmatpush.msra.mxu0 0.0
    %146 = vmatpush.msra.mxu0 0.0
    %147 = vmatpush.msra.mxu0 0.0
    %148 = vmatpush.msra.mxu0 0.0
    %149 = vmatpush.msra.mxu0 0.0
    %150 = vmatpush.msra.mxu0 0.0
    %151 = vmatpush.msra.mxu0 0.0
    %152 = vmatpush.msra.mxu0 0.0
    %153 = vmatpush.msra.mxu0 0.0
    %154 = vmatpush.msra.mxu0 %v138
    %155 = vmatpush.msra.mxu0 %v122
    %156 = vmatmul.f32.gmra.mxu0 %v132
    %v157 = vpop.f32.mrf.mxu0
    %v158 = vadd.f32 %v128, %v157
    %159 = vmatmul.f32.gmra.mxu0 %v135
    %v160 = vpop.f32.mrf.mxu0
    %v161 = vadd.f32 %v128, %v160
    %162 = vdwg.mxu0
    %v163 = vmax.f32 %v158, 0.0
    %v164 = vmax.f32 %v161, 0.0
    %vm165 = vcmask 261120
    %v167 = vsel %vm165, %v163, 0
    %v170 = vsel %vm165, %v164, 0
    %172 = vmatpush.msra.mxu0 0.0
    %173 = vmatpush.msra.mxu0 0.0
    %174 = vmatpush.msra.mxu0 0.0
    %175 = vmatpush.msra.mxu0 0.0
    %176 = vmatpush.msra.mxu0 0.0
    %177 = vmatpush.msra.mxu0 0.0
    %178 = vmatpush.msra.mxu0 0.0
    %179 = vmatpush.msra.mxu0 0.0
    %180 = vmatpush.msra.mxu0 0.0
    %181 = vmatpush.msra.mxu0 0.0
    %182 = vmatpush.msra.mxu0 0.0
    %183 = vmatpush.msra.mxu0 0.0
    %184 = vmatpush.msra.mxu0 %v79
    %185 = vmatpush.msra.mxu0 %v78
    %186 = vmatpush.msra.mxu0 %v77
    %187 = vmatpush.msra.mxu0 %v76
    %188 = vmatmul.f32.gmra.mxu0 %v167
    %v189 = vpop.f32.mrf.mxu0
    %v190 = vadd.f32 0.0, %v189
    %191 = vmatmul.f32.gmra.mxu0 %v170
    %v192 = vpop.f32.mrf.mxu0
    %v193 = vadd.f32 0.0, %v192
    %194 = vdwg.mxu0
    %v196 = vperm.slane %v80, 0
    %v199 = vsel %vm100, %v193, 0
    %201 = vmatpush.msra.mxu0 0.0
    %202 = vmatpush.msra.mxu0 0.0
    %203 = vmatpush.msra.mxu0 0.0
    %204 = vmatpush.msra.mxu0 0.0
    %205 = vmatpush.msra.mxu0 0.0
    %206 = vmatpush.msra.mxu0 0.0
    %207 = vmatpush.msra.mxu0 0.0
    %208 = vmatpush.msra.mxu0 0.0
    %209 = vmatpush.msra.mxu0 0.0
    %210 = vmatpush.msra.mxu0 0.0
    %211 = vmatpush.msra.mxu0 0.0
    %212 = vmatpush.msra.mxu0 0.0
    %213 = vmatpush.msra.mxu0 0.0
    %214 = vmatpush.msra.mxu0 0.0
    %215 = vmatpush.msra.mxu0 %v199
    %216 = vmatpush.msra.mxu0 %v190
    %217 = vmatmul.f32.gmra.mxu0 %v132
    %v218 = vpop.f32.mrf.mxu0
    %v219 = vadd.f32 %v196, %v218
    %220 = vmatmul.f32.gmra.mxu0 %v135
    %v221 = vpop.f32.mrf.mxu0
    %v222 = vadd.f32 %v196, %v221
    %223 = vdwg.mxu0
    %v224 = vmax.f32 %v219, 0.0
    %v225 = vmax.f32 %v222, 0.0
    %227 = vset.pattern.permute.xlu0 0
    %228 = vperm.xlu0 %227, %v83
    %v229 = vpop.permute.xlu0 %228
    %232 = vset.pattern.permute.xlu0 0
    %233 = vperm.xlu0 %232, %v84
    %v234 = vpop.permute.xlu0 %233
    %v237 = vsel %vm130, %v81, 0
    %v240 = vsel %vm130, %v82, 0
    %v243 = vsel %vm100, %v225, 0
    %245 = vmatpush.msra.mxu0 0.0
    %246 = vmatpush.msra.mxu0 0.0
    %247 = vmatpush.msra.mxu0 0.0
    %248 = vmatpush.msra.mxu0 0.0
    %249 = vmatpush.msra.mxu0 0.0
    %250 = vmatpush.msra.mxu0 0.0
    %251 = vmatpush.msra.mxu0 0.0
    %252 = vmatpush.msra.mxu0 0.0
    %253 = vmatpush.msra.mxu0 0.0
    %254 = vmatpush.msra.mxu0 0.0
    %255 = vmatpush.msra.mxu0 0.0
    %256 = vmatpush.msra.mxu0 0.0
    %257 = vmatpush.msra.mxu0 0.0
    %258 = vmatpush.msra.mxu0 0.0
    %259 = vmatpush.msra.mxu0 %v243
    %260 = vmatpush.msra.mxu0 %v224
    %261 = vmatmul.f32.gmra.mxu0 %v237
    %v262 = vpop.f32.mrf.mxu0
    %v263 = vadd.f32 %v229, %v262
    %264 = vmatmul.f32.gmra.mxu0 %v240
    %v265 = vpop.f32.mrf.mxu0
    %v266 = vadd.f32 %v234, %v265
    %267 = vdwg.mxu0
    %s268 = sld [smem:[#allocation2]]
    %v269 = vstv %s268
    %v270 = vmul.f32 %v269, %v263
    %v271 = vmul.f32 %v269, %v266
    %s272 = sld [smem:[#allocation2 + $0x1]]
    %v273 = vstv %s272
    %v274 = vmul.f32 %v273, %v263
    %v275 = vmul.f32 %v273, %v266
    %s276 = sld [smem:[#allocation2 + $0x2]]
    %v277 = vstv %s276
    %v278 = vmul.f32 %v277, %v263
    %v279 = vmul.f32 %v277, %v266
    %s280 = sld [smem:[#allocation2 + $0x3]]
    %v281 = vstv %s280
    %v282 = vmul.f32 %v281, %v263
    %v283 = vmul.f32 %v281, %v266
    %s284 = scalar_lea.vmem %s0, 16
    %v285 = vld [vmem:[%s284] sm:$0xff]
    %v286 = vld [vmem:[%s284 + $0x8] sm:$0xf]
    %v288 = vsel %vm93, %v285, 0
    %v291 = vsel %vm93, %v286, 0
    %293 = vmatpush.msra.mxu0 0.0
    %294 = vmatpush.msra.mxu0 0.0
    %295 = vmatpush.msra.mxu0 0.0
    %296 = vmatpush.msra.mxu0 0.0
    %297 = vmatpush.msra.mxu0 0.0
    %298 = vmatpush.msra.mxu0 0.0
    %299 = vmatpush.msra.mxu0 0.0
    %300 = vmatpush.msra.mxu0 0.0
    %301 = vmatpush.msra.mxu0 0.0
    %302 = vmatpush.msra.mxu0 0.0
    %303 = vmatpush.msra.mxu0 0.0
    %304 = vmatpush.msra.mxu0 0.0
    %305 = vmatpush.msra.mxu0 0.0
    %306 = vmatpush.msra.mxu0 0.0
    %307 = vmatpush.msra.mxu0 0.0
    %308 = vmatpush.msra.mxu0 %v102
    %309 = vmatmul.f32.gmra.mxu0 %v288
    %v310 = vpop.f32.mrf.mxu0
    %v311 = vadd.f32 0.0, %v310
    %312 = vmatmul.f32.gmra.mxu0 %v291
    %v313 = vpop.f32.mrf.mxu0
    %v314 = vadd.f32 0.0, %v313
    %315 = vdwg.mxu0
    %v317 = vsel %vm100, %v314, 0
    %319 = vmatpush.msra.mxu0 0.0
    %320 = vmatpush.msra.mxu0 0.0
    %321 = vmatpush.msra.mxu0 0.0
    %322 = vmatpush.msra.mxu0 0.0
    %323 = vmatpush.msra.mxu0 0.0
    %324 = vmatpush.msra.mxu0 0.0
    %325 = vmatpush.msra.mxu0 0.0
    %326 = vmatpush.msra.mxu0 0.0
    %327 = vmatpush.msra.mxu0 0.0
    %328 = vmatpush.msra.mxu0 0.0
    %329 = vmatpush.msra.mxu0 0.0
    %330 = vmatpush.msra.mxu0 0.0
    %331 = vmatpush.msra.mxu0 0.0
    %332 = vmatpush.msra.mxu0 0.0
    %333 = vmatpush.msra.mxu0 %v317
    %334 = vmatpush.msra.mxu0 %v311
    %335 = vmatmul.f32.gmra.mxu0 %v132
    %v336 = vpop.f32.mrf.mxu0
    %v337 = vadd.f32 %v128, %v336
    %338 = vmatmul.f32.gmra.mxu0 %v135
    %v339 = vpop.f32.mrf.mxu0
    %v340 = vadd.f32 %v128, %v339
    %341 = vdwg.mxu0
    %v342 = vmax.f32 %v337, 0.0
    %v343 = vmax.f32 %v340, 0.0
    %v345 = vsel %vm165, %v342, 0
    %v348 = vsel %vm165, %v343, 0
    %350 = vmatpush.msra.mxu0 0.0
    %351 = vmatpush.msra.mxu0 0.0
    %352 = vmatpush.msra.mxu0 0.0
    %353 = vmatpush.msra.mxu0 0.0
    %354 = vmatpush.msra.mxu0 0.0
    %355 = vmatpush.msra.mxu0 0.0
    %356 = vmatpush.msra.mxu0 0.0
    %357 = vmatpush.msra.mxu0 0.0
    %358 = vmatpush.msra.mxu0 0.0
    %359 = vmatpush.msra.mxu0 0.0
    %360 = vmatpush.msra.mxu0 0.0
    %361 = vmatpush.msra.mxu0 0.0
    %362 = vmatpush.msra.mxu0 %v79
    %363 = vmatpush.msra.mxu0 %v78
    %364 = vmatpush.msra.mxu0 %v77
    %365 = vmatpush.msra.mxu0 %v76
    %366 = vmatmul.f32.gmra.mxu0 %v345
    %v367 = vpop.f32.mrf.mxu0
    %v368 = vadd.f32 0.0, %v367
    %369 = vmatmul.f32.gmra.mxu0 %v348
    %v370 = vpop.f32.mrf.mxu0
    %v371 = vadd.f32 0.0, %v370
    %372 = vdwg.mxu0
    %v374 = vsel %vm100, %v371, 0
    %376 = vmatpush.msra.mxu0 0.0
    %377 = vmatpush.msra.mxu0 0.0
    %378 = vmatpush.msra.mxu0 0.0
    %379 = vmatpush.msra.mxu0 0.0
    %380 = vmatpush.msra.mxu0 0.0
    %381 = vmatpush.msra.mxu0 0.0
    %382 = vmatpush.msra.mxu0 0.0
    %383 = vmatpush.msra.mxu0 0.0
    %384 = vmatpush.msra.mxu0 0.0
    %385 = vmatpush.msra.mxu0 0.0
    %386 = vmatpush.msra.mxu0 0.0
    %387 = vmatpush.msra.mxu0 0.0
    %388 = vmatpush.msra.mxu0 0.0
    %389 = vmatpush.msra.mxu0 0.0
    %390 = vmatpush.msra.mxu0 %v374
    %391 = vmatpush.msra.mxu0 %v368
    %392 = vmatmul.f32.gmra.mxu0 %v132
    %v393 = vpop.f32.mrf.mxu0
    %v394 = vadd.f32 %v196, %v393
    %395 = vmatmul.f32.gmra.mxu0 %v135
    %v396 = vpop.f32.mrf.mxu0
    %v397 = vadd.f32 %v196, %v396
    %398 = vdwg.mxu0
    %v399 = vmax.f32 %v394, 0.0
    %v400 = vmax.f32 %v397, 0.0
    %v402 = vsel %vm100, %v400, 0
    %404 = vmatpush.msra.mxu0 0.0
    %405 = vmatpush.msra.mxu0 0.0
    %406 = vmatpush.msra.mxu0 0.0
    %407 = vmatpush.msra.mxu0 0.0
    %408 = vmatpush.msra.mxu0 0.0
    %409 = vmatpush.msra.mxu0 0.0
    %410 = vmatpush.msra.mxu0 0.0
    %411 = vmatpush.msra.mxu0 0.0
    %412 = vmatpush.msra.mxu0 0.0
    %413 = vmatpush.msra.mxu0 0.0
    %414 = vmatpush.msra.mxu0 0.0
    %415 = vmatpush.msra.mxu0 0.0
    %416 = vmatpush.msra.mxu0 0.0
    %417 = vmatpush.msra.mxu0 0.0
    %418 = vmatpush.msra.mxu0 %v402
    %419 = vmatpush.msra.mxu0 %v399
    %420 = vmatmul.f32.gmra.mxu0 %v237
    %v421 = vpop.f32.mrf.mxu0
    %v422 = vadd.f32 %v229, %v421
    %423 = vmatmul.f32.gmra.mxu0 %v240
    %v424 = vpop.f32.mrf.mxu0
    %v425 = vadd.f32 %v234, %v424
    %426 = vdwg.mxu0
    %s427 = sld [smem:[#allocation2 + $0x80]]
    %v428 = vstv %s427
    %v429 = vmul.f32 %v428, %v422
    %v430 = vmul.f32 %v428, %v425
    %v431 = vadd.f32 %v270, %v429
    %v432 = vadd.f32 %v271, %v430
    %s433 = sld [smem:[#allocation2 + $0x81]]
    %v434 = vstv %s433
    %v435 = vmul.f32 %v434, %v422
    %v436 = vmul.f32 %v434, %v425
    %v437 = vadd.f32 %v274, %v435
    %v438 = vadd.f32 %v275, %v436
    %s439 = sld [smem:[#allocation2 + $0x82]]
    %v440 = vstv %s439
    %v441 = vmul.f32 %v440, %v422
    %v442 = vmul.f32 %v440, %v425
    %v443 = vadd.f32 %v278, %v441
    %v444 = vadd.f32 %v279, %v442
    %s445 = sld [smem:[#allocation2 + $0x83]]
    %v446 = vstv %s445
    %v447 = vmul.f32 %v446, %v422
    %v448 = vmul.f32 %v446, %v425
    %v449 = vadd.f32 %v282, %v447
    %v450 = vadd.f32 %v283, %v448
    %s451 = scalar_lea.vmem %s0, 32
    %v452 = vld [vmem:[%s451] sm:$0xff]
    %v453 = vld [vmem:[%s451 + $0x8] sm:$0xf]
    %v455 = vsel %vm93, %v452, 0
    %v458 = vsel %vm93, %v453, 0
    %460 = vmatpush.msra.mxu0 0.0
    %461 = vmatpush.msra.mxu0 0.0
    %462 = vmatpush.msra.mxu0 0.0
    %463 = vmatpush.msra.mxu0 0.0
    %464 = vmatpush.msra.mxu0 0.0
    %465 = vmatpush.msra.mxu0 0.0
    %466 = vmatpush.msra.mxu0 0.0
    %467 = vmatpush.msra.mxu0 0.0
    %468 = vmatpush.msra.mxu0 0.0
    %469 = vmatpush.msra.mxu0 0.0
    %470 = vmatpush.msra.mxu0 0.0
    %471 = vmatpush.msra.mxu0 0.0
    %472 = vmatpush.msra.mxu0 0.0
    %473 = vmatpush.msra.mxu0 0.0
    %474 = vmatpush.msra.mxu0 0.0
    %475 = vmatpush.msra.mxu0 %v102
    %476 = vmatmul.f32.gmra.mxu0 %v455
    %v477 = vpop.f32.mrf.mxu0
    %v478 = vadd.f32 0.0, %v477
    %479 = vmatmul.f32.gmra.mxu0 %v458
    %v480 = vpop.f32.mrf.mxu0
    %v481 = vadd.f32 0.0, %v480
    %482 = vdwg.mxu0
    %v484 = vsel %vm100, %v481, 0
    %486 = vmatpush.msra.mxu0 0.0
    %487 = vmatpush.msra.mxu0 0.0
    %488 = vmatpush.msra.mxu0 0.0
    %489 = vmatpush.msra.mxu0 0.0
    %490 = vmatpush.msra.mxu0 0.0
    %491 = vmatpush.msra.mxu0 0.0
    %492 = vmatpush.msra.mxu0 0.0
    %493 = vmatpush.msra.mxu0 0.0
    %494 = vmatpush.msra.mxu0 0.0
    %495 = vmatpush.msra.mxu0 0.0
    %496 = vmatpush.msra.mxu0 0.0
    %497 = vmatpush.msra.mxu0 0.0
    %498 = vmatpush.msra.mxu0 0.0
    %499 = vmatpush.msra.mxu0 0.0
    %500 = vmatpush.msra.mxu0 %v484
    %501 = vmatpush.msra.mxu0 %v478
    %502 = vmatmul.f32.gmra.mxu0 %v132
    %v503 = vpop.f32.mrf.mxu0
    %v504 = vadd.f32 %v128, %v503
    %505 = vmatmul.f32.gmra.mxu0 %v135
    %v506 = vpop.f32.mrf.mxu0
    %v507 = vadd.f32 %v128, %v506
    %508 = vdwg.mxu0
    %v509 = vmax.f32 %v504, 0.0
    %v510 = vmax.f32 %v507, 0.0
    %v512 = vsel %vm165, %v509, 0
    %v515 = vsel %vm165, %v510, 0
    %517 = vmatpush.msra.mxu0 0.0
    %518 = vmatpush.msra.mxu0 0.0
    %519 = vmatpush.msra.mxu0 0.0
    %520 = vmatpush.msra.mxu0 0.0
    %521 = vmatpush.msra.mxu0 0.0
    %522 = vmatpush.msra.mxu0 0.0
    %523 = vmatpush.msra.mxu0 0.0
    %524 = vmatpush.msra.mxu0 0.0
    %525 = vmatpush.msra.mxu0 0.0
    %526 = vmatpush.msra.mxu0 0.0
    %527 = vmatpush.msra.mxu0 0.0
    %528 = vmatpush.msra.mxu0 0.0
    %529 = vmatpush.msra.mxu0 %v79
    %530 = vmatpush.msra.mxu0 %v78
    %531 = vmatpush.msra.mxu0 %v77
    %532 = vmatpush.msra.mxu0 %v76
    %533 = vmatmul.f32.gmra.mxu0 %v512
    %v534 = vpop.f32.mrf.mxu0
    %v535 = vadd.f32 0.0, %v534
    %536 = vmatmul.f32.gmra.mxu0 %v515
    %v537 = vpop.f32.mrf.mxu0
    %v538 = vadd.f32 0.0, %v537
    %539 = vdwg.mxu0
    %v541 = vsel %vm100, %v538, 0
    %543 = vmatpush.msra.mxu0 0.0
    %544 = vmatpush.msra.mxu0 0.0
    %545 = vmatpush.msra.mxu0 0.0
    %546 = vmatpush.msra.mxu0 0.0
    %547 = vmatpush.msra.mxu0 0.0
    %548 = vmatpush.msra.mxu0 0.0
    %549 = vmatpush.msra.mxu0 0.0
    %550 = vmatpush.msra.mxu0 0.0
    %551 = vmatpush.msra.mxu0 0.0
    %552 = vmatpush.msra.mxu0 0.0
    %553 = vmatpush.msra.mxu0 0.0
    %554 = vmatpush.msra.mxu0 0.0
    %555 = vmatpush.msra.mxu0 0.0
    %556 = vmatpush.msra.mxu0 0.0
    %557 = vmatpush.msra.mxu0 %v541
    %558 = vmatpush.msra.mxu0 %v535
    %559 = vmatmul.f32.gmra.mxu0 %v132
    %v560 = vpop.f32.mrf.mxu0
    %v561 = vadd.f32 %v196, %v560
    %562 = vmatmul.f32.gmra.mxu0 %v135
    %v563 = vpop.f32.mrf.mxu0
    %v564 = vadd.f32 %v196, %v563
    %565 = vdwg.mxu0
    %v566 = vmax.f32 %v561, 0.0
    %v567 = vmax.f32 %v564, 0.0
    %v569 = vsel %vm100, %v567, 0
    %571 = vmatpush.msra.mxu0 0.0
    %572 = vmatpush.msra.mxu0 0.0
    %573 = vmatpush.msra.mxu0 0.0
    %574 = vmatpush.msra.mxu0 0.0
    %575 = vmatpush.msra.mxu0 0.0
    %576 = vmatpush.msra.mxu0 0.0
    %577 = vmatpush.msra.mxu0 0.0
    %578 = vmatpush.msra.mxu0 0.0
    %579 = vmatpush.msra.mxu0 0.0
    %580 = vmatpush.msra.mxu0 0.0
    %581 = vmatpush.msra.mxu0 0.0
    %582 = vmatpush.msra.mxu0 0.0
    %583 = vmatpush.msra.mxu0 0.0
    %584 = vmatpush.msra.mxu0 0.0
    %585 = vmatpush.msra.mxu0 %v569
    %586 = vmatpush.msra.mxu0 %v566
    %587 = vmatmul.f32.gmra.mxu0 %v237
    %v588 = vpop.f32.mrf.mxu0
    %v589 = vadd.f32 %v229, %v588
    %590 = vmatmul.f32.gmra.mxu0 %v240
    %v591 = vpop.f32.mrf.mxu0
    %v592 = vadd.f32 %v234, %v591
    %593 = vdwg.mxu0
    %s594 = sld [smem:[#allocation2 + $0x100]]
    %v595 = vstv %s594
    %v596 = vmul.f32 %v595, %v589
    %v597 = vmul.f32 %v595, %v592
    %v598 = vadd.f32 %v431, %v596
    %v599 = vadd.f32 %v432, %v597
    %s600 = sld [smem:[#allocation2 + $0x101]]
    %v601 = vstv %s600
    %v602 = vmul.f32 %v601, %v589
    %v603 = vmul.f32 %v601, %v592
    %v604 = vadd.f32 %v437, %v602
    %v605 = vadd.f32 %v438, %v603
    %s606 = sld [smem:[#allocation2 + $0x102]]
    %v607 = vstv %s606
    %v608 = vmul.f32 %v607, %v589
    %v609 = vmul.f32 %v607, %v592
    %v610 = vadd.f32 %v443, %v608
    %v611 = vadd.f32 %v444, %v609
    %s612 = sld [smem:[#allocation2 + $0x103]]
    %v613 = vstv %s612
    %v614 = vmul.f32 %v613, %v589
    %v615 = vmul.f32 %v613, %v592
    %v616 = vadd.f32 %v449, %v614
    %v617 = vadd.f32 %v450, %v615
    %s618 = scalar_lea.vmem %s0, 48
    %v619 = vld [vmem:[%s618] sm:$0xff]
    %v620 = vld [vmem:[%s618 + $0x8] sm:$0xf]
    %v622 = vsel %vm93, %v619, 0
    %v625 = vsel %vm93, %v620, 0
    %627 = vmatpush.msra.mxu0 0.0
    %628 = vmatpush.msra.mxu0 0.0
    %629 = vmatpush.msra.mxu0 0.0
    %630 = vmatpush.msra.mxu0 0.0
    %631 = vmatpush.msra.mxu0 0.0
    %632 = vmatpush.msra.mxu0 0.0
    %633 = vmatpush.msra.mxu0 0.0
    %634 = vmatpush.msra.mxu0 0.0
    %635 = vmatpush.msra.mxu0 0.0
    %636 = vmatpush.msra.mxu0 0.0
    %637 = vmatpush.msra.mxu0 0.0
    %638 = vmatpush.msra.mxu0 0.0
    %639 = vmatpush.msra.mxu0 0.0
    %640 = vmatpush.msra.mxu0 0.0
    %641 = vmatpush.msra.mxu0 0.0
    %642 = vmatpush.msra.mxu0 %v102
    %643 = vmatmul.f32.gmra.mxu0 %v622
    %v644 = vpop.f32.mrf.mxu0
    %v645 = vadd.f32 0.0, %v644
    %646 = vmatmul.f32.gmra.mxu0 %v625
    %v647 = vpop.f32.mrf.mxu0
    %v648 = vadd.f32 0.0, %v647
    %649 = vdwg.mxu0
    %v651 = vsel %vm100, %v648, 0
    %653 = vmatpush.msra.mxu0 0.0
    %654 = vmatpush.msra.mxu0 0.0
    %655 = vmatpush.msra.mxu0 0.0
    %656 = vmatpush.msra.mxu0 0.0
    %657 = vmatpush.msra.mxu0 0.0
    %658 = vmatpush.msra.mxu0 0.0
    %659 = vmatpush.msra.mxu0 0.0
    %660 = vmatpush.msra.mxu0 0.0
    %661 = vmatpush.msra.mxu0 0.0
    %662 = vmatpush.msra.mxu0 0.0
    %663 = vmatpush.msra.mxu0 0.0
    %664 = vmatpush.msra.mxu0 0.0
    %665 = vmatpush.msra.mxu0 0.0
    %666 = vmatpush.msra.mxu0 0.0
    %667 = vmatpush.msra.mxu0 %v651
    %668 = vmatpush.msra.mxu0 %v645
    %669 = vmatmul.f32.gmra.mxu0 %v132
    %v670 = vpop.f32.mrf.mxu0
    %v671 = vadd.f32 %v128, %v670
    %672 = vmatmul.f32.gmra.mxu0 %v135
    %v673 = vpop.f32.mrf.mxu0
    %v674 = vadd.f32 %v128, %v673
    %675 = vdwg.mxu0
    %v676 = vmax.f32 %v671, 0.0
    %v677 = vmax.f32 %v674, 0.0
    %v679 = vsel %vm165, %v676, 0
    %v682 = vsel %vm165, %v677, 0
    %684 = vmatpush.msra.mxu0 0.0
    %685 = vmatpush.msra.mxu0 0.0
    %686 = vmatpush.msra.mxu0 0.0
    %687 = vmatpush.msra.mxu0 0.0
    %688 = vmatpush.msra.mxu0 0.0
    %689 = vmatpush.msra.mxu0 0.0
    %690 = vmatpush.msra.mxu0 0.0
    %691 = vmatpush.msra.mxu0 0.0
    %692 = vmatpush.msra.mxu0 0.0
    %693 = vmatpush.msra.mxu0 0.0
    %694 = vmatpush.msra.mxu0 0.0
    %695 = vmatpush.msra.mxu0 0.0
    %696 = vmatpush.msra.mxu0 %v79
    %697 = vmatpush.msra.mxu0 %v78
    %698 = vmatpush.msra.mxu0 %v77
    %699 = vmatpush.msra.mxu0 %v76
    %700 = vmatmul.f32.gmra.mxu0 %v679
    %v701 = vpop.f32.mrf.mxu0
    %v702 = vadd.f32 0.0, %v701
    %703 = vmatmul.f32.gmra.mxu0 %v682
    %v704 = vpop.f32.mrf.mxu0
    %v705 = vadd.f32 0.0, %v704
    %706 = vdwg.mxu0
    %v708 = vsel %vm100, %v705, 0
    %710 = vmatpush.msra.mxu0 0.0
    %711 = vmatpush.msra.mxu0 0.0
    %712 = vmatpush.msra.mxu0 0.0
    %713 = vmatpush.msra.mxu0 0.0
    %714 = vmatpush.msra.mxu0 0.0
    %715 = vmatpush.msra.mxu0 0.0
    %716 = vmatpush.msra.mxu0 0.0
    %717 = vmatpush.msra.mxu0 0.0
    %718 = vmatpush.msra.mxu0 0.0
    %719 = vmatpush.msra.mxu0 0.0
    %720 = vmatpush.msra.mxu0 0.0
    %721 = vmatpush.msra.mxu0 0.0
    %722 = vmatpush.msra.mxu0 0.0
    %723 = vmatpush.msra.mxu0 0.0
    %724 = vmatpush.msra.mxu0 %v708
    %725 = vmatpush.msra.mxu0 %v702
    %726 = vmatmul.f32.gmra.mxu0 %v132
    %v727 = vpop.f32.mrf.mxu0
    %v728 = vadd.f32 %v196, %v727
    %729 = vmatmul.f32.gmra.mxu0 %v135
    %v730 = vpop.f32.mrf.mxu0
    %v731 = vadd.f32 %v196, %v730
    %732 = vdwg.mxu0
    %v733 = vmax.f32 %v728, 0.0
    %v734 = vmax.f32 %v731, 0.0
    %v736 = vsel %vm100, %v734, 0
    %738 = vmatpush.msra.mxu0 0.0
    %739 = vmatpush.msra.mxu0 0.0
    %740 = vmatpush.msra.mxu0 0.0
    %741 = vmatpush.msra.mxu0 0.0
    %742 = vmatpush.msra.mxu0 0.0
    %743 = vmatpush.msra.mxu0 0.0
    %744 = vmatpush.msra.mxu0 0.0
    %745 = vmatpush.msra.mxu0 0.0
    %746 = vmatpush.msra.mxu0 0.0
    %747 = vmatpush.msra.mxu0 0.0
    %748 = vmatpush.msra.mxu0 0.0
    %749 = vmatpush.msra.mxu0 0.0
    %750 = vmatpush.msra.mxu0 0.0
    %751 = vmatpush.msra.mxu0 0.0
    %752 = vmatpush.msra.mxu0 %v736
    %753 = vmatpush.msra.mxu0 %v733
    %754 = vmatmul.f32.gmra.mxu0 %v237
    %v755 = vpop.f32.mrf.mxu0
    %v756 = vadd.f32 %v229, %v755
    %757 = vmatmul.f32.gmra.mxu0 %v240
    %v758 = vpop.f32.mrf.mxu0
    %v759 = vadd.f32 %v234, %v758
    %760 = vdwg.mxu0
    %s761 = sld [smem:[#allocation2 + $0x180]]
    %v762 = vstv %s761
    %v763 = vmul.f32 %v762, %v756
    %v764 = vmul.f32 %v762, %v759
    %v765 = vadd.f32 %v598, %v763
    %v766 = vadd.f32 %v599, %v764
    %s767 = sld [smem:[#allocation2 + $0x181]]
    %v768 = vstv %s767
    %v769 = vmul.f32 %v768, %v756
    %v770 = vmul.f32 %v768, %v759
    %v771 = vadd.f32 %v604, %v769
    %v772 = vadd.f32 %v605, %v770
    %s773 = sld [smem:[#allocation2 + $0x182]]
    %v774 = vstv %s773
    %v775 = vmul.f32 %v774, %v756
    %v776 = vmul.f32 %v774, %v759
    %v777 = vadd.f32 %v610, %v775
    %v778 = vadd.f32 %v611, %v776
    %s779 = sld [smem:[#allocation2 + $0x183]]
    %v780 = vstv %s779
    %v781 = vmul.f32 %v780, %v756
    %v782 = vmul.f32 %v780, %v759
    %v783 = vadd.f32 %v616, %v781
    %v784 = vadd.f32 %v617, %v782
    %s785 = scalar_lea.vmem %s0, 64
    %v786 = vld [vmem:[%s785] sm:$0xff]
    %v787 = vld [vmem:[%s785 + $0x8] sm:$0xf]
    %v789 = vsel %vm93, %v786, 0
    %v792 = vsel %vm93, %v787, 0
    %794 = vmatpush.msra.mxu0 0.0
    %795 = vmatpush.msra.mxu0 0.0
    %796 = vmatpush.msra.mxu0 0.0
    %797 = vmatpush.msra.mxu0 0.0
    %798 = vmatpush.msra.mxu0 0.0
    %799 = vmatpush.msra.mxu0 0.0
    %800 = vmatpush.msra.mxu0 0.0
    %801 = vmatpush.msra.mxu0 0.0
    %802 = vmatpush.msra.mxu0 0.0
    %803 = vmatpush.msra.mxu0 0.0
    %804 = vmatpush.msra.mxu0 0.0
    %805 = vmatpush.msra.mxu0 0.0
    %806 = vmatpush.msra.mxu0 0.0
    %807 = vmatpush.msra.mxu0 0.0
    %808 = vmatpush.msra.mxu0 0.0
    %809 = vmatpush.msra.mxu0 %v102
    %810 = vmatmul.f32.gmra.mxu0 %v789
    %v811 = vpop.f32.mrf.mxu0
    %v812 = vadd.f32 0.0, %v811
    %813 = vmatmul.f32.gmra.mxu0 %v792
    %v814 = vpop.f32.mrf.mxu0
    %v815 = vadd.f32 0.0, %v814
    %816 = vdwg.mxu0
    %v818 = vsel %vm100, %v815, 0
    %820 = vmatpush.msra.mxu0 0.0
    %821 = vmatpush.msra.mxu0 0.0
    %822 = vmatpush.msra.mxu0 0.0
    %823 = vmatpush.msra.mxu0 0.0
    %824 = vmatpush.msra.mxu0 0.0
    %825 = vmatpush.msra.mxu0 0.0
    %826 = vmatpush.msra.mxu0 0.0
    %827 = vmatpush.msra.mxu0 0.0
    %828 = vmatpush.msra.mxu0 0.0
    %829 = vmatpush.msra.mxu0 0.0
    %830 = vmatpush.msra.mxu0 0.0
    %831 = vmatpush.msra.mxu0 0.0
    %832 = vmatpush.msra.mxu0 0.0
    %833 = vmatpush.msra.mxu0 0.0
    %834 = vmatpush.msra.mxu0 %v818
    %835 = vmatpush.msra.mxu0 %v812
    %836 = vmatmul.f32.gmra.mxu0 %v132
    %v837 = vpop.f32.mrf.mxu0
    %v838 = vadd.f32 %v128, %v837
    %839 = vmatmul.f32.gmra.mxu0 %v135
    %v840 = vpop.f32.mrf.mxu0
    %v841 = vadd.f32 %v128, %v840
    %842 = vdwg.mxu0
    %v843 = vmax.f32 %v838, 0.0
    %v844 = vmax.f32 %v841, 0.0
    %v846 = vsel %vm165, %v843, 0
    %v849 = vsel %vm165, %v844, 0
    %851 = vmatpush.msra.mxu0 0.0
    %852 = vmatpush.msra.mxu0 0.0
    %853 = vmatpush.msra.mxu0 0.0
    %854 = vmatpush.msra.mxu0 0.0
    %855 = vmatpush.msra.mxu0 0.0
    %856 = vmatpush.msra.mxu0 0.0
    %857 = vmatpush.msra.mxu0 0.0
    %858 = vmatpush.msra.mxu0 0.0
    %859 = vmatpush.msra.mxu0 0.0
    %860 = vmatpush.msra.mxu0 0.0
    %861 = vmatpush.msra.mxu0 0.0
    %862 = vmatpush.msra.mxu0 0.0
    %863 = vmatpush.msra.mxu0 %v79
    %864 = vmatpush.msra.mxu0 %v78
    %865 = vmatpush.msra.mxu0 %v77
    %866 = vmatpush.msra.mxu0 %v76
    %867 = vmatmul.f32.gmra.mxu0 %v846
    %v868 = vpop.f32.mrf.mxu0
    %v869 = vadd.f32 0.0, %v868
    %870 = vmatmul.f32.gmra.mxu0 %v849
    %v871 = vpop.f32.mrf.mxu0
    %v872 = vadd.f32 0.0, %v871
    %873 = vdwg.mxu0
    %v875 = vsel %vm100, %v872, 0
    %877 = vmatpush.msra.mxu0 0.0
    %878 = vmatpush.msra.mxu0 0.0
    %879 = vmatpush.msra.mxu0 0.0
    %880 = vmatpush.msra.mxu0 0.0
    %881 = vmatpush.msra.mxu0 0.0
    %882 = vmatpush.msra.mxu0 0.0
    %883 = vmatpush.msra.mxu0 0.0
    %884 = vmatpush.msra.mxu0 0.0
    %885 = vmatpush.msra.mxu0 0.0
    %886 = vmatpush.msra.mxu0 0.0
    %887 = vmatpush.msra.mxu0 0.0
    %888 = vmatpush.msra.mxu0 0.0
    %889 = vmatpush.msra.mxu0 0.0
    %890 = vmatpush.msra.mxu0 0.0
    %891 = vmatpush.msra.mxu0 %v875
    %892 = vmatpush.msra.mxu0 %v869
    %893 = vmatmul.f32.gmra.mxu0 %v132
    %v894 = vpop.f32.mrf.mxu0
    %v895 = vadd.f32 %v196, %v894
    %896 = vmatmul.f32.gmra.mxu0 %v135
    %v897 = vpop.f32.mrf.mxu0
    %v898 = vadd.f32 %v196, %v897
    %899 = vdwg.mxu0
    %v900 = vmax.f32 %v895, 0.0
    %v901 = vmax.f32 %v898, 0.0
    %v903 = vsel %vm100, %v901, 0
    %905 = vmatpush.msra.mxu0 0.0
    %906 = vmatpush.msra.mxu0 0.0
    %907 = vmatpush.msra.mxu0 0.0
    %908 = vmatpush.msra.mxu0 0.0
    %909 = vmatpush.msra.mxu0 0.0
    %910 = vmatpush.msra.mxu0 0.0
    %911 = vmatpush.msra.mxu0 0.0
    %912 = vmatpush.msra.mxu0 0.0
    %913 = vmatpush.msra.mxu0 0.0
    %914 = vmatpush.msra.mxu0 0.0
    %915 = vmatpush.msra.mxu0 0.0
    %916 = vmatpush.msra.mxu0 0.0
    %917 = vmatpush.msra.mxu0 0.0
    %918 = vmatpush.msra.mxu0 0.0
    %919 = vmatpush.msra.mxu0 %v903
    %920 = vmatpush.msra.mxu0 %v900
    %921 = vmatmul.f32.gmra.mxu0 %v237
    %v922 = vpop.f32.mrf.mxu0
    %v923 = vadd.f32 %v229, %v922
    %924 = vmatmul.f32.gmra.mxu0 %v240
    %v925 = vpop.f32.mrf.mxu0
    %v926 = vadd.f32 %v234, %v925
    %927 = vdwg.mxu0
    %s928 = sld [smem:[#allocation2 + $0x200]]
    %v929 = vstv %s928
    %v930 = vmul.f32 %v929, %v923
    %v931 = vmul.f32 %v929, %v926
    %v932 = vadd.f32 %v765, %v930
    %v933 = vadd.f32 %v766, %v931
    %s934 = sld [smem:[#allocation2 + $0x201]]
    %v935 = vstv %s934
    %v936 = vmul.f32 %v935, %v923
    %v937 = vmul.f32 %v935, %v926
    %v938 = vadd.f32 %v771, %v936
    %v939 = vadd.f32 %v772, %v937
    %s940 = sld [smem:[#allocation2 + $0x202]]
    %v941 = vstv %s940
    %v942 = vmul.f32 %v941, %v923
    %v943 = vmul.f32 %v941, %v926
    %v944 = vadd.f32 %v777, %v942
    %v945 = vadd.f32 %v778, %v943
    %s946 = sld [smem:[#allocation2 + $0x203]]
    %v947 = vstv %s946
    %v948 = vmul.f32 %v947, %v923
    %v949 = vmul.f32 %v947, %v926
    %v950 = vadd.f32 %v783, %v948
    %v951 = vadd.f32 %v784, %v949
    %s952 = scalar_lea.vmem %s0, 80
    %v953 = vld [vmem:[%s952] sm:$0xff]
    %v954 = vld [vmem:[%s952 + $0x8] sm:$0xf]
    %v956 = vsel %vm93, %v953, 0
    %v959 = vsel %vm93, %v954, 0
    %961 = vmatpush.msra.mxu0 0.0
    %962 = vmatpush.msra.mxu0 0.0
    %963 = vmatpush.msra.mxu0 0.0
    %964 = vmatpush.msra.mxu0 0.0
    %965 = vmatpush.msra.mxu0 0.0
    %966 = vmatpush.msra.mxu0 0.0
    %967 = vmatpush.msra.mxu0 0.0
    %968 = vmatpush.msra.mxu0 0.0
    %969 = vmatpush.msra.mxu0 0.0
    %970 = vmatpush.msra.mxu0 0.0
    %971 = vmatpush.msra.mxu0 0.0
    %972 = vmatpush.msra.mxu0 0.0
    %973 = vmatpush.msra.mxu0 0.0
    %974 = vmatpush.msra.mxu0 0.0
    %975 = vmatpush.msra.mxu0 0.0
    %976 = vmatpush.msra.mxu0 %v102
    %977 = vmatmul.f32.gmra.mxu0 %v956
    %v978 = vpop.f32.mrf.mxu0
    %v979 = vadd.f32 0.0, %v978
    %980 = vmatmul.f32.gmra.mxu0 %v959
    %v981 = vpop.f32.mrf.mxu0
    %v982 = vadd.f32 0.0, %v981
    %983 = vdwg.mxu0
    %v985 = vsel %vm100, %v982, 0
    %987 = vmatpush.msra.mxu0 0.0
    %988 = vmatpush.msra.mxu0 0.0
    %989 = vmatpush.msra.mxu0 0.0
    %990 = vmatpush.msra.mxu0 0.0
    %991 = vmatpush.msra.mxu0 0.0
    %992 = vmatpush.msra.mxu0 0.0
    %993 = vmatpush.msra.mxu0 0.0
    %994 = vmatpush.msra.mxu0 0.0
    %995 = vmatpush.msra.mxu0 0.0
    %996 = vmatpush.msra.mxu0 0.0
    %997 = vmatpush.msra.mxu0 0.0
    %998 = vmatpush.msra.mxu0 0.0
    %999 = vmatpush.msra.mxu0 0.0
    %1000 = vmatpush.msra.mxu0 0.0
    %1001 = vmatpush.msra.mxu0 %v985
    %1002 = vmatpush.msra.mxu0 %v979
    %1003 = vmatmul.f32.gmra.mxu0 %v132
    %v1004 = vpop.f32.mrf.mxu0
    %v1005 = vadd.f32 %v128, %v1004
    %1006 = vmatmul.f32.gmra.mxu0 %v135
    %v1007 = vpop.f32.mrf.mxu0
    %v1008 = vadd.f32 %v128, %v1007
    %1009 = vdwg.mxu0
    %v1010 = vmax.f32 %v1005, 0.0
    %v1011 = vmax.f32 %v1008, 0.0
    %v1013 = vsel %vm165, %v1010, 0
    %v1016 = vsel %vm165, %v1011, 0
    %1018 = vmatpush.msra.mxu0 0.0
    %1019 = vmatpush.msra.mxu0 0.0
    %1020 = vmatpush.msra.mxu0 0.0
    %1021 = vmatpush.msra.mxu0 0.0
    %1022 = vmatpush.msra.mxu0 0.0
    %1023 = vmatpush.msra.mxu0 0.0
    %1024 = vmatpush.msra.mxu0 0.0
    %1025 = vmatpush.msra.mxu0 0.0
    %1026 = vmatpush.msra.mxu0 0.0
    %1027 = vmatpush.msra.mxu0 0.0
    %1028 = vmatpush.msra.mxu0 0.0
    %1029 = vmatpush.msra.mxu0 0.0
    %1030 = vmatpush.msra.mxu0 %v79
    %1031 = vmatpush.msra.mxu0 %v78
    %1032 = vmatpush.msra.mxu0 %v77
    %1033 = vmatpush.msra.mxu0 %v76
    %1034 = vmatmul.f32.gmra.mxu0 %v1013
    %v1035 = vpop.f32.mrf.mxu0
    %v1036 = vadd.f32 0.0, %v1035
    %1037 = vmatmul.f32.gmra.mxu0 %v1016
    %v1038 = vpop.f32.mrf.mxu0
    %v1039 = vadd.f32 0.0, %v1038
    %1040 = vdwg.mxu0
    %v1042 = vsel %vm100, %v1039, 0
    %1044 = vmatpush.msra.mxu0 0.0
    %1045 = vmatpush.msra.mxu0 0.0
    %1046 = vmatpush.msra.mxu0 0.0
    %1047 = vmatpush.msra.mxu0 0.0
    %1048 = vmatpush.msra.mxu0 0.0
    %1049 = vmatpush.msra.mxu0 0.0
    %1050 = vmatpush.msra.mxu0 0.0
    %1051 = vmatpush.msra.mxu0 0.0
    %1052 = vmatpush.msra.mxu0 0.0
    %1053 = vmatpush.msra.mxu0 0.0
    %1054 = vmatpush.msra.mxu0 0.0
    %1055 = vmatpush.msra.mxu0 0.0
    %1056 = vmatpush.msra.mxu0 0.0
    %1057 = vmatpush.msra.mxu0 0.0
    %1058 = vmatpush.msra.mxu0 %v1042
    %1059 = vmatpush.msra.mxu0 %v1036
    %1060 = vmatmul.f32.gmra.mxu0 %v132
    %v1061 = vpop.f32.mrf.mxu0
    %v1062 = vadd.f32 %v196, %v1061
    %1063 = vmatmul.f32.gmra.mxu0 %v135
    %v1064 = vpop.f32.mrf.mxu0
    %v1065 = vadd.f32 %v196, %v1064
    %1066 = vdwg.mxu0
    %v1067 = vmax.f32 %v1062, 0.0
    %v1068 = vmax.f32 %v1065, 0.0
    %v1070 = vsel %vm100, %v1068, 0
    %1072 = vmatpush.msra.mxu0 0.0
    %1073 = vmatpush.msra.mxu0 0.0
    %1074 = vmatpush.msra.mxu0 0.0
    %1075 = vmatpush.msra.mxu0 0.0
    %1076 = vmatpush.msra.mxu0 0.0
    %1077 = vmatpush.msra.mxu0 0.0
    %1078 = vmatpush.msra.mxu0 0.0
    %1079 = vmatpush.msra.mxu0 0.0
    %1080 = vmatpush.msra.mxu0 0.0
    %1081 = vmatpush.msra.mxu0 0.0
    %1082 = vmatpush.msra.mxu0 0.0
    %1083 = vmatpush.msra.mxu0 0.0
    %1084 = vmatpush.msra.mxu0 0.0
    %1085 = vmatpush.msra.mxu0 0.0
    %1086 = vmatpush.msra.mxu0 %v1070
    %1087 = vmatpush.msra.mxu0 %v1067
    %1088 = vmatmul.f32.gmra.mxu0 %v237
    %v1089 = vpop.f32.mrf.mxu0
    %v1090 = vadd.f32 %v229, %v1089
    %1091 = vmatmul.f32.gmra.mxu0 %v240
    %v1092 = vpop.f32.mrf.mxu0
    %v1093 = vadd.f32 %v234, %v1092
    %1094 = vdwg.mxu0
    %s1095 = sld [smem:[#allocation2 + $0x280]]
    %v1096 = vstv %s1095
    %v1097 = vmul.f32 %v1096, %v1090
    %v1098 = vmul.f32 %v1096, %v1093
    %v1099 = vadd.f32 %v932, %v1097
    %v1100 = vadd.f32 %v933, %v1098
    %s1101 = sld [smem:[#allocation2 + $0x281]]
    %v1102 = vstv %s1101
    %v1103 = vmul.f32 %v1102, %v1090
    %v1104 = vmul.f32 %v1102, %v1093
    %v1105 = vadd.f32 %v938, %v1103
    %v1106 = vadd.f32 %v939, %v1104
    %s1107 = sld [smem:[#allocation2 + $0x282]]
    %v1108 = vstv %s1107
    %v1109 = vmul.f32 %v1108, %v1090
    %v1110 = vmul.f32 %v1108, %v1093
    %v1111 = vadd.f32 %v944, %v1109
    %v1112 = vadd.f32 %v945, %v1110
    %s1113 = sld [smem:[#allocation2 + $0x283]]
    %v1114 = vstv %s1113
    %v1115 = vmul.f32 %v1114, %v1090
    %v1116 = vmul.f32 %v1114, %v1093
    %v1117 = vadd.f32 %v950, %v1115
    %v1118 = vadd.f32 %v951, %v1116
    %s1119 = scalar_lea.vmem %s0, 96
    %v1120 = vld [vmem:[%s1119] sm:$0xff]
    %v1121 = vld [vmem:[%s1119 + $0x8] sm:$0xf]
    %v1123 = vsel %vm93, %v1120, 0
    %v1126 = vsel %vm93, %v1121, 0
    %1128 = vmatpush.msra.mxu0 0.0
    %1129 = vmatpush.msra.mxu0 0.0
    %1130 = vmatpush.msra.mxu0 0.0
    %1131 = vmatpush.msra.mxu0 0.0
    %1132 = vmatpush.msra.mxu0 0.0
    %1133 = vmatpush.msra.mxu0 0.0
    %1134 = vmatpush.msra.mxu0 0.0
    %1135 = vmatpush.msra.mxu0 0.0
    %1136 = vmatpush.msra.mxu0 0.0
    %1137 = vmatpush.msra.mxu0 0.0
    %1138 = vmatpush.msra.mxu0 0.0
    %1139 = vmatpush.msra.mxu0 0.0
    %1140 = vmatpush.msra.mxu0 0.0
    %1141 = vmatpush.msra.mxu0 0.0
    %1142 = vmatpush.msra.mxu0 0.0
    %1143 = vmatpush.msra.mxu0 %v102
    %1144 = vmatmul.f32.gmra.mxu0 %v1123
    %v1145 = vpop.f32.mrf.mxu0
    %v1146 = vadd.f32 0.0, %v1145
    %1147 = vmatmul.f32.gmra.mxu0 %v1126
    %v1148 = vpop.f32.mrf.mxu0
    %v1149 = vadd.f32 0.0, %v1148
    %1150 = vdwg.mxu0
    %v1152 = vsel %vm100, %v1149, 0
    %1154 = vmatpush.msra.mxu0 0.0
    %1155 = vmatpush.msra.mxu0 0.0
    %1156 = vmatpush.msra.mxu0 0.0
    %1157 = vmatpush.msra.mxu0 0.0
    %1158 = vmatpush.msra.mxu0 0.0
    %1159 = vmatpush.msra.mxu0 0.0
    %1160 = vmatpush.msra.mxu0 0.0
    %1161 = vmatpush.msra.mxu0 0.0
    %1162 = vmatpush.msra.mxu0 0.0
    %1163 = vmatpush.msra.mxu0 0.0
    %1164 = vmatpush.msra.mxu0 0.0
    %1165 = vmatpush.msra.mxu0 0.0
    %1166 = vmatpush.msra.mxu0 0.0
    %1167 = vmatpush.msra.mxu0 0.0
    %1168 = vmatpush.msra.mxu0 %v1152
    %1169 = vmatpush.msra.mxu0 %v1146
    %1170 = vmatmul.f32.gmra.mxu0 %v132
    %v1171 = vpop.f32.mrf.mxu0
    %v1172 = vadd.f32 %v128, %v1171
    %1173 = vmatmul.f32.gmra.mxu0 %v135
    %v1174 = vpop.f32.mrf.mxu0
    %v1175 = vadd.f32 %v128, %v1174
    %1176 = vdwg.mxu0
    %v1177 = vmax.f32 %v1172, 0.0
    %v1178 = vmax.f32 %v1175, 0.0
    %v1180 = vsel %vm165, %v1177, 0
    %v1183 = vsel %vm165, %v1178, 0
    %1185 = vmatpush.msra.mxu0 0.0
    %1186 = vmatpush.msra.mxu0 0.0
    %1187 = vmatpush.msra.mxu0 0.0
    %1188 = vmatpush.msra.mxu0 0.0
    %1189 = vmatpush.msra.mxu0 0.0
    %1190 = vmatpush.msra.mxu0 0.0
    %1191 = vmatpush.msra.mxu0 0.0
    %1192 = vmatpush.msra.mxu0 0.0
    %1193 = vmatpush.msra.mxu0 0.0
    %1194 = vmatpush.msra.mxu0 0.0
    %1195 = vmatpush.msra.mxu0 0.0
    %1196 = vmatpush.msra.mxu0 0.0
    %1197 = vmatpush.msra.mxu0 %v79
    %1198 = vmatpush.msra.mxu0 %v78
    %1199 = vmatpush.msra.mxu0 %v77
    %1200 = vmatpush.msra.mxu0 %v76
    %1201 = vmatmul.f32.gmra.mxu0 %v1180
    %v1202 = vpop.f32.mrf.mxu0
    %v1203 = vadd.f32 0.0, %v1202
    %1204 = vmatmul.f32.gmra.mxu0 %v1183
    %v1205 = vpop.f32.mrf.mxu0
    %v1206 = vadd.f32 0.0, %v1205
    %1207 = vdwg.mxu0
    %v1209 = vsel %vm100, %v1206, 0
    %1211 = vmatpush.msra.mxu0 0.0
    %1212 = vmatpush.msra.mxu0 0.0
    %1213 = vmatpush.msra.mxu0 0.0
    %1214 = vmatpush.msra.mxu0 0.0
    %1215 = vmatpush.msra.mxu0 0.0
    %1216 = vmatpush.msra.mxu0 0.0
    %1217 = vmatpush.msra.mxu0 0.0
    %1218 = vmatpush.msra.mxu0 0.0
    %1219 = vmatpush.msra.mxu0 0.0
    %1220 = vmatpush.msra.mxu0 0.0
    %1221 = vmatpush.msra.mxu0 0.0
    %1222 = vmatpush.msra.mxu0 0.0
    %1223 = vmatpush.msra.mxu0 0.0
    %1224 = vmatpush.msra.mxu0 0.0
    %1225 = vmatpush.msra.mxu0 %v1209
    %1226 = vmatpush.msra.mxu0 %v1203
    %1227 = vmatmul.f32.gmra.mxu0 %v132
    %v1228 = vpop.f32.mrf.mxu0
    %v1229 = vadd.f32 %v196, %v1228
    %1230 = vmatmul.f32.gmra.mxu0 %v135
    %v1231 = vpop.f32.mrf.mxu0
    %v1232 = vadd.f32 %v196, %v1231
    %1233 = vdwg.mxu0
    %v1234 = vmax.f32 %v1229, 0.0
    %v1235 = vmax.f32 %v1232, 0.0
    %v1237 = vsel %vm100, %v1235, 0
    %1239 = vmatpush.msra.mxu0 0.0
    %1240 = vmatpush.msra.mxu0 0.0
    %1241 = vmatpush.msra.mxu0 0.0
    %1242 = vmatpush.msra.mxu0 0.0
    %1243 = vmatpush.msra.mxu0 0.0
    %1244 = vmatpush.msra.mxu0 0.0
    %1245 = vmatpush.msra.mxu0 0.0
    %1246 = vmatpush.msra.mxu0 0.0
    %1247 = vmatpush.msra.mxu0 0.0
    %1248 = vmatpush.msra.mxu0 0.0
    %1249 = vmatpush.msra.mxu0 0.0
    %1250 = vmatpush.msra.mxu0 0.0
    %1251 = vmatpush.msra.mxu0 0.0
    %1252 = vmatpush.msra.mxu0 0.0
    %1253 = vmatpush.msra.mxu0 %v1237
    %1254 = vmatpush.msra.mxu0 %v1234
    %1255 = vmatmul.f32.gmra.mxu0 %v237
    %v1256 = vpop.f32.mrf.mxu0
    %v1257 = vadd.f32 %v229, %v1256
    %1258 = vmatmul.f32.gmra.mxu0 %v240
    %v1259 = vpop.f32.mrf.mxu0
    %v1260 = vadd.f32 %v234, %v1259
    %1261 = vdwg.mxu0
    %s1262 = sld [smem:[#allocation2 + $0x300]]
    %v1263 = vstv %s1262
    %v1264 = vmul.f32 %v1263, %v1257
    %v1265 = vmul.f32 %v1263, %v1260
    %v1266 = vadd.f32 %v1099, %v1264
    %v1267 = vadd.f32 %v1100, %v1265
    %s1268 = sld [smem:[#allocation2 + $0x301]]
    %v1269 = vstv %s1268
    %v1270 = vmul.f32 %v1269, %v1257
    %v1271 = vmul.f32 %v1269, %v1260
    %v1272 = vadd.f32 %v1105, %v1270
    %v1273 = vadd.f32 %v1106, %v1271
    %s1274 = sld [smem:[#allocation2 + $0x302]]
    %v1275 = vstv %s1274
    %v1276 = vmul.f32 %v1275, %v1257
    %v1277 = vmul.f32 %v1275, %v1260
    %v1278 = vadd.f32 %v1111, %v1276
    %v1279 = vadd.f32 %v1112, %v1277
    %s1280 = sld [smem:[#allocation2 + $0x303]]
    %v1281 = vstv %s1280
    %v1282 = vmul.f32 %v1281, %v1257
    %v1283 = vmul.f32 %v1281, %v1260
    %v1284 = vadd.f32 %v1117, %v1282
    %v1285 = vadd.f32 %v1118, %v1283
    %s1286 = scalar_lea.vmem %s0, 112
    %v1287 = vld [vmem:[%s1286] sm:$0xff]
    %v1288 = vld [vmem:[%s1286 + $0x8] sm:$0xf]
    %v1290 = vsel %vm93, %v1287, 0
    %v1293 = vsel %vm93, %v1288, 0
    %1295 = vmatpush.msra.mxu0 0.0
    %1296 = vmatpush.msra.mxu0 0.0
    %1297 = vmatpush.msra.mxu0 0.0
    %1298 = vmatpush.msra.mxu0 0.0
    %1299 = vmatpush.msra.mxu0 0.0
    %1300 = vmatpush.msra.mxu0 0.0
    %1301 = vmatpush.msra.mxu0 0.0
    %1302 = vmatpush.msra.mxu0 0.0
    %1303 = vmatpush.msra.mxu0 0.0
    %1304 = vmatpush.msra.mxu0 0.0
    %1305 = vmatpush.msra.mxu0 0.0
    %1306 = vmatpush.msra.mxu0 0.0
    %1307 = vmatpush.msra.mxu0 0.0
    %1308 = vmatpush.msra.mxu0 0.0
    %1309 = vmatpush.msra.mxu0 0.0
    %1310 = vmatpush.msra.mxu0 %v102
    %1311 = vmatmul.f32.gmra.mxu0 %v1290
    %v1312 = vpop.f32.mrf.mxu0
    %v1313 = vadd.f32 0.0, %v1312
    %1314 = vmatmul.f32.gmra.mxu0 %v1293
    %v1315 = vpop.f32.mrf.mxu0
    %v1316 = vadd.f32 0.0, %v1315
    %1317 = vdwg.mxu0
    %v1319 = vsel %vm100, %v1316, 0
    %1321 = vmatpush.msra.mxu0 0.0
    %1322 = vmatpush.msra.mxu0 0.0
    %1323 = vmatpush.msra.mxu0 0.0
    %1324 = vmatpush.msra.mxu0 0.0
    %1325 = vmatpush.msra.mxu0 0.0
    %1326 = vmatpush.msra.mxu0 0.0
    %1327 = vmatpush.msra.mxu0 0.0
    %1328 = vmatpush.msra.mxu0 0.0
    %1329 = vmatpush.msra.mxu0 0.0
    %1330 = vmatpush.msra.mxu0 0.0
    %1331 = vmatpush.msra.mxu0 0.0
    %1332 = vmatpush.msra.mxu0 0.0
    %1333 = vmatpush.msra.mxu0 0.0
    %1334 = vmatpush.msra.mxu0 0.0
    %1335 = vmatpush.msra.mxu0 %v1319
    %1336 = vmatpush.msra.mxu0 %v1313
    %1337 = vmatmul.f32.gmra.mxu0 %v132
    %v1338 = vpop.f32.mrf.mxu0
    %v1339 = vadd.f32 %v128, %v1338
    %1340 = vmatmul.f32.gmra.mxu0 %v135
    %v1341 = vpop.f32.mrf.mxu0
    %v1342 = vadd.f32 %v128, %v1341
    %1343 = vdwg.mxu0
    %v1344 = vmax.f32 %v1339, 0.0
    %v1345 = vmax.f32 %v1342, 0.0
    %v1347 = vsel %vm165, %v1344, 0
    %v1350 = vsel %vm165, %v1345, 0
    %1352 = vmatpush.msra.mxu0 0.0
    %1353 = vmatpush.msra.mxu0 0.0
    %1354 = vmatpush.msra.mxu0 0.0
    %1355 = vmatpush.msra.mxu0 0.0
    %1356 = vmatpush.msra.mxu0 0.0
    %1357 = vmatpush.msra.mxu0 0.0
    %1358 = vmatpush.msra.mxu0 0.0
    %1359 = vmatpush.msra.mxu0 0.0
    %1360 = vmatpush.msra.mxu0 0.0
    %1361 = vmatpush.msra.mxu0 0.0
    %1362 = vmatpush.msra.mxu0 0.0
    %1363 = vmatpush.msra.mxu0 0.0
    %1364 = vmatpush.msra.mxu0 %v79
    %1365 = vmatpush.msra.mxu0 %v78
    %1366 = vmatpush.msra.mxu0 %v77
    %1367 = vmatpush.msra.mxu0 %v76
    %1368 = vmatmul.f32.gmra.mxu0 %v1347
    %v1369 = vpop.f32.mrf.mxu0
    %v1370 = vadd.f32 0.0, %v1369
    %1371 = vmatmul.f32.gmra.mxu0 %v1350
    %v1372 = vpop.f32.mrf.mxu0
    %v1373 = vadd.f32 0.0, %v1372
    %1374 = vdwg.mxu0
    %v1376 = vsel %vm100, %v1373, 0
    %1378 = vmatpush.msra.mxu0 0.0
    %1379 = vmatpush.msra.mxu0 0.0
    %1380 = vmatpush.msra.mxu0 0.0
    %1381 = vmatpush.msra.mxu0 0.0
    %1382 = vmatpush.msra.mxu0 0.0
    %1383 = vmatpush.msra.mxu0 0.0
    %1384 = vmatpush.msra.mxu0 0.0
    %1385 = vmatpush.msra.mxu0 0.0
    %1386 = vmatpush.msra.mxu0 0.0
    %1387 = vmatpush.msra.mxu0 0.0
    %1388 = vmatpush.msra.mxu0 0.0
    %1389 = vmatpush.msra.mxu0 0.0
    %1390 = vmatpush.msra.mxu0 0.0
    %1391 = vmatpush.msra.mxu0 0.0
    %1392 = vmatpush.msra.mxu0 %v1376
    %1393 = vmatpush.msra.mxu0 %v1370
    %1394 = vmatmul.f32.gmra.mxu0 %v132
    %v1395 = vpop.f32.mrf.mxu0
    %v1396 = vadd.f32 %v196, %v1395
    %1397 = vmatmul.f32.gmra.mxu0 %v135
    %v1398 = vpop.f32.mrf.mxu0
    %v1399 = vadd.f32 %v196, %v1398
    %1400 = vdwg.mxu0
    %v1401 = vmax.f32 %v1396, 0.0
    %v1402 = vmax.f32 %v1399, 0.0
    %v1404 = vsel %vm100, %v1402, 0
    %1406 = vmatpush.msra.mxu0 0.0
    %1407 = vmatpush.msra.mxu0 0.0
    %1408 = vmatpush.msra.mxu0 0.0
    %1409 = vmatpush.msra.mxu0 0.0
    %1410 = vmatpush.msra.mxu0 0.0
    %1411 = vmatpush.msra.mxu0 0.0
    %1412 = vmatpush.msra.mxu0 0.0
    %1413 = vmatpush.msra.mxu0 0.0
    %1414 = vmatpush.msra.mxu0 0.0
    %1415 = vmatpush.msra.mxu0 0.0
    %1416 = vmatpush.msra.mxu0 0.0
    %1417 = vmatpush.msra.mxu0 0.0
    %1418 = vmatpush.msra.mxu0 0.0
    %1419 = vmatpush.msra.mxu0 0.0
    %1420 = vmatpush.msra.mxu0 %v1404
    %1421 = vmatpush.msra.mxu0 %v1401
    %1422 = vmatmul.f32.gmra.mxu0 %v237
    %v1423 = vpop.f32.mrf.mxu0
    %v1424 = vadd.f32 %v229, %v1423
    %1425 = vmatmul.f32.gmra.mxu0 %v240
    %v1426 = vpop.f32.mrf.mxu0
    %v1427 = vadd.f32 %v234, %v1426
    %1428 = vdwg.mxu0
    %s1429 = sld [smem:[#allocation2 + $0x380]]
    %v1430 = vstv %s1429
    %v1431 = vmul.f32 %v1430, %v1424
    %v1432 = vmul.f32 %v1430, %v1427
    %v1433 = vadd.f32 %v1266, %v1431
    %v1434 = vadd.f32 %v1267, %v1432
    %s1435 = sld [smem:[#allocation2 + $0x381]]
    %v1436 = vstv %s1435
    %v1437 = vmul.f32 %v1436, %v1424
    %v1438 = vmul.f32 %v1436, %v1427
    %v1439 = vadd.f32 %v1272, %v1437
    %v1440 = vadd.f32 %v1273, %v1438
    %s1441 = sld [smem:[#allocation2 + $0x382]]
    %v1442 = vstv %s1441
    %v1443 = vmul.f32 %v1442, %v1424
    %v1444 = vmul.f32 %v1442, %v1427
    %v1445 = vadd.f32 %v1278, %v1443
    %v1446 = vadd.f32 %v1279, %v1444
    %s1447 = sld [smem:[#allocation2 + $0x383]]
    %v1448 = vstv %s1447
    %v1449 = vmul.f32 %v1448, %v1424
    %v1450 = vmul.f32 %v1448, %v1427
    %v1451 = vadd.f32 %v1284, %v1449
    %v1452 = vadd.f32 %v1285, %v1450
    %s1453 = sld [smem:[#allocation4]]
    %v1454 = vstv %s1453
    %v1455 = vadd.f32 %v1433, %v1454
    %v1456 = vadd.f32 %v1434, %v1454
    %v1458 = vperm.slane %v87, 0
    %vm1460 = vcmask 130048
    %v1462 = vsel %vm1460, %v1455, 0
    %v1465 = vsel %vm1460, %v1456, 0
    %1467 = vmatpush.msra.mxu0 0.0
    %1468 = vmatpush.msra.mxu0 0.0
    %1469 = vmatpush.msra.mxu0 0.0
    %1470 = vmatpush.msra.mxu0 0.0
    %1471 = vmatpush.msra.mxu0 0.0
    %1472 = vmatpush.msra.mxu0 0.0
    %1473 = vmatpush.msra.mxu0 0.0
    %1474 = vmatpush.msra.mxu0 0.0
    %1475 = vmatpush.msra.mxu0 0.0
    %1476 = vmatpush.msra.mxu0 0.0
    %1477 = vmatpush.msra.mxu0 0.0
    %1478 = vmatpush.msra.mxu0 0.0
    %1479 = vmatpush.msra.mxu0 0.0
    %1480 = vmatpush.msra.mxu0 0.0
    %1481 = vmatpush.msra.mxu0 %v86
    %1482 = vmatpush.msra.mxu0 %v85
    %1483 = vmatmul.f32.gmra.mxu0 %v1462
    %v1484 = vpop.f32.mrf.mxu0
    %v1485 = vadd.f32 %v1458, %v1484
    %1486 = vmatmul.f32.gmra.mxu0 %v1465
    %v1487 = vpop.f32.mrf.mxu0
    %v1488 = vadd.f32 %v1458, %v1487
    %1489 = vdwg.mxu0
    %v1490 = vmax.f32 %v1485, 0.0
    %v1491 = vmax.f32 %v1488, 0.0
    %v1493 = vperm.slane %v90, 0
    %v1496 = vsel %vm1460, %v1490, 0
    %v1499 = vsel %vm1460, %v1491, 0
    %1501 = vmatpush.msra.mxu0 0.0
    %1502 = vmatpush.msra.mxu0 0.0
    %1503 = vmatpush.msra.mxu0 0.0
    %1504 = vmatpush.msra.mxu0 0.0
    %1505 = vmatpush.msra.mxu0 0.0
    %1506 = vmatpush.msra.mxu0 0.0
    %1507 = vmatpush.msra.mxu0 0.0
    %1508 = vmatpush.msra.mxu0 0.0
    %1509 = vmatpush.msra.mxu0 0.0
    %1510 = vmatpush.msra.mxu0 0.0
    %1511 = vmatpush.msra.mxu0 0.0
    %1512 = vmatpush.msra.mxu0 0.0
    %1513 = vmatpush.msra.mxu0 0.0
    %1514 = vmatpush.msra.mxu0 0.0
    %1515 = vmatpush.msra.mxu0 %v89
    %1516 = vmatpush.msra.mxu0 %v88
    %1517 = vmatmul.f32.gmra.mxu0 %v1496
    %v1518 = vpop.f32.mrf.mxu0
    %v1519 = vadd.f32 %v1493, %v1518
    %1520 = vmatmul.f32.gmra.mxu0 %v1499
    %v1521 = vpop.f32.mrf.mxu0
    %v1522 = vadd.f32 %v1493, %v1521
    %1523 = vdwg.mxu0
    %1524 = vst.msk [vmem:[%s14] sm:$0xff] %vm1460, %v1519
    %vm1525 = vcmask 123904
    %1526 = vst.msk [vmem:[%s14 + $0x8] sm:$0x3] %vm1525, %v1522
    %s1527 = sld [smem:[#allocation4 + $0x1]]
    %v1528 = vstv %s1527
    %v1529 = vadd.f32 %v1439, %v1528
    %v1530 = vadd.f32 %v1440, %v1528
    %v1532 = vsel %vm1460, %v1529, 0
    %v1535 = vsel %vm1460, %v1530, 0
    %1537 = vmatpush.msra.mxu0 0.0
    %1538 = vmatpush.msra.mxu0 0.0
    %1539 = vmatpush.msra.mxu0 0.0
    %1540 = vmatpush.msra.mxu0 0.0
    %1541 = vmatpush.msra.mxu0 0.0
    %1542 = vmatpush.msra.mxu0 0.0
    %1543 = vmatpush.msra.mxu0 0.0
    %1544 = vmatpush.msra.mxu0 0.0
    %1545 = vmatpush.msra.mxu0 0.0
    %1546 = vmatpush.msra.mxu0 0.0
    %1547 = vmatpush.msra.mxu0 0.0
    %1548 = vmatpush.msra.mxu0 0.0
    %1549 = vmatpush.msra.mxu0 0.0
    %1550 = vmatpush.msra.mxu0 0.0
    %1551 = vmatpush.msra.mxu0 %v86
    %1552 = vmatpush.msra.mxu0 %v85
    %1553 = vmatmul.f32.gmra.mxu0 %v1532
    %v1554 = vpop.f32.mrf.mxu0
    %v1555 = vadd.f32 %v1458, %v1554
    %1556 = vmatmul.f32.gmra.mxu0 %v1535
    %v1557 = vpop.f32.mrf.mxu0
    %v1558 = vadd.f32 %v1458, %v1557
    %1559 = vdwg.mxu0
    %v1560 = vmax.f32 %v1555, 0.0
    %v1561 = vmax.f32 %v1558, 0.0
    %v1563 = vsel %vm1460, %v1560, 0
    %v1566 = vsel %vm1460, %v1561, 0
    %1568 = vmatpush.msra.mxu0 0.0
    %1569 = vmatpush.msra.mxu0 0.0
    %1570 = vmatpush.msra.mxu0 0.0
    %1571 = vmatpush.msra.mxu0 0.0
    %1572 = vmatpush.msra.mxu0 0.0
    %1573 = vmatpush.msra.mxu0 0.0
    %1574 = vmatpush.msra.mxu0 0.0
    %1575 = vmatpush.msra.mxu0 0.0
    %1576 = vmatpush.msra.mxu0 0.0
    %1577 = vmatpush.msra.mxu0 0.0
    %1578 = vmatpush.msra.mxu0 0.0
    %1579 = vmatpush.msra.mxu0 0.0
    %1580 = vmatpush.msra.mxu0 0.0
    %1581 = vmatpush.msra.mxu0 0.0
    %1582 = vmatpush.msra.mxu0 %v89
    %1583 = vmatpush.msra.mxu0 %v88
    %1584 = vmatmul.f32.gmra.mxu0 %v1563
    %v1585 = vpop.f32.mrf.mxu0
    %v1586 = vadd.f32 %v1493, %v1585
    %1587 = vmatmul.f32.gmra.mxu0 %v1566
    %v1588 = vpop.f32.mrf.mxu0
    %v1589 = vadd.f32 %v1493, %v1588
    %1590 = vdwg.mxu0
    %s1591 = scalar_lea.vmem %s14, 16
    %1592 = vst.msk [vmem:[%s1591] sm:$0xff] %vm1460, %v1586
    %1593 = vst.msk [vmem:[%s1591 + $0x8] sm:$0x3] %vm1525, %v1589
    %s1594 = sld [smem:[#allocation4 + $0x2]]
    %v1595 = vstv %s1594
    %v1596 = vadd.f32 %v1445, %v1595
    %v1597 = vadd.f32 %v1446, %v1595
    %v1599 = vsel %vm1460, %v1596, 0
    %v1602 = vsel %vm1460, %v1597, 0
    %1604 = vmatpush.msra.mxu0 0.0
    %1605 = vmatpush.msra.mxu0 0.0
    %1606 = vmatpush.msra.mxu0 0.0
    %1607 = vmatpush.msra.mxu0 0.0
    %1608 = vmatpush.msra.mxu0 0.0
    %1609 = vmatpush.msra.mxu0 0.0
    %1610 = vmatpush.msra.mxu0 0.0
    %1611 = vmatpush.msra.mxu0 0.0
    %1612 = vmatpush.msra.mxu0 0.0
    %1613 = vmatpush.msra.mxu0 0.0
    %1614 = vmatpush.msra.mxu0 0.0
    %1615 = vmatpush.msra.mxu0 0.0
    %1616 = vmatpush.msra.mxu0 0.0
    %1617 = vmatpush.msra.mxu0 0.0
    %1618 = vmatpush.msra.mxu0 %v86
    %1619 = vmatpush.msra.mxu0 %v85
    %1620 = vmatmul.f32.gmra.mxu0 %v1599
    %v1621 = vpop.f32.mrf.mxu0
    %v1622 = vadd.f32 %v1458, %v1621
    %1623 = vmatmul.f32.gmra.mxu0 %v1602
    %v1624 = vpop.f32.mrf.mxu0
    %v1625 = vadd.f32 %v1458, %v1624
    %1626 = vdwg.mxu0
    %v1627 = vmax.f32 %v1622, 0.0
    %v1628 = vmax.f32 %v1625, 0.0
    %v1630 = vsel %vm1460, %v1627, 0
    %v1633 = vsel %vm1460, %v1628, 0
    %1635 = vmatpush.msra.mxu0 0.0
    %1636 = vmatpush.msra.mxu0 0.0
    %1637 = vmatpush.msra.mxu0 0.0
    %1638 = vmatpush.msra.mxu0 0.0
    %1639 = vmatpush.msra.mxu0 0.0
    %1640 = vmatpush.msra.mxu0 0.0
    %1641 = vmatpush.msra.mxu0 0.0
    %1642 = vmatpush.msra.mxu0 0.0
    %1643 = vmatpush.msra.mxu0 0.0
    %1644 = vmatpush.msra.mxu0 0.0
    %1645 = vmatpush.msra.mxu0 0.0
    %1646 = vmatpush.msra.mxu0 0.0
    %1647 = vmatpush.msra.mxu0 0.0
    %1648 = vmatpush.msra.mxu0 0.0
    %1649 = vmatpush.msra.mxu0 %v89
    %1650 = vmatpush.msra.mxu0 %v88
    %1651 = vmatmul.f32.gmra.mxu0 %v1630
    %v1652 = vpop.f32.mrf.mxu0
    %v1653 = vadd.f32 %v1493, %v1652
    %1654 = vmatmul.f32.gmra.mxu0 %v1633
    %v1655 = vpop.f32.mrf.mxu0
    %v1656 = vadd.f32 %v1493, %v1655
    %1657 = vdwg.mxu0
    %s1658 = scalar_lea.vmem %s14, 32
    %1659 = vst.msk [vmem:[%s1658] sm:$0xff] %vm1460, %v1653
    %1660 = vst.msk [vmem:[%s1658 + $0x8] sm:$0x3] %vm1525, %v1656
    %s1661 = sld [smem:[#allocation4 + $0x3]]
    %v1662 = vstv %s1661
    %v1663 = vadd.f32 %v1451, %v1662
    %v1664 = vadd.f32 %v1452, %v1662
    %v1666 = vsel %vm1460, %v1663, 0
    %v1669 = vsel %vm1460, %v1664, 0
    %1671 = vmatpush.msra.mxu0 0.0
    %1672 = vmatpush.msra.mxu0 0.0
    %1673 = vmatpush.msra.mxu0 0.0
    %1674 = vmatpush.msra.mxu0 0.0
    %1675 = vmatpush.msra.mxu0 0.0
    %1676 = vmatpush.msra.mxu0 0.0
    %1677 = vmatpush.msra.mxu0 0.0
    %1678 = vmatpush.msra.mxu0 0.0
    %1679 = vmatpush.msra.mxu0 0.0
    %1680 = vmatpush.msra.mxu0 0.0
    %1681 = vmatpush.msra.mxu0 0.0
    %1682 = vmatpush.msra.mxu0 0.0
    %1683 = vmatpush.msra.mxu0 0.0
    %1684 = vmatpush.msra.mxu0 0.0
    %1685 = vmatpush.msra.mxu0 %v86
    %1686 = vmatpush.msra.mxu0 %v85
    %1687 = vmatmul.f32.gmra.mxu0 %v1666
    %v1688 = vpop.f32.mrf.mxu0
    %v1689 = vadd.f32 %v1458, %v1688
    %1690 = vmatmul.f32.gmra.mxu0 %v1669
    %v1691 = vpop.f32.mrf.mxu0
    %v1692 = vadd.f32 %v1458, %v1691
    %1693 = vdwg.mxu0
    %v1694 = vmax.f32 %v1689, 0.0
    %v1695 = vmax.f32 %v1692, 0.0
    %v1697 = vsel %vm1460, %v1694, 0
    %v1700 = vsel %vm1460, %v1695, 0
    %1702 = vmatpush.msra.mxu0 0.0
    %1703 = vmatpush.msra.mxu0 0.0
    %1704 = vmatpush.msra.mxu0 0.0
    %1705 = vmatpush.msra.mxu0 0.0
    %1706 = vmatpush.msra.mxu0 0.0
    %1707 = vmatpush.msra.mxu0 0.0
    %1708 = vmatpush.msra.mxu0 0.0
    %1709 = vmatpush.msra.mxu0 0.0
    %1710 = vmatpush.msra.mxu0 0.0
    %1711 = vmatpush.msra.mxu0 0.0
    %1712 = vmatpush.msra.mxu0 0.0
    %1713 = vmatpush.msra.mxu0 0.0
    %1714 = vmatpush.msra.mxu0 0.0
    %1715 = vmatpush.msra.mxu0 0.0
    %1716 = vmatpush.msra.mxu0 %v89
    %1717 = vmatpush.msra.mxu0 %v88
    %1718 = vmatmul.f32.gmra.mxu0 %v1697
    %v1719 = vpop.f32.mrf.mxu0
    %v1720 = vadd.f32 %v1493, %v1719
    %1721 = vmatmul.f32.gmra.mxu0 %v1700
    %v1722 = vpop.f32.mrf.mxu0
    %v1723 = vadd.f32 %v1493, %v1722
    %1724 = vdwg.mxu0
    %s1725 = scalar_lea.vmem %s14, 48
    %1726 = vst.msk [vmem:[%s1725] sm:$0xff] %vm1460, %v1720
    %1727 = vst.msk [vmem:[%s1725 + $0x8] sm:$0x3] %vm1525, %v1723
    %s1728 = scalar_lea.vmem %s0, 128
    %v1729 = vld [vmem:[%s1728] sm:$0xff]
    %v1730 = vld [vmem:[%s1728 + $0x8] sm:$0xf]
    %v1732 = vsel %vm93, %v1729, 0
    %v1735 = vsel %vm93, %v1730, 0
    %1737 = vmatpush.msra.mxu0 0.0
    %1738 = vmatpush.msra.mxu0 0.0
    %1739 = vmatpush.msra.mxu0 0.0
    %1740 = vmatpush.msra.mxu0 0.0
    %1741 = vmatpush.msra.mxu0 0.0
    %1742 = vmatpush.msra.mxu0 0.0
    %1743 = vmatpush.msra.mxu0 0.0
    %1744 = vmatpush.msra.mxu0 0.0
    %1745 = vmatpush.msra.mxu0 0.0
    %1746 = vmatpush.msra.mxu0 0.0
    %1747 = vmatpush.msra.mxu0 0.0
    %1748 = vmatpush.msra.mxu0 0.0
    %1749 = vmatpush.msra.mxu0 0.0
    %1750 = vmatpush.msra.mxu0 0.0
    %1751 = vmatpush.msra.mxu0 0.0
    %1752 = vmatpush.msra.mxu0 %v102
    %1753 = vmatmul.f32.gmra.mxu0 %v1732
    %v1754 = vpop.f32.mrf.mxu0
    %v1755 = vadd.f32 0.0, %v1754
    %1756 = vmatmul.f32.gmra.mxu0 %v1735
    %v1757 = vpop.f32.mrf.mxu0
    %v1758 = vadd.f32 0.0, %v1757
    %1759 = vdwg.mxu0
    %v1761 = vsel %vm100, %v1758, 0
    %1763 = vmatpush.msra.mxu0 0.0
    %1764 = vmatpush.msra.mxu0 0.0
    %1765 = vmatpush.msra.mxu0 0.0
    %1766 = vmatpush.msra.mxu0 0.0
    %1767 = vmatpush.msra.mxu0 0.0
    %1768 = vmatpush.msra.mxu0 0.0
    %1769 = vmatpush.msra.mxu0 0.0
    %1770 = vmatpush.msra.mxu0 0.0
    %1771 = vmatpush.msra.mxu0 0.0
    %1772 = vmatpush.msra.mxu0 0.0
    %1773 = vmatpush.msra.mxu0 0.0
    %1774 = vmatpush.msra.mxu0 0.0
    %1775 = vmatpush.msra.mxu0 0.0
    %1776 = vmatpush.msra.mxu0 0.0
    %1777 = vmatpush.msra.mxu0 %v1761
    %1778 = vmatpush.msra.mxu0 %v1755
    %1779 = vmatmul.f32.gmra.mxu0 %v132
    %v1780 = vpop.f32.mrf.mxu0
    %v1781 = vadd.f32 %v128, %v1780
    %1782 = vmatmul.f32.gmra.mxu0 %v135
    %v1783 = vpop.f32.mrf.mxu0
    %v1784 = vadd.f32 %v128, %v1783
    %1785 = vdwg.mxu0
    %v1786 = vmax.f32 %v1781, 0.0
    %v1787 = vmax.f32 %v1784, 0.0
    %v1789 = vsel %vm165, %v1786, 0
    %v1792 = vsel %vm165, %v1787, 0
    %1794 = vmatpush.msra.mxu0 0.0
    %1795 = vmatpush.msra.mxu0 0.0
    %1796 = vmatpush.msra.mxu0 0.0
    %1797 = vmatpush.msra.mxu0 0.0
    %1798 = vmatpush.msra.mxu0 0.0
    %1799 = vmatpush.msra.mxu0 0.0
    %1800 = vmatpush.msra.mxu0 0.0
    %1801 = vmatpush.msra.mxu0 0.0
    %1802 = vmatpush.msra.mxu0 0.0
    %1803 = vmatpush.msra.mxu0 0.0
    %1804 = vmatpush.msra.mxu0 0.0
    %1805 = vmatpush.msra.mxu0 0.0
    %1806 = vmatpush.msra.mxu0 %v79
    %1807 = vmatpush.msra.mxu0 %v78
    %1808 = vmatpush.msra.mxu0 %v77
    %1809 = vmatpush.msra.mxu0 %v76
    %1810 = vmatmul.f32.gmra.mxu0 %v1789
    %v1811 = vpop.f32.mrf.mxu0
    %v1812 = vadd.f32 0.0, %v1811
    %1813 = vmatmul.f32.gmra.mxu0 %v1792
    %v1814 = vpop.f32.mrf.mxu0
    %v1815 = vadd.f32 0.0, %v1814
    %1816 = vdwg.mxu0
    %v1818 = vsel %vm100, %v1815, 0
    %1820 = vmatpush.msra.mxu0 0.0
    %1821 = vmatpush.msra.mxu0 0.0
    %1822 = vmatpush.msra.mxu0 0.0
    %1823 = vmatpush.msra.mxu0 0.0
    %1824 = vmatpush.msra.mxu0 0.0
    %1825 = vmatpush.msra.mxu0 0.0
    %1826 = vmatpush.msra.mxu0 0.0
    %1827 = vmatpush.msra.mxu0 0.0
    %1828 = vmatpush.msra.mxu0 0.0
    %1829 = vmatpush.msra.mxu0 0.0
    %1830 = vmatpush.msra.mxu0 0.0
    %1831 = vmatpush.msra.mxu0 0.0
    %1832 = vmatpush.msra.mxu0 0.0
    %1833 = vmatpush.msra.mxu0 0.0
    %1834 = vmatpush.msra.mxu0 %v1818
    %1835 = vmatpush.msra.mxu0 %v1812
    %1836 = vmatmul.f32.gmra.mxu0 %v132
    %v1837 = vpop.f32.mrf.mxu0
    %v1838 = vadd.f32 %v196, %v1837
    %1839 = vmatmul.f32.gmra.mxu0 %v135
    %v1840 = vpop.f32.mrf.mxu0
    %v1841 = vadd.f32 %v196, %v1840
    %1842 = vdwg.mxu0
    %v1843 = vmax.f32 %v1838, 0.0
    %v1844 = vmax.f32 %v1841, 0.0
    %v1846 = vsel %vm100, %v1844, 0
    %1848 = vmatpush.msra.mxu0 0.0
    %1849 = vmatpush.msra.mxu0 0.0
    %1850 = vmatpush.msra.mxu0 0.0
    %1851 = vmatpush.msra.mxu0 0.0
    %1852 = vmatpush.msra.mxu0 0.0
    %1853 = vmatpush.msra.mxu0 0.0
    %1854 = vmatpush.msra.mxu0 0.0
    %1855 = vmatpush.msra.mxu0 0.0
    %1856 = vmatpush.msra.mxu0 0.0
    %1857 = vmatpush.msra.mxu0 0.0
    %1858 = vmatpush.msra.mxu0 0.0
    %1859 = vmatpush.msra.mxu0 0.0
    %1860 = vmatpush.msra.mxu0 0.0
    %1861 = vmatpush.msra.mxu0 0.0
    %1862 = vmatpush.msra.mxu0 %v1846
    %1863 = vmatpush.msra.mxu0 %v1843
    %1864 = vmatmul.f32.gmra.mxu0 %v237
    %v1865 = vpop.f32.mrf.mxu0
    %v1866 = vadd.f32 %v229, %v1865
    %1867 = vmatmul.f32.gmra.mxu0 %v240
    %v1868 = vpop.f32.mrf.mxu0
    %v1869 = vadd.f32 %v234, %v1868
    %1870 = vdwg.mxu0
    %s1871 = sld [smem:[#allocation2]]
    %v1872 = vstv %s1871
    %v1873 = vmul.f32 %v1872, %v1866
    %v1874 = vmul.f32 %v1872, %v1869
    %s1875 = sld [smem:[#allocation2 + $0x1]]
    %v1876 = vstv %s1875
    %v1877 = vmul.f32 %v1876, %v1866
    %v1878 = vmul.f32 %v1876, %v1869
    %s1879 = sld [smem:[#allocation2 + $0x2]]
    %v1880 = vstv %s1879
    %v1881 = vmul.f32 %v1880, %v1866
    %v1882 = vmul.f32 %v1880, %v1869
    %s1883 = sld [smem:[#allocation2 + $0x3]]
    %v1884 = vstv %s1883
    %v1885 = vmul.f32 %v1884, %v1866
    %v1886 = vmul.f32 %v1884, %v1869
    %s1887 = scalar_lea.vmem %s0, 144
    %v1888 = vld [vmem:[%s1887] sm:$0xff]
    %v1889 = vld [vmem:[%s1887 + $0x8] sm:$0xf]
    %v1891 = vsel %vm93, %v1888, 0
    %v1894 = vsel %vm93, %v1889, 0
    %1896 = vmatpush.msra.mxu0 0.0
    %1897 = vmatpush.msra.mxu0 0.0
    %1898 = vmatpush.msra.mxu0 0.0
    %1899 = vmatpush.msra.mxu0 0.0
    %1900 = vmatpush.msra.mxu0 0.0
    %1901 = vmatpush.msra.mxu0 0.0
    %1902 = vmatpush.msra.mxu0 0.0
    %1903 = vmatpush.msra.mxu0 0.0
    %1904 = vmatpush.msra.mxu0 0.0
    %1905 = vmatpush.msra.mxu0 0.0
    %1906 = vmatpush.msra.mxu0 0.0
    %1907 = vmatpush.msra.mxu0 0.0
    %1908 = vmatpush.msra.mxu0 0.0
    %1909 = vmatpush.msra.mxu0 0.0
    %1910 = vmatpush.msra.mxu0 0.0
    %1911 = vmatpush.msra.mxu0 %v102
    %1912 = vmatmul.f32.gmra.mxu0 %v1891
    %v1913 = vpop.f32.mrf.mxu0
    %v1914 = vadd.f32 0.0, %v1913
    %1915 = vmatmul.f32.gmra.mxu0 %v1894
    %v1916 = vpop.f32.mrf.mxu0
    %v1917 = vadd.f32 0.0, %v1916
    %1918 = vdwg.mxu0
    %v1920 = vsel %vm100, %v1917, 0
    %1922 = vmatpush.msra.mxu0 0.0
    %1923 = vmatpush.msra.mxu0 0.0
    %1924 = vmatpush.msra.mxu0 0.0
    %1925 = vmatpush.msra.mxu0 0.0
    %1926 = vmatpush.msra.mxu0 0.0
    %1927 = vmatpush.msra.mxu0 0.0
    %1928 = vmatpush.msra.mxu0 0.0
    %1929 = vmatpush.msra.mxu0 0.0
    %1930 = vmatpush.msra.mxu0 0.0
    %1931 = vmatpush.msra.mxu0 0.0
    %1932 = vmatpush.msra.mxu0 0.0
    %1933 = vmatpush.msra.mxu0 0.0
    %1934 = vmatpush.msra.mxu0 0.0
    %1935 = vmatpush.msra.mxu0 0.0
    %1936 = vmatpush.msra.mxu0 %v1920
    %1937 = vmatpush.msra.mxu0 %v1914
    %1938 = vmatmul.f32.gmra.mxu0 %v132
    %v1939 = vpop.f32.mrf.mxu0
    %v1940 = vadd.f32 %v128, %v1939
    %1941 = vmatmul.f32.gmra.mxu0 %v135
    %v1942 = vpop.f32.mrf.mxu0
    %v1943 = vadd.f32 %v128, %v1942
    %1944 = vdwg.mxu0
    %v1945 = vmax.f32 %v1940, 0.0
    %v1946 = vmax.f32 %v1943, 0.0
    %v1948 = vsel %vm165, %v1945, 0
    %v1951 = vsel %vm165, %v1946, 0
    %1953 = vmatpush.msra.mxu0 0.0
    %1954 = vmatpush.msra.mxu0 0.0
    %1955 = vmatpush.msra.mxu0 0.0
    %1956 = vmatpush.msra.mxu0 0.0
    %1957 = vmatpush.msra.mxu0 0.0
    %1958 = vmatpush.msra.mxu0 0.0
    %1959 = vmatpush.msra.mxu0 0.0
    %1960 = vmatpush.msra.mxu0 0.0
    %1961 = vmatpush.msra.mxu0 0.0
    %1962 = vmatpush.msra.mxu0 0.0
    %1963 = vmatpush.msra.mxu0 0.0
    %1964 = vmatpush.msra.mxu0 0.0
    %1965 = vmatpush.msra.mxu0 %v79
    %1966 = vmatpush.msra.mxu0 %v78
    %1967 = vmatpush.msra.mxu0 %v77
    %1968 = vmatpush.msra.mxu0 %v76
    %1969 = vmatmul.f32.gmra.mxu0 %v1948
    %v1970 = vpop.f32.mrf.mxu0
    %v1971 = vadd.f32 0.0, %v1970
    %1972 = vmatmul.f32.gmra.mxu0 %v1951
    %v1973 = vpop.f32.mrf.mxu0
    %v1974 = vadd.f32 0.0, %v1973
    %1975 = vdwg.mxu0
    %v1977 = vsel %vm100, %v1974, 0
    %1979 = vmatpush.msra.mxu0 0.0
    %1980 = vmatpush.msra.mxu0 0.0
    %1981 = vmatpush.msra.mxu0 0.0
    %1982 = vmatpush.msra.mxu0 0.0
    %1983 = vmatpush.msra.mxu0 0.0
    %1984 = vmatpush.msra.mxu0 0.0
    %1985 = vmatpush.msra.mxu0 0.0
    %1986 = vmatpush.msra.mxu0 0.0
    %1987 = vmatpush.msra.mxu0 0.0
    %1988 = vmatpush.msra.mxu0 0.0
    %1989 = vmatpush.msra.mxu0 0.0
    %1990 = vmatpush.msra.mxu0 0.0
    %1991 = vmatpush.msra.mxu0 0.0
    %1992 = vmatpush.msra.mxu0 0.0
    %1993 = vmatpush.msra.mxu0 %v1977
    %1994 = vmatpush.msra.mxu0 %v1971
    %1995 = vmatmul.f32.gmra.mxu0 %v132
    %v1996 = vpop.f32.mrf.mxu0
    %v1997 = vadd.f32 %v196, %v1996
    %1998 = vmatmul.f32.gmra.mxu0 %v135
    %v1999 = vpop.f32.mrf.mxu0
    %v2000 = vadd.f32 %v196, %v1999
    %2001 = vdwg.mxu0
    %v2002 = vmax.f32 %v1997, 0.0
    %v2003 = vmax.f32 %v2000, 0.0
    %v2005 = vsel %vm100, %v2003, 0
    %2007 = vmatpush.msra.mxu0 0.0
    %2008 = vmatpush.msra.mxu0 0.0
    %2009 = vmatpush.msra.mxu0 0.0
    %2010 = vmatpush.msra.mxu0 0.0
    %2011 = vmatpush.msra.mxu0 0.0
    %2012 = vmatpush.msra.mxu0 0.0
    %2013 = vmatpush.msra.mxu0 0.0
    %2014 = vmatpush.msra.mxu0 0.0
    %2015 = vmatpush.msra.mxu0 0.0
    %2016 = vmatpush.msra.mxu0 0.0
    %2017 = vmatpush.msra.mxu0 0.0
    %2018 = vmatpush.msra.mxu0 0.0
    %2019 = vmatpush.msra.mxu0 0.0
    %2020 = vmatpush.msra.mxu0 0.0
    %2021 = vmatpush.msra.mxu0 %v2005
    %2022 = vmatpush.msra.mxu0 %v2002
    %2023 = vmatmul.f32.gmra.mxu0 %v237
    %v2024 = vpop.f32.mrf.mxu0
    %v2025 = vadd.f32 %v229, %v2024
    %2026 = vmatmul.f32.gmra.mxu0 %v240
    %v2027 = vpop.f32.mrf.mxu0
    %v2028 = vadd.f32 %v234, %v2027
    %2029 = vdwg.mxu0
    %s2030 = sld [smem:[#allocation2 + $0x80]]
    %v2031 = vstv %s2030
    %v2032 = vmul.f32 %v2031, %v2025
    %v2033 = vmul.f32 %v2031, %v2028
    %v2034 = vadd.f32 %v1873, %v2032
    %v2035 = vadd.f32 %v1874, %v2033
    %s2036 = sld [smem:[#allocation2 + $0x81]]
    %v2037 = vstv %s2036
    %v2038 = vmul.f32 %v2037, %v2025
    %v2039 = vmul.f32 %v2037, %v2028
    %v2040 = vadd.f32 %v1877, %v2038
    %v2041 = vadd.f32 %v1878, %v2039
    %s2042 = sld [smem:[#allocation2 + $0x82]]
    %v2043 = vstv %s2042
    %v2044 = vmul.f32 %v2043, %v2025
    %v2045 = vmul.f32 %v2043, %v2028
    %v2046 = vadd.f32 %v1881, %v2044
    %v2047 = vadd.f32 %v1882, %v2045
    %s2048 = sld [smem:[#allocation2 + $0x83]]
    %v2049 = vstv %s2048
    %v2050 = vmul.f32 %v2049, %v2025
    %v2051 = vmul.f32 %v2049, %v2028
    %v2052 = vadd.f32 %v1885, %v2050
    %v2053 = vadd.f32 %v1886, %v2051
    %s2054 = scalar_lea.vmem %s0, 160
    %v2055 = vld [vmem:[%s2054] sm:$0xff]
    %v2056 = vld [vmem:[%s2054 + $0x8] sm:$0xf]
    %v2058 = vsel %vm93, %v2055, 0
    %v2061 = vsel %vm93, %v2056, 0
    %2063 = vmatpush.msra.mxu0 0.0
    %2064 = vmatpush.msra.mxu0 0.0
    %2065 = vmatpush.msra.mxu0 0.0
    %2066 = vmatpush.msra.mxu0 0.0
    %2067 = vmatpush.msra.mxu0 0.0
    %2068 = vmatpush.msra.mxu0 0.0
    %2069 = vmatpush.msra.mxu0 0.0
    %2070 = vmatpush.msra.mxu0 0.0
    %2071 = vmatpush.msra.mxu0 0.0
    %2072 = vmatpush.msra.mxu0 0.0
    %2073 = vmatpush.msra.mxu0 0.0
    %2074 = vmatpush.msra.mxu0 0.0
    %2075 = vmatpush.msra.mxu0 0.0
    %2076 = vmatpush.msra.mxu0 0.0
    %2077 = vmatpush.msra.mxu0 0.0
    %2078 = vmatpush.msra.mxu0 %v102
    %2079 = vmatmul.f32.gmra.mxu0 %v2058
    %v2080 = vpop.f32.mrf.mxu0
    %v2081 = vadd.f32 0.0, %v2080
    %2082 = vmatmul.f32.gmra.mxu0 %v2061
    %v2083 = vpop.f32.mrf.mxu0
    %v2084 = vadd.f32 0.0, %v2083
    %2085 = vdwg.mxu0
    %v2087 = vsel %vm100, %v2084, 0
    %2089 = vmatpush.msra.mxu0 0.0
    %2090 = vmatpush.msra.mxu0 0.0
    %2091 = vmatpush.msra.mxu0 0.0
    %2092 = vmatpush.msra.mxu0 0.0
    %2093 = vmatpush.msra.mxu0 0.0
    %2094 = vmatpush.msra.mxu0 0.0
    %2095 = vmatpush.msra.mxu0 0.0
    %2096 = vmatpush.msra.mxu0 0.0
    %2097 = vmatpush.msra.mxu0 0.0
    %2098 = vmatpush.msra.mxu0 0.0
    %2099 = vmatpush.msra.mxu0 0.0
    %2100 = vmatpush.msra.mxu0 0.0
    %2101 = vmatpush.msra.mxu0 0.0
    %2102 = vmatpush.msra.mxu0 0.0
    %2103 = vmatpush.msra.mxu0 %v2087
    %2104 = vmatpush.msra.mxu0 %v2081
    %2105 = vmatmul.f32.gmra.mxu0 %v132
    %v2106 = vpop.f32.mrf.mxu0
    %v2107 = vadd.f32 %v128, %v2106
    %2108 = vmatmul.f32.gmra.mxu0 %v135
    %v2109 = vpop.f32.mrf.mxu0
    %v2110 = vadd.f32 %v128, %v2109
    %2111 = vdwg.mxu0
    %v2112 = vmax.f32 %v2107, 0.0
    %v2113 = vmax.f32 %v2110, 0.0
    %v2115 = vsel %vm165, %v2112, 0
    %v2118 = vsel %vm165, %v2113, 0
    %2120 = vmatpush.msra.mxu0 0.0
    %2121 = vmatpush.msra.mxu0 0.0
    %2122 = vmatpush.msra.mxu0 0.0
    %2123 = vmatpush.msra.mxu0 0.0
    %2124 = vmatpush.msra.mxu0 0.0
    %2125 = vmatpush.msra.mxu0 0.0
    %2126 = vmatpush.msra.mxu0 0.0
    %2127 = vmatpush.msra.mxu0 0.0
    %2128 = vmatpush.msra.mxu0 0.0
    %2129 = vmatpush.msra.mxu0 0.0
    %2130 = vmatpush.msra.mxu0 0.0
    %2131 = vmatpush.msra.mxu0 0.0
    %2132 = vmatpush.msra.mxu0 %v79
    %2133 = vmatpush.msra.mxu0 %v78
    %2134 = vmatpush.msra.mxu0 %v77
    %2135 = vmatpush.msra.mxu0 %v76
    %2136 = vmatmul.f32.gmra.mxu0 %v2115
    %v2137 = vpop.f32.mrf.mxu0
    %v2138 = vadd.f32 0.0, %v2137
    %2139 = vmatmul.f32.gmra.mxu0 %v2118
    %v2140 = vpop.f32.mrf.mxu0
    %v2141 = vadd.f32 0.0, %v2140
    %2142 = vdwg.mxu0
    %v2144 = vsel %vm100, %v2141, 0
    %2146 = vmatpush.msra.mxu0 0.0
    %2147 = vmatpush.msra.mxu0 0.0
    %2148 = vmatpush.msra.mxu0 0.0
    %2149 = vmatpush.msra.mxu0 0.0
    %2150 = vmatpush.msra.mxu0 0.0
    %2151 = vmatpush.msra.mxu0 0.0
    %2152 = vmatpush.msra.mxu0 0.0
    %2153 = vmatpush.msra.mxu0 0.0
    %2154 = vmatpush.msra.mxu0 0.0
    %2155 = vmatpush.msra.mxu0 0.0
    %2156 = vmatpush.msra.mxu0 0.0
    %2157 = vmatpush.msra.mxu0 0.0
    %2158 = vmatpush.msra.mxu0 0.0
    %2159 = vmatpush.msra.mxu0 0.0
    %2160 = vmatpush.msra.mxu0 %v2144
    %2161 = vmatpush.msra.mxu0 %v2138
    %2162 = vmatmul.f32.gmra.mxu0 %v132
    %v2163 = vpop.f32.mrf.mxu0
    %v2164 = vadd.f32 %v196, %v2163
    %2165 = vmatmul.f32.gmra.mxu0 %v135
    %v2166 = vpop.f32.mrf.mxu0
    %v2167 = vadd.f32 %v196, %v2166
    %2168 = vdwg.mxu0
    %v2169 = vmax.f32 %v2164, 0.0
    %v2170 = vmax.f32 %v2167, 0.0
    %v2172 = vsel %vm100, %v2170, 0
    %2174 = vmatpush.msra.mxu0 0.0
    %2175 = vmatpush.msra.mxu0 0.0
    %2176 = vmatpush.msra.mxu0 0.0
    %2177 = vmatpush.msra.mxu0 0.0
    %2178 = vmatpush.msra.mxu0 0.0
    %2179 = vmatpush.msra.mxu0 0.0
    %2180 = vmatpush.msra.mxu0 0.0
    %2181 = vmatpush.msra.mxu0 0.0
    %2182 = vmatpush.msra.mxu0 0.0
    %2183 = vmatpush.msra.mxu0 0.0
    %2184 = vmatpush.msra.mxu0 0.0
    %2185 = vmatpush.msra.mxu0 0.0
    %2186 = vmatpush.msra.mxu0 0.0
    %2187 = vmatpush.msra.mxu0 0.0
    %2188 = vmatpush.msra.mxu0 %v2172
    %2189 = vmatpush.msra.mxu0 %v2169
    %2190 = vmatmul.f32.gmra.mxu0 %v237
    %v2191 = vpop.f32.mrf.mxu0
    %v2192 = vadd.f32 %v229, %v2191
    %2193 = vmatmul.f32.gmra.mxu0 %v240
    %v2194 = vpop.f32.mrf.mxu0
    %v2195 = vadd.f32 %v234, %v2194
    %2196 = vdwg.mxu0
    %s2197 = sld [smem:[#allocation2 + $0x100]]
    %v2198 = vstv %s2197
    %v2199 = vmul.f32 %v2198, %v2192
    %v2200 = vmul.f32 %v2198, %v2195
    %v2201 = vadd.f32 %v2034, %v2199
    %v2202 = vadd.f32 %v2035, %v2200
    %s2203 = sld [smem:[#allocation2 + $0x101]]
    %v2204 = vstv %s2203
    %v2205 = vmul.f32 %v2204, %v2192
    %v2206 = vmul.f32 %v2204, %v2195
    %v2207 = vadd.f32 %v2040, %v2205
    %v2208 = vadd.f32 %v2041, %v2206
    %s2209 = sld [smem:[#allocation2 + $0x102]]
    %v2210 = vstv %s2209
    %v2211 = vmul.f32 %v2210, %v2192
    %v2212 = vmul.f32 %v2210, %v2195
    %v2213 = vadd.f32 %v2046, %v2211
    %v2214 = vadd.f32 %v2047, %v2212
    %s2215 = sld [smem:[#allocation2 + $0x103]]
    %v2216 = vstv %s2215
    %v2217 = vmul.f32 %v2216, %v2192
    %v2218 = vmul.f32 %v2216, %v2195
    %v2219 = vadd.f32 %v2052, %v2217
    %v2220 = vadd.f32 %v2053, %v2218
    %s2221 = scalar_lea.vmem %s0, 176
    %v2222 = vld [vmem:[%s2221] sm:$0xff]
    %v2223 = vld [vmem:[%s2221 + $0x8] sm:$0xf]
    %v2225 = vsel %vm93, %v2222, 0
    %v2228 = vsel %vm93, %v2223, 0
    %2230 = vmatpush.msra.mxu0 0.0
    %2231 = vmatpush.msra.mxu0 0.0
    %2232 = vmatpush.msra.mxu0 0.0
    %2233 = vmatpush.msra.mxu0 0.0
    %2234 = vmatpush.msra.mxu0 0.0
    %2235 = vmatpush.msra.mxu0 0.0
    %2236 = vmatpush.msra.mxu0 0.0
    %2237 = vmatpush.msra.mxu0 0.0
    %2238 = vmatpush.msra.mxu0 0.0
    %2239 = vmatpush.msra.mxu0 0.0
    %2240 = vmatpush.msra.mxu0 0.0
    %2241 = vmatpush.msra.mxu0 0.0
    %2242 = vmatpush.msra.mxu0 0.0
    %2243 = vmatpush.msra.mxu0 0.0
    %2244 = vmatpush.msra.mxu0 0.0
    %2245 = vmatpush.msra.mxu0 %v102
    %2246 = vmatmul.f32.gmra.mxu0 %v2225
    %v2247 = vpop.f32.mrf.mxu0
    %v2248 = vadd.f32 0.0, %v2247
    %2249 = vmatmul.f32.gmra.mxu0 %v2228
    %v2250 = vpop.f32.mrf.mxu0
    %v2251 = vadd.f32 0.0, %v2250
    %2252 = vdwg.mxu0
    %v2254 = vsel %vm100, %v2251, 0
    %2256 = vmatpush.msra.mxu0 0.0
    %2257 = vmatpush.msra.mxu0 0.0
    %2258 = vmatpush.msra.mxu0 0.0
    %2259 = vmatpush.msra.mxu0 0.0
    %2260 = vmatpush.msra.mxu0 0.0
    %2261 = vmatpush.msra.mxu0 0.0
    %2262 = vmatpush.msra.mxu0 0.0
    %2263 = vmatpush.msra.mxu0 0.0
    %2264 = vmatpush.msra.mxu0 0.0
    %2265 = vmatpush.msra.mxu0 0.0
    %2266 = vmatpush.msra.mxu0 0.0
    %2267 = vmatpush.msra.mxu0 0.0
    %2268 = vmatpush.msra.mxu0 0.0
    %2269 = vmatpush.msra.mxu0 0.0
    %2270 = vmatpush.msra.mxu0 %v2254
    %2271 = vmatpush.msra.mxu0 %v2248
    %2272 = vmatmul.f32.gmra.mxu0 %v132
    %v2273 = vpop.f32.mrf.mxu0
    %v2274 = vadd.f32 %v128, %v2273
    %2275 = vmatmul.f32.gmra.mxu0 %v135
    %v2276 = vpop.f32.mrf.mxu0
    %v2277 = vadd.f32 %v128, %v2276
    %2278 = vdwg.mxu0
    %v2279 = vmax.f32 %v2274, 0.0
    %v2280 = vmax.f32 %v2277, 0.0
    %v2282 = vsel %vm165, %v2279, 0
    %v2285 = vsel %vm165, %v2280, 0
    %2287 = vmatpush.msra.mxu0 0.0
    %2288 = vmatpush.msra.mxu0 0.0
    %2289 = vmatpush.msra.mxu0 0.0
    %2290 = vmatpush.msra.mxu0 0.0
    %2291 = vmatpush.msra.mxu0 0.0
    %2292 = vmatpush.msra.mxu0 0.0
    %2293 = vmatpush.msra.mxu0 0.0
    %2294 = vmatpush.msra.mxu0 0.0
    %2295 = vmatpush.msra.mxu0 0.0
    %2296 = vmatpush.msra.mxu0 0.0
    %2297 = vmatpush.msra.mxu0 0.0
    %2298 = vmatpush.msra.mxu0 0.0
    %2299 = vmatpush.msra.mxu0 %v79
    %2300 = vmatpush.msra.mxu0 %v78
    %2301 = vmatpush.msra.mxu0 %v77
    %2302 = vmatpush.msra.mxu0 %v76
    %2303 = vmatmul.f32.gmra.mxu0 %v2282
    %v2304 = vpop.f32.mrf.mxu0
    %v2305 = vadd.f32 0.0, %v2304
    %2306 = vmatmul.f32.gmra.mxu0 %v2285
    %v2307 = vpop.f32.mrf.mxu0
    %v2308 = vadd.f32 0.0, %v2307
    %2309 = vdwg.mxu0
    %v2311 = vsel %vm100, %v2308, 0
    %2313 = vmatpush.msra.mxu0 0.0
    %2314 = vmatpush.msra.mxu0 0.0
    %2315 = vmatpush.msra.mxu0 0.0
    %2316 = vmatpush.msra.mxu0 0.0
    %2317 = vmatpush.msra.mxu0 0.0
    %2318 = vmatpush.msra.mxu0 0.0
    %2319 = vmatpush.msra.mxu0 0.0
    %2320 = vmatpush.msra.mxu0 0.0
    %2321 = vmatpush.msra.mxu0 0.0
    %2322 = vmatpush.msra.mxu0 0.0
    %2323 = vmatpush.msra.mxu0 0.0
    %2324 = vmatpush.msra.mxu0 0.0
    %2325 = vmatpush.msra.mxu0 0.0
    %2326 = vmatpush.msra.mxu0 0.0
    %2327 = vmatpush.msra.mxu0 %v2311
    %2328 = vmatpush.msra.mxu0 %v2305
    %2329 = vmatmul.f32.gmra.mxu0 %v132
    %v2330 = vpop.f32.mrf.mxu0
    %v2331 = vadd.f32 %v196, %v2330
    %2332 = vmatmul.f32.gmra.mxu0 %v135
    %v2333 = vpop.f32.mrf.mxu0
    %v2334 = vadd.f32 %v196, %v2333
    %2335 = vdwg.mxu0
    %v2336 = vmax.f32 %v2331, 0.0
    %v2337 = vmax.f32 %v2334, 0.0
    %v2339 = vsel %vm100, %v2337, 0
    %2341 = vmatpush.msra.mxu0 0.0
    %2342 = vmatpush.msra.mxu0 0.0
    %2343 = vmatpush.msra.mxu0 0.0
    %2344 = vmatpush.msra.mxu0 0.0
    %2345 = vmatpush.msra.mxu0 0.0
    %2346 = vmatpush.msra.mxu0 0.0
    %2347 = vmatpush.msra.mxu0 0.0
    %2348 = vmatpush.msra.mxu0 0.0
    %2349 = vmatpush.msra.mxu0 0.0
    %2350 = vmatpush.msra.mxu0 0.0
    %2351 = vmatpush.msra.mxu0 0.0
    %2352 = vmatpush.msra.mxu0 0.0
    %2353 = vmatpush.msra.mxu0 0.0
    %2354 = vmatpush.msra.mxu0 0.0
    %2355 = vmatpush.msra.mxu0 %v2339
    %2356 = vmatpush.msra.mxu0 %v2336
    %2357 = vmatmul.f32.gmra.mxu0 %v237
    %v2358 = vpop.f32.mrf.mxu0
    %v2359 = vadd.f32 %v229, %v2358
    %2360 = vmatmul.f32.gmra.mxu0 %v240
    %v2361 = vpop.f32.mrf.mxu0
    %v2362 = vadd.f32 %v234, %v2361
    %2363 = vdwg.mxu0
    %s2364 = sld [smem:[#allocation2 + $0x180]]
    %v2365 = vstv %s2364
    %v2366 = vmul.f32 %v2365, %v2359
    %v2367 = vmul.f32 %v2365, %v2362
    %v2368 = vadd.f32 %v2201, %v2366
    %v2369 = vadd.f32 %v2202, %v2367
    %s2370 = sld [smem:[#allocation2 + $0x181]]
    %v2371 = vstv %s2370
    %v2372 = vmul.f32 %v2371, %v2359
    %v2373 = vmul.f32 %v2371, %v2362
    %v2374 = vadd.f32 %v2207, %v2372
    %v2375 = vadd.f32 %v2208, %v2373
    %s2376 = sld [smem:[#allocation2 + $0x182]]
    %v2377 = vstv %s2376
    %v2378 = vmul.f32 %v2377, %v2359
    %v2379 = vmul.f32 %v2377, %v2362
    %v2380 = vadd.f32 %v2213, %v2378
    %v2381 = vadd.f32 %v2214, %v2379
    %s2382 = sld [smem:[#allocation2 + $0x183]]
    %v2383 = vstv %s2382
    %v2384 = vmul.f32 %v2383, %v2359
    %v2385 = vmul.f32 %v2383, %v2362
    %v2386 = vadd.f32 %v2219, %v2384
    %v2387 = vadd.f32 %v2220, %v2385
    %s2388 = scalar_lea.vmem %s0, 192
    %v2389 = vld [vmem:[%s2388] sm:$0xff]
    %v2390 = vld [vmem:[%s2388 + $0x8] sm:$0xf]
    %v2392 = vsel %vm93, %v2389, 0
    %v2395 = vsel %vm93, %v2390, 0
    %2397 = vmatpush.msra.mxu0 0.0
    %2398 = vmatpush.msra.mxu0 0.0
    %2399 = vmatpush.msra.mxu0 0.0
    %2400 = vmatpush.msra.mxu0 0.0
    %2401 = vmatpush.msra.mxu0 0.0
    %2402 = vmatpush.msra.mxu0 0.0
    %2403 = vmatpush.msra.mxu0 0.0
    %2404 = vmatpush.msra.mxu0 0.0
    %2405 = vmatpush.msra.mxu0 0.0
    %2406 = vmatpush.msra.mxu0 0.0
    %2407 = vmatpush.msra.mxu0 0.0
    %2408 = vmatpush.msra.mxu0 0.0
    %2409 = vmatpush.msra.mxu0 0.0
    %2410 = vmatpush.msra.mxu0 0.0
    %2411 = vmatpush.msra.mxu0 0.0
    %2412 = vmatpush.msra.mxu0 %v102
    %2413 = vmatmul.f32.gmra.mxu0 %v2392
    %v2414 = vpop.f32.mrf.mxu0
    %v2415 = vadd.f32 0.0, %v2414
    %2416 = vmatmul.f32.gmra.mxu0 %v2395
    %v2417 = vpop.f32.mrf.mxu0
    %v2418 = vadd.f32 0.0, %v2417
    %2419 = vdwg.mxu0
    %v2421 = vsel %vm100, %v2418, 0
    %2423 = vmatpush.msra.mxu0 0.0
    %2424 = vmatpush.msra.mxu0 0.0
    %2425 = vmatpush.msra.mxu0 0.0
    %2426 = vmatpush.msra.mxu0 0.0
    %2427 = vmatpush.msra.mxu0 0.0
    %2428 = vmatpush.msra.mxu0 0.0
    %2429 = vmatpush.msra.mxu0 0.0
    %2430 = vmatpush.msra.mxu0 0.0
    %2431 = vmatpush.msra.mxu0 0.0
    %2432 = vmatpush.msra.mxu0 0.0
    %2433 = vmatpush.msra.mxu0 0.0
    %2434 = vmatpush.msra.mxu0 0.0
    %2435 = vmatpush.msra.mxu0 0.0
    %2436 = vmatpush.msra.mxu0 0.0
    %2437 = vmatpush.msra.mxu0 %v2421
    %2438 = vmatpush.msra.mxu0 %v2415
    %2439 = vmatmul.f32.gmra.mxu0 %v132
    %v2440 = vpop.f32.mrf.mxu0
    %v2441 = vadd.f32 %v128, %v2440
    %2442 = vmatmul.f32.gmra.mxu0 %v135
    %v2443 = vpop.f32.mrf.mxu0
    %v2444 = vadd.f32 %v128, %v2443
    %2445 = vdwg.mxu0
    %v2446 = vmax.f32 %v2441, 0.0
    %v2447 = vmax.f32 %v2444, 0.0
    %v2449 = vsel %vm165, %v2446, 0
    %v2452 = vsel %vm165, %v2447, 0
    %2454 = vmatpush.msra.mxu0 0.0
    %2455 = vmatpush.msra.mxu0 0.0
    %2456 = vmatpush.msra.mxu0 0.0
    %2457 = vmatpush.msra.mxu0 0.0
    %2458 = vmatpush.msra.mxu0 0.0
    %2459 = vmatpush.msra.mxu0 0.0
    %2460 = vmatpush.msra.mxu0 0.0
    %2461 = vmatpush.msra.mxu0 0.0
    %2462 = vmatpush.msra.mxu0 0.0
    %2463 = vmatpush.msra.mxu0 0.0
    %2464 = vmatpush.msra.mxu0 0.0
    %2465 = vmatpush.msra.mxu0 0.0
    %2466 = vmatpush.msra.mxu0 %v79
    %2467 = vmatpush.msra.mxu0 %v78
    %2468 = vmatpush.msra.mxu0 %v77
    %2469 = vmatpush.msra.mxu0 %v76
    %2470 = vmatmul.f32.gmra.mxu0 %v2449
    %v2471 = vpop.f32.mrf.mxu0
    %v2472 = vadd.f32 0.0, %v2471
    %2473 = vmatmul.f32.gmra.mxu0 %v2452
    %v2474 = vpop.f32.mrf.mxu0
    %v2475 = vadd.f32 0.0, %v2474
    %2476 = vdwg.mxu0
    %v2478 = vsel %vm100, %v2475, 0
    %2480 = vmatpush.msra.mxu0 0.0
    %2481 = vmatpush.msra.mxu0 0.0
    %2482 = vmatpush.msra.mxu0 0.0
    %2483 = vmatpush.msra.mxu0 0.0
    %2484 = vmatpush.msra.mxu0 0.0
    %2485 = vmatpush.msra.mxu0 0.0
    %2486 = vmatpush.msra.mxu0 0.0
    %2487 = vmatpush.msra.mxu0 0.0
    %2488 = vmatpush.msra.mxu0 0.0
    %2489 = vmatpush.msra.mxu0 0.0
    %2490 = vmatpush.msra.mxu0 0.0
    %2491 = vmatpush.msra.mxu0 0.0
    %2492 = vmatpush.msra.mxu0 0.0
    %2493 = vmatpush.msra.mxu0 0.0
    %2494 = vmatpush.msra.mxu0 %v2478
    %2495 = vmatpush.msra.mxu0 %v2472
    %2496 = vmatmul.f32.gmra.mxu0 %v132
    %v2497 = vpop.f32.mrf.mxu0
    %v2498 = vadd.f32 %v196, %v2497
    %2499 = vmatmul.f32.gmra.mxu0 %v135
    %v2500 = vpop.f32.mrf.mxu0
    %v2501 = vadd.f32 %v196, %v2500
    %2502 = vdwg.mxu0
    %v2503 = vmax.f32 %v2498, 0.0
    %v2504 = vmax.f32 %v2501, 0.0
    %v2506 = vsel %vm100, %v2504, 0
    %2508 = vmatpush.msra.mxu0 0.0
    %2509 = vmatpush.msra.mxu0 0.0
    %2510 = vmatpush.msra.mxu0 0.0
    %2511 = vmatpush.msra.mxu0 0.0
    %2512 = vmatpush.msra.mxu0 0.0
    %2513 = vmatpush.msra.mxu0 0.0
    %2514 = vmatpush.msra.mxu0 0.0
    %2515 = vmatpush.msra.mxu0 0.0
    %2516 = vmatpush.msra.mxu0 0.0
    %2517 = vmatpush.msra.mxu0 0.0
    %2518 = vmatpush.msra.mxu0 0.0
    %2519 = vmatpush.msra.mxu0 0.0
    %2520 = vmatpush.msra.mxu0 0.0
    %2521 = vmatpush.msra.mxu0 0.0
    %2522 = vmatpush.msra.mxu0 %v2506
    %2523 = vmatpush.msra.mxu0 %v2503
    %2524 = vmatmul.f32.gmra.mxu0 %v237
    %v2525 = vpop.f32.mrf.mxu0
    %v2526 = vadd.f32 %v229, %v2525
    %2527 = vmatmul.f32.gmra.mxu0 %v240
    %v2528 = vpop.f32.mrf.mxu0
    %v2529 = vadd.f32 %v234, %v2528
    %2530 = vdwg.mxu0
    %s2531 = sld [smem:[#allocation2 + $0x200]]
    %v2532 = vstv %s2531
    %v2533 = vmul.f32 %v2532, %v2526
    %v2534 = vmul.f32 %v2532, %v2529
    %v2535 = vadd.f32 %v2368, %v2533
    %v2536 = vadd.f32 %v2369, %v2534
    %s2537 = sld [smem:[#allocation2 + $0x201]]
    %v2538 = vstv %s2537
    %v2539 = vmul.f32 %v2538, %v2526
    %v2540 = vmul.f32 %v2538, %v2529
    %v2541 = vadd.f32 %v2374, %v2539
    %v2542 = vadd.f32 %v2375, %v2540
    %s2543 = sld [smem:[#allocation2 + $0x202]]
    %v2544 = vstv %s2543
    %v2545 = vmul.f32 %v2544, %v2526
    %v2546 = vmul.f32 %v2544, %v2529
    %v2547 = vadd.f32 %v2380, %v2545
    %v2548 = vadd.f32 %v2381, %v2546
    %s2549 = sld [smem:[#allocation2 + $0x203]]
    %v2550 = vstv %s2549
    %v2551 = vmul.f32 %v2550, %v2526
    %v2552 = vmul.f32 %v2550, %v2529
    %v2553 = vadd.f32 %v2386, %v2551
    %v2554 = vadd.f32 %v2387, %v2552
    %s2555 = scalar_lea.vmem %s0, 208
    %v2556 = vld [vmem:[%s2555] sm:$0xff]
    %v2557 = vld [vmem:[%s2555 + $0x8] sm:$0xf]
    %v2559 = vsel %vm93, %v2556, 0
    %v2562 = vsel %vm93, %v2557, 0
    %2564 = vmatpush.msra.mxu0 0.0
    %2565 = vmatpush.msra.mxu0 0.0
    %2566 = vmatpush.msra.mxu0 0.0
    %2567 = vmatpush.msra.mxu0 0.0
    %2568 = vmatpush.msra.mxu0 0.0
    %2569 = vmatpush.msra.mxu0 0.0
    %2570 = vmatpush.msra.mxu0 0.0
    %2571 = vmatpush.msra.mxu0 0.0
    %2572 = vmatpush.msra.mxu0 0.0
    %2573 = vmatpush.msra.mxu0 0.0
    %2574 = vmatpush.msra.mxu0 0.0
    %2575 = vmatpush.msra.mxu0 0.0
    %2576 = vmatpush.msra.mxu0 0.0
    %2577 = vmatpush.msra.mxu0 0.0
    %2578 = vmatpush.msra.mxu0 0.0
    %2579 = vmatpush.msra.mxu0 %v102
    %2580 = vmatmul.f32.gmra.mxu0 %v2559
    %v2581 = vpop.f32.mrf.mxu0
    %v2582 = vadd.f32 0.0, %v2581
    %2583 = vmatmul.f32.gmra.mxu0 %v2562
    %v2584 = vpop.f32.mrf.mxu0
    %v2585 = vadd.f32 0.0, %v2584
    %2586 = vdwg.mxu0
    %v2588 = vsel %vm100, %v2585, 0
    %2590 = vmatpush.msra.mxu0 0.0
    %2591 = vmatpush.msra.mxu0 0.0
    %2592 = vmatpush.msra.mxu0 0.0
    %2593 = vmatpush.msra.mxu0 0.0
    %2594 = vmatpush.msra.mxu0 0.0
    %2595 = vmatpush.msra.mxu0 0.0
    %2596 = vmatpush.msra.mxu0 0.0
    %2597 = vmatpush.msra.mxu0 0.0
    %2598 = vmatpush.msra.mxu0 0.0
    %2599 = vmatpush.msra.mxu0 0.0
    %2600 = vmatpush.msra.mxu0 0.0
    %2601 = vmatpush.msra.mxu0 0.0
    %2602 = vmatpush.msra.mxu0 0.0
    %2603 = vmatpush.msra.mxu0 0.0
    %2604 = vmatpush.msra.mxu0 %v2588
    %2605 = vmatpush.msra.mxu0 %v2582
    %2606 = vmatmul.f32.gmra.mxu0 %v132
    %v2607 = vpop.f32.mrf.mxu0
    %v2608 = vadd.f32 %v128, %v2607
    %2609 = vmatmul.f32.gmra.mxu0 %v135
    %v2610 = vpop.f32.mrf.mxu0
    %v2611 = vadd.f32 %v128, %v2610
    %2612 = vdwg.mxu0
    %v2613 = vmax.f32 %v2608, 0.0
    %v2614 = vmax.f32 %v2611, 0.0
    %v2616 = vsel %vm165, %v2613, 0
    %v2619 = vsel %vm165, %v2614, 0
    %2621 = vmatpush.msra.mxu0 0.0
    %2622 = vmatpush.msra.mxu0 0.0
    %2623 = vmatpush.msra.mxu0 0.0
    %2624 = vmatpush.msra.mxu0 0.0
    %2625 = vmatpush.msra.mxu0 0.0
    %2626 = vmatpush.msra.mxu0 0.0
    %2627 = vmatpush.msra.mxu0 0.0
    %2628 = vmatpush.msra.mxu0 0.0
    %2629 = vmatpush.msra.mxu0 0.0
    %2630 = vmatpush.msra.mxu0 0.0
    %2631 = vmatpush.msra.mxu0 0.0
    %2632 = vmatpush.msra.mxu0 0.0
    %2633 = vmatpush.msra.mxu0 %v79
    %2634 = vmatpush.msra.mxu0 %v78
    %2635 = vmatpush.msra.mxu0 %v77
    %2636 = vmatpush.msra.mxu0 %v76
    %2637 = vmatmul.f32.gmra.mxu0 %v2616
    %v2638 = vpop.f32.mrf.mxu0
    %v2639 = vadd.f32 0.0, %v2638
    %2640 = vmatmul.f32.gmra.mxu0 %v2619
    %v2641 = vpop.f32.mrf.mxu0
    %v2642 = vadd.f32 0.0, %v2641
    %2643 = vdwg.mxu0
    %v2645 = vsel %vm100, %v2642, 0
    %2647 = vmatpush.msra.mxu0 0.0
    %2648 = vmatpush.msra.mxu0 0.0
    %2649 = vmatpush.msra.mxu0 0.0
    %2650 = vmatpush.msra.mxu0 0.0
    %2651 = vmatpush.msra.mxu0 0.0
    %2652 = vmatpush.msra.mxu0 0.0
    %2653 = vmatpush.msra.mxu0 0.0
    %2654 = vmatpush.msra.mxu0 0.0
    %2655 = vmatpush.msra.mxu0 0.0
    %2656 = vmatpush.msra.mxu0 0.0
    %2657 = vmatpush.msra.mxu0 0.0
    %2658 = vmatpush.msra.mxu0 0.0
    %2659 = vmatpush.msra.mxu0 0.0
    %2660 = vmatpush.msra.mxu0 0.0
    %2661 = vmatpush.msra.mxu0 %v2645
    %2662 = vmatpush.msra.mxu0 %v2639
    %2663 = vmatmul.f32.gmra.mxu0 %v132
    %v2664 = vpop.f32.mrf.mxu0
    %v2665 = vadd.f32 %v196, %v2664
    %2666 = vmatmul.f32.gmra.mxu0 %v135
    %v2667 = vpop.f32.mrf.mxu0
    %v2668 = vadd.f32 %v196, %v2667
    %2669 = vdwg.mxu0
    %v2670 = vmax.f32 %v2665, 0.0
    %v2671 = vmax.f32 %v2668, 0.0
    %v2673 = vsel %vm100, %v2671, 0
    %2675 = vmatpush.msra.mxu0 0.0
    %2676 = vmatpush.msra.mxu0 0.0
    %2677 = vmatpush.msra.mxu0 0.0
    %2678 = vmatpush.msra.mxu0 0.0
    %2679 = vmatpush.msra.mxu0 0.0
    %2680 = vmatpush.msra.mxu0 0.0
    %2681 = vmatpush.msra.mxu0 0.0
    %2682 = vmatpush.msra.mxu0 0.0
    %2683 = vmatpush.msra.mxu0 0.0
    %2684 = vmatpush.msra.mxu0 0.0
    %2685 = vmatpush.msra.mxu0 0.0
    %2686 = vmatpush.msra.mxu0 0.0
    %2687 = vmatpush.msra.mxu0 0.0
    %2688 = vmatpush.msra.mxu0 0.0
    %2689 = vmatpush.msra.mxu0 %v2673
    %2690 = vmatpush.msra.mxu0 %v2670
    %2691 = vmatmul.f32.gmra.mxu0 %v237
    %v2692 = vpop.f32.mrf.mxu0
    %v2693 = vadd.f32 %v229, %v2692
    %2694 = vmatmul.f32.gmra.mxu0 %v240
    %v2695 = vpop.f32.mrf.mxu0
    %v2696 = vadd.f32 %v234, %v2695
    %2697 = vdwg.mxu0
    %s2698 = sld [smem:[#allocation2 + $0x280]]
    %v2699 = vstv %s2698
    %v2700 = vmul.f32 %v2699, %v2693
    %v2701 = vmul.f32 %v2699, %v2696
    %v2702 = vadd.f32 %v2535, %v2700
    %v2703 = vadd.f32 %v2536, %v2701
    %s2704 = sld [smem:[#allocation2 + $0x281]]
    %v2705 = vstv %s2704
    %v2706 = vmul.f32 %v2705, %v2693
    %v2707 = vmul.f32 %v2705, %v2696
    %v2708 = vadd.f32 %v2541, %v2706
    %v2709 = vadd.f32 %v2542, %v2707
    %s2710 = sld [smem:[#allocation2 + $0x282]]
    %v2711 = vstv %s2710
    %v2712 = vmul.f32 %v2711, %v2693
    %v2713 = vmul.f32 %v2711, %v2696
    %v2714 = vadd.f32 %v2547, %v2712
    %v2715 = vadd.f32 %v2548, %v2713
    %s2716 = sld [smem:[#allocation2 + $0x283]]
    %v2717 = vstv %s2716
    %v2718 = vmul.f32 %v2717, %v2693
    %v2719 = vmul.f32 %v2717, %v2696
    %v2720 = vadd.f32 %v2553, %v2718
    %v2721 = vadd.f32 %v2554, %v2719
    %s2722 = scalar_lea.vmem %s0, 224
    %v2723 = vld [vmem:[%s2722] sm:$0xff]
    %v2724 = vld [vmem:[%s2722 + $0x8] sm:$0xf]
    %v2726 = vsel %vm93, %v2723, 0
    %v2729 = vsel %vm93, %v2724, 0
    %2731 = vmatpush.msra.mxu0 0.0
    %2732 = vmatpush.msra.mxu0 0.0
    %2733 = vmatpush.msra.mxu0 0.0
    %2734 = vmatpush.msra.mxu0 0.0
    %2735 = vmatpush.msra.mxu0 0.0
    %2736 = vmatpush.msra.mxu0 0.0
    %2737 = vmatpush.msra.mxu0 0.0
    %2738 = vmatpush.msra.mxu0 0.0
    %2739 = vmatpush.msra.mxu0 0.0
    %2740 = vmatpush.msra.mxu0 0.0
    %2741 = vmatpush.msra.mxu0 0.0
    %2742 = vmatpush.msra.mxu0 0.0
    %2743 = vmatpush.msra.mxu0 0.0
    %2744 = vmatpush.msra.mxu0 0.0
    %2745 = vmatpush.msra.mxu0 0.0
    %2746 = vmatpush.msra.mxu0 %v102
    %2747 = vmatmul.f32.gmra.mxu0 %v2726
    %v2748 = vpop.f32.mrf.mxu0
    %v2749 = vadd.f32 0.0, %v2748
    %2750 = vmatmul.f32.gmra.mxu0 %v2729
    %v2751 = vpop.f32.mrf.mxu0
    %v2752 = vadd.f32 0.0, %v2751
    %2753 = vdwg.mxu0
    %v2755 = vsel %vm100, %v2752, 0
    %2757 = vmatpush.msra.mxu0 0.0
    %2758 = vmatpush.msra.mxu0 0.0
    %2759 = vmatpush.msra.mxu0 0.0
    %2760 = vmatpush.msra.mxu0 0.0
    %2761 = vmatpush.msra.mxu0 0.0
    %2762 = vmatpush.msra.mxu0 0.0
    %2763 = vmatpush.msra.mxu0 0.0
    %2764 = vmatpush.msra.mxu0 0.0
    %2765 = vmatpush.msra.mxu0 0.0
    %2766 = vmatpush.msra.mxu0 0.0
    %2767 = vmatpush.msra.mxu0 0.0
    %2768 = vmatpush.msra.mxu0 0.0
    %2769 = vmatpush.msra.mxu0 0.0
    %2770 = vmatpush.msra.mxu0 0.0
    %2771 = vmatpush.msra.mxu0 %v2755
    %2772 = vmatpush.msra.mxu0 %v2749
    %2773 = vmatmul.f32.gmra.mxu0 %v132
    %v2774 = vpop.f32.mrf.mxu0
    %v2775 = vadd.f32 %v128, %v2774
    %2776 = vmatmul.f32.gmra.mxu0 %v135
    %v2777 = vpop.f32.mrf.mxu0
    %v2778 = vadd.f32 %v128, %v2777
    %2779 = vdwg.mxu0
    %v2780 = vmax.f32 %v2775, 0.0
    %v2781 = vmax.f32 %v2778, 0.0
    %v2783 = vsel %vm165, %v2780, 0
    %v2786 = vsel %vm165, %v2781, 0
    %2788 = vmatpush.msra.mxu0 0.0
    %2789 = vmatpush.msra.mxu0 0.0
    %2790 = vmatpush.msra.mxu0 0.0
    %2791 = vmatpush.msra.mxu0 0.0
    %2792 = vmatpush.msra.mxu0 0.0
    %2793 = vmatpush.msra.mxu0 0.0
    %2794 = vmatpush.msra.mxu0 0.0
    %2795 = vmatpush.msra.mxu0 0.0
    %2796 = vmatpush.msra.mxu0 0.0
    %2797 = vmatpush.msra.mxu0 0.0
    %2798 = vmatpush.msra.mxu0 0.0
    %2799 = vmatpush.msra.mxu0 0.0
    %2800 = vmatpush.msra.mxu0 %v79
    %2801 = vmatpush.msra.mxu0 %v78
    %2802 = vmatpush.msra.mxu0 %v77
    %2803 = vmatpush.msra.mxu0 %v76
    %2804 = vmatmul.f32.gmra.mxu0 %v2783
    %v2805 = vpop.f32.mrf.mxu0
    %v2806 = vadd.f32 0.0, %v2805
    %2807 = vmatmul.f32.gmra.mxu0 %v2786
    %v2808 = vpop.f32.mrf.mxu0
    %v2809 = vadd.f32 0.0, %v2808
    %2810 = vdwg.mxu0
    %v2812 = vsel %vm100, %v2809, 0
    %2814 = vmatpush.msra.mxu0 0.0
    %2815 = vmatpush.msra.mxu0 0.0
    %2816 = vmatpush.msra.mxu0 0.0
    %2817 = vmatpush.msra.mxu0 0.0
    %2818 = vmatpush.msra.mxu0 0.0
    %2819 = vmatpush.msra.mxu0 0.0
    %2820 = vmatpush.msra.mxu0 0.0
    %2821 = vmatpush.msra.mxu0 0.0
    %2822 = vmatpush.msra.mxu0 0.0
    %2823 = vmatpush.msra.mxu0 0.0
    %2824 = vmatpush.msra.mxu0 0.0
    %2825 = vmatpush.msra.mxu0 0.0
    %2826 = vmatpush.msra.mxu0 0.0
    %2827 = vmatpush.msra.mxu0 0.0
    %2828 = vmatpush.msra.mxu0 %v2812
    %2829 = vmatpush.msra.mxu0 %v2806
    %2830 = vmatmul.f32.gmra.mxu0 %v132
    %v2831 = vpop.f32.mrf.mxu0
    %v2832 = vadd.f32 %v196, %v2831
    %2833 = vmatmul.f32.gmra.mxu0 %v135
    %v2834 = vpop.f32.mrf.mxu0
    %v2835 = vadd.f32 %v196, %v2834
    %2836 = vdwg.mxu0
    %v2837 = vmax.f32 %v2832, 0.0
    %v2838 = vmax.f32 %v2835, 0.0
    %v2840 = vsel %vm100, %v2838, 0
    %2842 = vmatpush.msra.mxu0 0.0
    %2843 = vmatpush.msra.mxu0 0.0
    %2844 = vmatpush.msra.mxu0 0.0
    %2845 = vmatpush.msra.mxu0 0.0
    %2846 = vmatpush.msra.mxu0 0.0
    %2847 = vmatpush.msra.mxu0 0.0
    %2848 = vmatpush.msra.mxu0 0.0
    %2849 = vmatpush.msra.mxu0 0.0
    %2850 = vmatpush.msra.mxu0 0.0
    %2851 = vmatpush.msra.mxu0 0.0
    %2852 = vmatpush.msra.mxu0 0.0
    %2853 = vmatpush.msra.mxu0 0.0
    %2854 = vmatpush.msra.mxu0 0.0
    %2855 = vmatpush.msra.mxu0 0.0
    %2856 = vmatpush.msra.mxu0 %v2840
    %2857 = vmatpush.msra.mxu0 %v2837
    %2858 = vmatmul.f32.gmra.mxu0 %v237
    %v2859 = vpop.f32.mrf.mxu0
    %v2860 = vadd.f32 %v229, %v2859
    %2861 = vmatmul.f32.gmra.mxu0 %v240
    %v2862 = vpop.f32.mrf.mxu0
    %v2863 = vadd.f32 %v234, %v2862
    %2864 = vdwg.mxu0
    %s2865 = sld [smem:[#allocation2 + $0x300]]
    %v2866 = vstv %s2865
    %v2867 = vmul.f32 %v2866, %v2860
    %v2868 = vmul.f32 %v2866, %v2863
    %v2869 = vadd.f32 %v2702, %v2867
    %v2870 = vadd.f32 %v2703, %v2868
    %s2871 = sld [smem:[#allocation2 + $0x301]]
    %v2872 = vstv %s2871
    %v2873 = vmul.f32 %v2872, %v2860
    %v2874 = vmul.f32 %v2872, %v2863
    %v2875 = vadd.f32 %v2708, %v2873
    %v2876 = vadd.f32 %v2709, %v2874
    %s2877 = sld [smem:[#allocation2 + $0x302]]
    %v2878 = vstv %s2877
    %v2879 = vmul.f32 %v2878, %v2860
    %v2880 = vmul.f32 %v2878, %v2863
    %v2881 = vadd.f32 %v2714, %v2879
    %v2882 = vadd.f32 %v2715, %v2880
    %s2883 = sld [smem:[#allocation2 + $0x303]]
    %v2884 = vstv %s2883
    %v2885 = vmul.f32 %v2884, %v2860
    %v2886 = vmul.f32 %v2884, %v2863
    %v2887 = vadd.f32 %v2720, %v2885
    %v2888 = vadd.f32 %v2721, %v2886
    %s2889 = scalar_lea.vmem %s0, 240
    %v2890 = vld [vmem:[%s2889] sm:$0xff]
    %v2891 = vld [vmem:[%s2889 + $0x8] sm:$0xf]
    %v2893 = vsel %vm93, %v2890, 0
    %v2896 = vsel %vm93, %v2891, 0
    %2898 = vmatpush.msra.mxu0 0.0
    %2899 = vmatpush.msra.mxu0 0.0
    %2900 = vmatpush.msra.mxu0 0.0
    %2901 = vmatpush.msra.mxu0 0.0
    %2902 = vmatpush.msra.mxu0 0.0
    %2903 = vmatpush.msra.mxu0 0.0
    %2904 = vmatpush.msra.mxu0 0.0
    %2905 = vmatpush.msra.mxu0 0.0
    %2906 = vmatpush.msra.mxu0 0.0
    %2907 = vmatpush.msra.mxu0 0.0
    %2908 = vmatpush.msra.mxu0 0.0
    %2909 = vmatpush.msra.mxu0 0.0
    %2910 = vmatpush.msra.mxu0 0.0
    %2911 = vmatpush.msra.mxu0 0.0
    %2912 = vmatpush.msra.mxu0 0.0
    %2913 = vmatpush.msra.mxu0 %v102
    %2914 = vmatmul.f32.gmra.mxu0 %v2893
    %v2915 = vpop.f32.mrf.mxu0
    %v2916 = vadd.f32 0.0, %v2915
    %2917 = vmatmul.f32.gmra.mxu0 %v2896
    %v2918 = vpop.f32.mrf.mxu0
    %v2919 = vadd.f32 0.0, %v2918
    %2920 = vdwg.mxu0
    %v2922 = vsel %vm100, %v2919, 0
    %2924 = vmatpush.msra.mxu0 0.0
    %2925 = vmatpush.msra.mxu0 0.0
    %2926 = vmatpush.msra.mxu0 0.0
    %2927 = vmatpush.msra.mxu0 0.0
    %2928 = vmatpush.msra.mxu0 0.0
    %2929 = vmatpush.msra.mxu0 0.0
    %2930 = vmatpush.msra.mxu0 0.0
    %2931 = vmatpush.msra.mxu0 0.0
    %2932 = vmatpush.msra.mxu0 0.0
    %2933 = vmatpush.msra.mxu0 0.0
    %2934 = vmatpush.msra.mxu0 0.0
    %2935 = vmatpush.msra.mxu0 0.0
    %2936 = vmatpush.msra.mxu0 0.0
    %2937 = vmatpush.msra.mxu0 0.0
    %2938 = vmatpush.msra.mxu0 %v2922
    %2939 = vmatpush.msra.mxu0 %v2916
    %2940 = vmatmul.f32.gmra.mxu0 %v132
    %v2941 = vpop.f32.mrf.mxu0
    %v2942 = vadd.f32 %v128, %v2941
    %2943 = vmatmul.f32.gmra.mxu0 %v135
    %v2944 = vpop.f32.mrf.mxu0
    %v2945 = vadd.f32 %v128, %v2944
    %2946 = vdwg.mxu0
    %v2947 = vmax.f32 %v2942, 0.0
    %v2948 = vmax.f32 %v2945, 0.0
    %v2950 = vsel %vm165, %v2947, 0
    %v2953 = vsel %vm165, %v2948, 0
    %2955 = vmatpush.msra.mxu0 0.0
    %2956 = vmatpush.msra.mxu0 0.0
    %2957 = vmatpush.msra.mxu0 0.0
    %2958 = vmatpush.msra.mxu0 0.0
    %2959 = vmatpush.msra.mxu0 0.0
    %2960 = vmatpush.msra.mxu0 0.0
    %2961 = vmatpush.msra.mxu0 0.0
    %2962 = vmatpush.msra.mxu0 0.0
    %2963 = vmatpush.msra.mxu0 0.0
    %2964 = vmatpush.msra.mxu0 0.0
    %2965 = vmatpush.msra.mxu0 0.0
    %2966 = vmatpush.msra.mxu0 0.0
    %2967 = vmatpush.msra.mxu0 %v79
    %2968 = vmatpush.msra.mxu0 %v78
    %2969 = vmatpush.msra.mxu0 %v77
    %2970 = vmatpush.msra.mxu0 %v76
    %2971 = vmatmul.f32.gmra.mxu0 %v2950
    %v2972 = vpop.f32.mrf.mxu0
    %v2973 = vadd.f32 0.0, %v2972
    %2974 = vmatmul.f32.gmra.mxu0 %v2953
    %v2975 = vpop.f32.mrf.mxu0
    %v2976 = vadd.f32 0.0, %v2975
    %2977 = vdwg.mxu0
    %v2979 = vsel %vm100, %v2976, 0
    %2981 = vmatpush.msra.mxu0 0.0
    %2982 = vmatpush.msra.mxu0 0.0
    %2983 = vmatpush.msra.mxu0 0.0
    %2984 = vmatpush.msra.mxu0 0.0
    %2985 = vmatpush.msra.mxu0 0.0
    %2986 = vmatpush.msra.mxu0 0.0
    %2987 = vmatpush.msra.mxu0 0.0
    %2988 = vmatpush.msra.mxu0 0.0
    %2989 = vmatpush.msra.mxu0 0.0
    %2990 = vmatpush.msra.mxu0 0.0
    %2991 = vmatpush.msra.mxu0 0.0
    %2992 = vmatpush.msra.mxu0 0.0
    %2993 = vmatpush.msra.mxu0 0.0
    %2994 = vmatpush.msra.mxu0 0.0
    %2995 = vmatpush.msra.mxu0 %v2979
    %2996 = vmatpush.msra.mxu0 %v2973
    %2997 = vmatmul.f32.gmra.mxu0 %v132
    %v2998 = vpop.f32.mrf.mxu0
    %v2999 = vadd.f32 %v196, %v2998
    %3000 = vmatmul.f32.gmra.mxu0 %v135
    %v3001 = vpop.f32.mrf.mxu0
    %v3002 = vadd.f32 %v196, %v3001
    %3003 = vdwg.mxu0
    %v3004 = vmax.f32 %v2999, 0.0
    %v3005 = vmax.f32 %v3002, 0.0
    %v3007 = vsel %vm100, %v3005, 0
    %3009 = vmatpush.msra.mxu0 0.0
    %3010 = vmatpush.msra.mxu0 0.0
    %3011 = vmatpush.msra.mxu0 0.0
    %3012 = vmatpush.msra.mxu0 0.0
    %3013 = vmatpush.msra.mxu0 0.0
    %3014 = vmatpush.msra.mxu0 0.0
    %3015 = vmatpush.msra.mxu0 0.0
    %3016 = vmatpush.msra.mxu0 0.0
    %3017 = vmatpush.msra.mxu0 0.0
    %3018 = vmatpush.msra.mxu0 0.0
    %3019 = vmatpush.msra.mxu0 0.0
    %3020 = vmatpush.msra.mxu0 0.0
    %3021 = vmatpush.msra.mxu0 0.0
    %3022 = vmatpush.msra.mxu0 0.0
    %3023 = vmatpush.msra.mxu0 %v3007
    %3024 = vmatpush.msra.mxu0 %v3004
    %3025 = vmatmul.f32.gmra.mxu0 %v237
    %v3026 = vpop.f32.mrf.mxu0
    %v3027 = vadd.f32 %v229, %v3026
    %3028 = vmatmul.f32.gmra.mxu0 %v240
    %v3029 = vpop.f32.mrf.mxu0
    %v3030 = vadd.f32 %v234, %v3029
    %3031 = vdwg.mxu0
    %s3032 = sld [smem:[#allocation2 + $0x380]]
    %v3033 = vstv %s3032
    %v3034 = vmul.f32 %v3033, %v3027
    %v3035 = vmul.f32 %v3033, %v3030
    %v3036 = vadd.f32 %v2869, %v3034
    %v3037 = vadd.f32 %v2870, %v3035
    %s3038 = sld [smem:[#allocation2 + $0x381]]
    %v3039 = vstv %s3038
    %v3040 = vmul.f32 %v3039, %v3027
    %v3041 = vmul.f32 %v3039, %v3030
    %v3042 = vadd.f32 %v2875, %v3040
    %v3043 = vadd.f32 %v2876, %v3041
    %s3044 = sld [smem:[#allocation2 + $0x382]]
    %v3045 = vstv %s3044
    %v3046 = vmul.f32 %v3045, %v3027
    %v3047 = vmul.f32 %v3045, %v3030
    %v3048 = vadd.f32 %v2881, %v3046
    %v3049 = vadd.f32 %v2882, %v3047
    %s3050 = sld [smem:[#allocation2 + $0x383]]
    %v3051 = vstv %s3050
    %v3052 = vmul.f32 %v3051, %v3027
    %v3053 = vmul.f32 %v3051, %v3030
    %v3054 = vadd.f32 %v2887, %v3052
    %v3055 = vadd.f32 %v2888, %v3053
    %s3056 = sld [smem:[#allocation4]]
    %v3057 = vstv %s3056
    %v3058 = vadd.f32 %v3036, %v3057
    %v3059 = vadd.f32 %v3037, %v3057
    %v3061 = vsel %vm1460, %v3058, 0
    %v3064 = vsel %vm1460, %v3059, 0
    %3066 = vmatpush.msra.mxu0 0.0
    %3067 = vmatpush.msra.mxu0 0.0
    %3068 = vmatpush.msra.mxu0 0.0
    %3069 = vmatpush.msra.mxu0 0.0
    %3070 = vmatpush.msra.mxu0 0.0
    %3071 = vmatpush.msra.mxu0 0.0
    %3072 = vmatpush.msra.mxu0 0.0
    %3073 = vmatpush.msra.mxu0 0.0
    %3074 = vmatpush.msra.mxu0 0.0
    %3075 = vmatpush.msra.mxu0 0.0
    %3076 = vmatpush.msra.mxu0 0.0
    %3077 = vmatpush.msra.mxu0 0.0
    %3078 = vmatpush.msra.mxu0 0.0
    %3079 = vmatpush.msra.mxu0 0.0
    %3080 = vmatpush.msra.mxu0 %v86
    %3081 = vmatpush.msra.mxu0 %v85
    %3082 = vmatmul.f32.gmra.mxu0 %v3061
    %v3083 = vpop.f32.mrf.mxu0
    %v3084 = vadd.f32 %v1458, %v3083
    %3085 = vmatmul.f32.gmra.mxu0 %v3064
    %v3086 = vpop.f32.mrf.mxu0
    %v3087 = vadd.f32 %v1458, %v3086
    %3088 = vdwg.mxu0
    %v3089 = vmax.f32 %v3084, 0.0
    %v3090 = vmax.f32 %v3087, 0.0
    %v3092 = vsel %vm1460, %v3089, 0
    %v3095 = vsel %vm1460, %v3090, 0
    %3097 = vmatpush.msra.mxu0 0.0
    %3098 = vmatpush.msra.mxu0 0.0
    %3099 = vmatpush.msra.mxu0 0.0
    %3100 = vmatpush.msra.mxu0 0.0
    %3101 = vmatpush.msra.mxu0 0.0
    %3102 = vmatpush.msra.mxu0 0.0
    %3103 = vmatpush.msra.mxu0 0.0
    %3104 = vmatpush.msra.mxu0 0.0
    %3105 = vmatpush.msra.mxu0 0.0
    %3106 = vmatpush.msra.mxu0 0.0
    %3107 = vmatpush.msra.mxu0 0.0
    %3108 = vmatpush.msra.mxu0 0.0
    %3109 = vmatpush.msra.mxu0 0.0
    %3110 = vmatpush.msra.mxu0 0.0
    %3111 = vmatpush.msra.mxu0 %v89
    %3112 = vmatpush.msra.mxu0 %v88
    %3113 = vmatmul.f32.gmra.mxu0 %v3092
    %v3114 = vpop.f32.mrf.mxu0
    %v3115 = vadd.f32 %v1493, %v3114
    %3116 = vmatmul.f32.gmra.mxu0 %v3095
    %v3117 = vpop.f32.mrf.mxu0
    %v3118 = vadd.f32 %v1493, %v3117
    %3119 = vdwg.mxu0
    %s3120 = scalar_lea.vmem %s14, 64
    %3121 = vst.msk [vmem:[%s3120] sm:$0xff] %vm1460, %v3115
    %3122 = vst.msk [vmem:[%s3120 + $0x8] sm:$0x3] %vm1525, %v3118
    %s3123 = sld [smem:[#allocation4 + $0x1]]
    %v3124 = vstv %s3123
    %v3125 = vadd.f32 %v3042, %v3124
    %v3126 = vadd.f32 %v3043, %v3124
    %v3128 = vsel %vm1460, %v3125, 0
    %v3131 = vsel %vm1460, %v3126, 0
    %3133 = vmatpush.msra.mxu0 0.0
    %3134 = vmatpush.msra.mxu0 0.0
    %3135 = vmatpush.msra.mxu0 0.0
    %3136 = vmatpush.msra.mxu0 0.0
    %3137 = vmatpush.msra.mxu0 0.0
    %3138 = vmatpush.msra.mxu0 0.0
    %3139 = vmatpush.msra.mxu0 0.0
    %3140 = vmatpush.msra.mxu0 0.0
    %3141 = vmatpush.msra.mxu0 0.0
    %3142 = vmatpush.msra.mxu0 0.0
    %3143 = vmatpush.msra.mxu0 0.0
    %3144 = vmatpush.msra.mxu0 0.0
    %3145 = vmatpush.msra.mxu0 0.0
    %3146 = vmatpush.msra.mxu0 0.0
    %3147 = vmatpush.msra.mxu0 %v86
    %3148 = vmatpush.msra.mxu0 %v85
    %3149 = vmatmul.f32.gmra.mxu0 %v3128
    %v3150 = vpop.f32.mrf.mxu0
    %v3151 = vadd.f32 %v1458, %v3150
    %3152 = vmatmul.f32.gmra.mxu0 %v3131
    %v3153 = vpop.f32.mrf.mxu0
    %v3154 = vadd.f32 %v1458, %v3153
    %3155 = vdwg.mxu0
    %v3156 = vmax.f32 %v3151, 0.0
    %v3157 = vmax.f32 %v3154, 0.0
    %v3159 = vsel %vm1460, %v3156, 0
    %v3162 = vsel %vm1460, %v3157, 0
    %3164 = vmatpush.msra.mxu0 0.0
    %3165 = vmatpush.msra.mxu0 0.0
    %3166 = vmatpush.msra.mxu0 0.0
    %3167 = vmatpush.msra.mxu0 0.0
    %3168 = vmatpush.msra.mxu0 0.0
    %3169 = vmatpush.msra.mxu0 0.0
    %3170 = vmatpush.msra.mxu0 0.0
    %3171 = vmatpush.msra.mxu0 0.0
    %3172 = vmatpush.msra.mxu0 0.0
    %3173 = vmatpush.msra.mxu0 0.0
    %3174 = vmatpush.msra.mxu0 0.0
    %3175 = vmatpush.msra.mxu0 0.0
    %3176 = vmatpush.msra.mxu0 0.0
    %3177 = vmatpush.msra.mxu0 0.0
    %3178 = vmatpush.msra.mxu0 %v89
    %3179 = vmatpush.msra.mxu0 %v88
    %3180 = vmatmul.f32.gmra.mxu0 %v3159
    %v3181 = vpop.f32.mrf.mxu0
    %v3182 = vadd.f32 %v1493, %v3181
    %3183 = vmatmul.f32.gmra.mxu0 %v3162
    %v3184 = vpop.f32.mrf.mxu0
    %v3185 = vadd.f32 %v1493, %v3184
    %3186 = vdwg.mxu0
    %s3187 = scalar_lea.vmem %s14, 80
    %3188 = vst.msk [vmem:[%s3187] sm:$0xff] %vm1460, %v3182
    %3189 = vst.msk [vmem:[%s3187 + $0x8] sm:$0x3] %vm1525, %v3185
    %s3190 = sld [smem:[#allocation4 + $0x2]]
    %v3191 = vstv %s3190
    %v3192 = vadd.f32 %v3048, %v3191
    %v3193 = vadd.f32 %v3049, %v3191
    %v3195 = vsel %vm1460, %v3192, 0
    %v3198 = vsel %vm1460, %v3193, 0
    %3200 = vmatpush.msra.mxu0 0.0
    %3201 = vmatpush.msra.mxu0 0.0
    %3202 = vmatpush.msra.mxu0 0.0
    %3203 = vmatpush.msra.mxu0 0.0
    %3204 = vmatpush.msra.mxu0 0.0
    %3205 = vmatpush.msra.mxu0 0.0
    %3206 = vmatpush.msra.mxu0 0.0
    %3207 = vmatpush.msra.mxu0 0.0
    %3208 = vmatpush.msra.mxu0 0.0
    %3209 = vmatpush.msra.mxu0 0.0
    %3210 = vmatpush.msra.mxu0 0.0
    %3211 = vmatpush.msra.mxu0 0.0
    %3212 = vmatpush.msra.mxu0 0.0
    %3213 = vmatpush.msra.mxu0 0.0
    %3214 = vmatpush.msra.mxu0 %v86
    %3215 = vmatpush.msra.mxu0 %v85
    %3216 = vmatmul.f32.gmra.mxu0 %v3195
    %v3217 = vpop.f32.mrf.mxu0
    %v3218 = vadd.f32 %v1458, %v3217
    %3219 = vmatmul.f32.gmra.mxu0 %v3198
    %v3220 = vpop.f32.mrf.mxu0
    %v3221 = vadd.f32 %v1458, %v3220
    %3222 = vdwg.mxu0
    %v3223 = vmax.f32 %v3218, 0.0
    %v3224 = vmax.f32 %v3221, 0.0
    %v3226 = vsel %vm1460, %v3223, 0
    %v3229 = vsel %vm1460, %v3224, 0
    %3231 = vmatpush.msra.mxu0 0.0
    %3232 = vmatpush.msra.mxu0 0.0
    %3233 = vmatpush.msra.mxu0 0.0
    %3234 = vmatpush.msra.mxu0 0.0
    %3235 = vmatpush.msra.mxu0 0.0
    %3236 = vmatpush.msra.mxu0 0.0
    %3237 = vmatpush.msra.mxu0 0.0
    %3238 = vmatpush.msra.mxu0 0.0
    %3239 = vmatpush.msra.mxu0 0.0
    %3240 = vmatpush.msra.mxu0 0.0
    %3241 = vmatpush.msra.mxu0 0.0
    %3242 = vmatpush.msra.mxu0 0.0
    %3243 = vmatpush.msra.mxu0 0.0
    %3244 = vmatpush.msra.mxu0 0.0
    %3245 = vmatpush.msra.mxu0 %v89
    %3246 = vmatpush.msra.mxu0 %v88
    %3247 = vmatmul.f32.gmra.mxu0 %v3226
    %v3248 = vpop.f32.mrf.mxu0
    %v3249 = vadd.f32 %v1493, %v3248
    %3250 = vmatmul.f32.gmra.mxu0 %v3229
    %v3251 = vpop.f32.mrf.mxu0
    %v3252 = vadd.f32 %v1493, %v3251
    %3253 = vdwg.mxu0
    %s3254 = scalar_lea.vmem %s14, 96
    %3255 = vst.msk [vmem:[%s3254] sm:$0xff] %vm1460, %v3249
    %3256 = vst.msk [vmem:[%s3254 + $0x8] sm:$0x3] %vm1525, %v3252
    %s3257 = sld [smem:[#allocation4 + $0x3]]
    %v3258 = vstv %s3257
    %v3259 = vadd.f32 %v3054, %v3258
    %v3260 = vadd.f32 %v3055, %v3258
    %v3262 = vsel %vm1460, %v3259, 0
    %v3265 = vsel %vm1460, %v3260, 0
    %3267 = vmatpush.msra.mxu0 0.0
    %3268 = vmatpush.msra.mxu0 0.0
    %3269 = vmatpush.msra.mxu0 0.0
    %3270 = vmatpush.msra.mxu0 0.0
    %3271 = vmatpush.msra.mxu0 0.0
    %3272 = vmatpush.msra.mxu0 0.0
    %3273 = vmatpush.msra.mxu0 0.0
    %3274 = vmatpush.msra.mxu0 0.0
    %3275 = vmatpush.msra.mxu0 0.0
    %3276 = vmatpush.msra.mxu0 0.0
    %3277 = vmatpush.msra.mxu0 0.0
    %3278 = vmatpush.msra.mxu0 0.0
    %3279 = vmatpush.msra.mxu0 0.0
    %3280 = vmatpush.msra.mxu0 0.0
    %3281 = vmatpush.msra.mxu0 %v86
    %3282 = vmatpush.msra.mxu0 %v85
    %3283 = vmatmul.f32.gmra.mxu0 %v3262
    %v3284 = vpop.f32.mrf.mxu0
    %v3285 = vadd.f32 %v1458, %v3284
    %3286 = vmatmul.f32.gmra.mxu0 %v3265
    %v3287 = vpop.f32.mrf.mxu0
    %v3288 = vadd.f32 %v1458, %v3287
    %3289 = vdwg.mxu0
    %v3290 = vmax.f32 %v3285, 0.0
    %v3291 = vmax.f32 %v3288, 0.0
    %v3293 = vsel %vm1460, %v3290, 0
    %v3296 = vsel %vm1460, %v3291, 0
    %3298 = vmatpush.msra.mxu0 0.0
    %3299 = vmatpush.msra.mxu0 0.0
    %3300 = vmatpush.msra.mxu0 0.0
    %3301 = vmatpush.msra.mxu0 0.0
    %3302 = vmatpush.msra.mxu0 0.0
    %3303 = vmatpush.msra.mxu0 0.0
    %3304 = vmatpush.msra.mxu0 0.0
    %3305 = vmatpush.msra.mxu0 0.0
    %3306 = vmatpush.msra.mxu0 0.0
    %3307 = vmatpush.msra.mxu0 0.0
    %3308 = vmatpush.msra.mxu0 0.0
    %3309 = vmatpush.msra.mxu0 0.0
    %3310 = vmatpush.msra.mxu0 0.0
    %3311 = vmatpush.msra.mxu0 0.0
    %3312 = vmatpush.msra.mxu0 %v89
    %3313 = vmatpush.msra.mxu0 %v88
    %3314 = vmatmul.f32.gmra.mxu0 %v3293
    %v3315 = vpop.f32.mrf.mxu0
    %v3316 = vadd.f32 %v1493, %v3315
    %3317 = vmatmul.f32.gmra.mxu0 %v3296
    %v3318 = vpop.f32.mrf.mxu0
    %v3319 = vadd.f32 %v1493, %v3318
    %3320 = vdwg.mxu0
    %s3321 = scalar_lea.vmem %s14, 112
    %3322 = vst.msk [vmem:[%s3321] sm:$0xff] %vm1460, %v3316
    %3323 = vst.msk [vmem:[%s3321 + $0x8] sm:$0x3] %vm1525, %v3319
    // Predicated region
    $region66: #{mmwp_forward.3} parent=1 // pred_check
      _
    $region67: #{mmwp_forward.3} parent=1 // pred_check_branch
      %3325 = sbr.rel (0) target = $region69
    $region68: #{mmwp_forward.3} parent=1 // pred_region
      _
    $region69: #{mmwp_forward.3} parent=1 // pred_fallthru
      _
    // Predicated region
    $region70: #{mmwp_forward.3} parent=1 // pred_check
      _
    $region71: #{mmwp_forward.3} parent=1 // pred_check_branch
      %3327 = sbr.rel (0) target = $region73
    $region72: #{mmwp_forward.3} parent=1 // pred_region
      _
    $region73: #{mmwp_forward.3} parent=1 // pred_fallthru
      _
    %3328 = vsyncpa [#allocation3], 1
    %3329 = vsyncpa [#allocation5], 1

</llo_original>
